<compile_context>
chip_gen: v7x
topology: tpu7x:2x2x1
jax: 0.10.0
libtpu: 0.0.40
codegen_flags: <defaults>
</compile_context>

<pallas_src>
import functools

import jax
import jax.numpy as jnp
import numpy as np
from jax.experimental import pallas as pl
from jax.experimental.pallas import tpu as pltpu

# Lane widths (padded to multiples of 128).
L_IN = 128    # input rows:   28*4  = 112 real lanes
L_MID = 256   # mid rows:     14*16 = 7*32 = 224 real lanes
L_OUT = 128   # output rows:  28*4  = 112 real lanes


def _round_up(a, b):
    return (a + b - 1) // b * b


# ---------------------------------------------------------------------------
# Host-side packing: horizontal conv structure -> lane-padded block-Toeplitz.
# ---------------------------------------------------------------------------
def _conv_row_toeplitz(w, w_in, stride, pad, in_lanes, out_lanes):
    """Forward Conv2d: per vertical tap i, T[i] maps a lane-packed input row
    (w_in*cin, padded to in_lanes) to a lane-packed output row (w_out*cout,
    padded to out_lanes)."""
    kh, kw, cin, cout = w.shape
    w_out = (w_in + 2 * pad - kw) // stride + 1
    t = np.zeros((kh, in_lanes, out_lanes), np.float32)
    for i in range(kh):
        for wo in range(w_out):
            for j in range(kw):
                wi = stride * wo + j - pad
                if 0 <= wi < w_in:
                    t[i, wi * cin:(wi + 1) * cin, wo * cout:(wo + 1) * cout] = w[i, j]
    return t


def _convT_row_toeplitz(w, w_in, stride, pad, out_pad, in_lanes, out_lanes):
    """ConvTranspose2d: out[stride*wi - pad + kj] += in[wi] @ w[:, kj]."""
    kh, kw, cin, cout = w.shape
    w_out = stride * (w_in - 1) + kw - 2 * pad + out_pad
    s = np.zeros((kh, in_lanes, out_lanes), np.float32)
    for k in range(kh):
        for wi in range(w_in):
            for kj in range(kw):
                wo = stride * wi - pad + kj
                if 0 <= wo < w_out:
                    s[k, wi * cin:(wi + 1) * cin, wo * cout:(wo + 1) * cout] = w[k, kj]
    return s


# ---------------------------------------------------------------------------
# Parameters (deterministic in-script init; bf16-rounded so kernel == reference)
# ---------------------------------------------------------------------------
def init_params(final_kernel=7, seed=42):
    q = final_kernel
    rng = np.random.default_rng(seed)

    def layer(kh, kw, cin, cout):
        std = 1.0 / np.sqrt(kh * kw * cin)
        wgt = rng.normal(0.0, std, size=(kh, kw, cin, cout)).astype(np.float32)
        wgt = np.asarray(jnp.asarray(wgt, jnp.bfloat16).astype(jnp.float32))
        b = rng.uniform(-std, std, size=(cout,)).astype(np.float32)
        return wgt, b

    w1, b1 = layer(3, 3, 4, 16)       # Conv2d(4, 16, 3, stride=2, padding=1)
    w2, b2 = layer(3, 3, 16, 32)      # Conv2d(16, 32, 3, stride=2, padding=1)
    w3, b3 = layer(q, q, 32, 64)      # Conv2d(32, 64, q)
    w4, b4 = layer(q, q, 64, 32)      # ConvTranspose2d(64, 32, q)
    w5, b5 = layer(3, 3, 32, 16)      # ConvTranspose2d(32, 16, 3, 2, 1, output_padding=1)
    w6, b6 = layer(3, 3, 16, 4)       # ConvTranspose2d(16, 4, 3, 2, 1, output_padding=1)

    # Latent Conv3 as ONE long-K matmul: enc2 row u lives at lane offset u*L_MID.
    v3c = np.zeros((q * L_MID, 64), np.float32)
    for u in range(q):
        v3c[u * L_MID:u * L_MID + q * 32, :] = w3[u].reshape(q * 32, 64)

    # Decoder ConvT1 as ONE long-N matmul: dec1 row u at lane offset u*L_MID.
    u4c = np.zeros((64, q * L_MID), np.float32)
    w4t = np.transpose(w4, (0, 2, 1, 3)).reshape(q, 64, q * 32)
    for u in range(q):
        u4c[:, u * L_MID:u * L_MID + q * 32] = w4t[u]

    def tile_pad(b, reps, lanes):
        row = np.zeros((1, lanes), np.float32)   # zeros on the padded lanes
        v = np.tile(b, reps)
        row[0, :v.size] = v
        return row

    bf = jnp.bfloat16
    kparams = {
        "t1": jnp.asarray(_conv_row_toeplitz(w1, 4 * q, 2, 1, L_IN, L_MID), bf),   # (3,128,256)
        "t2": jnp.asarray(_conv_row_toeplitz(w2, 2 * q, 2, 1, L_MID, L_MID), bf),  # (3,256,256)
        "v3c": jnp.asarray(v3c, bf),                                               # (q*256, 64)
        "u4c": jnp.asarray(u4c, bf),                                               # (64, q*256)
        "s2": jnp.asarray(_convT_row_toeplitz(w5, q, 2, 1, 1, L_MID, L_MID), bf),  # (3,256,256)
        "s3": jnp.asarray(_convT_row_toeplitz(w6, 2 * q, 2, 1, 1, L_MID, L_OUT), bf),  # (3,256,128)
        "b1r": jnp.asarray(tile_pad(b1, 2 * q, L_MID)),
        "b2r": jnp.asarray(tile_pad(b2, q, L_MID)),
        "b3r": jnp.asarray(b3[None, :]),
        "b4r": jnp.asarray(np.tile(tile_pad(b4, q, L_MID), (1, q))),
        "b5r": jnp.asarray(tile_pad(b5, 2 * q, L_MID)),
        "b6r": jnp.asarray(tile_pad(b6, 4 * q, L_OUT)),
    }
    raw = {k: jnp.asarray(v) for k, v in
           dict(w1=w1, b1=b1, w2=w2, b2=b2, w3=w3, b3=b3,
                w4=w4, b4=b4, w5=w5, b5=b5, w6=w6, b6=b6).items()}
    return kparams, raw


# ---------------------------------------------------------------------------
# The fused kernel.  Per batch tile (bt images): every activation is a 2-D
# "(row, width*channels)" slab, row index = v*bt + image, lanes padded to
# 128/256.  Stride-2 layers use an even/odd row-phase decomposition.
# ---------------------------------------------------------------------------
def _autoencoder_kernel(x_ref, t1_ref, t2_ref, v3_ref, u4_ref, s2_ref, s3_ref,
                        b1_ref, b2_ref, b3_ref, b4_ref, b5_ref, b6_ref,
                        out_ref, o1_buf, d1_buf, e2_buf, a2_buf, *, bt, q):
    f32, bf16 = jnp.float32, jnp.bfloat16
    nq = q * bt

    def mm(a, w):
        return jnp.dot(a, w, preferred_element_type=f32)

    # Scratch is uninitialized: zero only the padding row-blocks the shifts read.
    zrow = jnp.zeros((bt, L_MID), bf16)
    o1_buf[0:bt, :] = zrow            # enc1 row "-1"
    d1_buf[nq:nq + bt, :] = zrow      # dec1 row "q"
    e2_buf[nq:nq + bt, :] = zrow      # dec2 even row "q"

    # ----- encoder Conv1: 4->16, k3 s2 p1 (input arrives 4-row-phase split) ----
    x3a = x_ref[3, 0:nq, :]           # input rows 4u-1
    x0b = x_ref[0, bt:nq + bt, :]     # input rows 4u
    x1b = x_ref[1, bt:nq + bt, :]     # input rows 4u+1
    x2b = x_ref[2, bt:nq + bt, :]     # input rows 4u+2
    x3b = x_ref[3, bt:nq + bt, :]     # input rows 4u+3
    b1 = b1_ref[...]
    e1 = jnp.maximum(mm(x3a, t1_ref[0]) + mm(x0b, t1_ref[1]) + mm(x1b, t1_ref[2]) + b1, 0.0)
    o1 = jnp.maximum(mm(x1b, t1_ref[0]) + mm(x2b, t1_ref[1]) + mm(x3b, t1_ref[2]) + b1, 0.0)
    o1_buf[bt:nq + bt, :] = o1.astype(bf16)    # odd enc1 rows, zero block in front

    # ----- encoder Conv2: 16->32, k3 s2 p1 --------------------------------------
    e1b = e1.astype(bf16)
    o1a = o1_buf[0:nq, :]             # enc1 rows 2u-1
    o1b = o1_buf[bt:nq + bt, :]       # enc1 rows 2u+1
    a2 = jnp.maximum(mm(o1a, t2_ref[0]) + mm(e1b, t2_ref[1]) + mm(o1b, t2_ref[2])
                     + b2_ref[...], 0.0)

    # ----- encoder Conv3 (latent): gather rows onto lanes, ONE long-K matmul ----
    for u in range(q):
        a2_buf[:, u * L_MID:(u + 1) * L_MID] = a2[u * bt:(u + 1) * bt, :].astype(bf16)
    z = mm(a2_buf[...], v3_ref[...]) + b3_ref[...]            # (bt, 64), no activation

    # ----- decoder ConvT1: 64->32, k=q: ONE long-N matmul, scatter lanes->rows --
    d1 = jnp.maximum(mm(z.astype(bf16), u4_ref[...]) + b4_ref[...], 0.0)  # (bt, q*256)
    for u in range(q):
        d1_buf[u * bt:(u + 1) * bt, :] = d1[:, u * L_MID:(u + 1) * L_MID].astype(bf16)

    # ----- decoder ConvT2: 32->16, k3 s2 p1 op1 ---------------------------------
    d1a = d1_buf[0:nq, :]             # dec1 rows u
    d1b = d1_buf[bt:nq + bt, :]       # dec1 rows u+1 (last block = 0)
    b5 = b5_ref[...]
    e2 = jnp.maximum(mm(d1a, s2_ref[1]) + b5, 0.0)                        # rows 2u
    o2 = jnp.maximum(mm(d1a, s2_ref[2]) + mm(d1b, s2_ref[0]) + b5, 0.0)   # rows 2u+1
    e2_buf[0:nq, :] = e2.astype(bf16)

    # ----- decoder ConvT3: 16->4, k3 s2 p1 op1, sigmoid -------------------------
    e2a = e2.astype(bf16)
    e2s = e2_buf[bt:nq + bt, :]       # dec2 even rows 2u+2 (last block = 0)
    o2b = o2.astype(bf16)
    b6 = b6_ref[...]

    def sig(v):   # sigmoid(x) = 0.5*tanh(x/2) + 0.5 : stable, single EUP op
        return 0.5 * jnp.tanh(0.5 * v) + 0.5

    odt = out_ref.dtype
    out_ref[0, :, :] = sig(mm(e2a, s3_ref[1]) + b6).astype(odt)                       # rows 4u
    out_ref[1, :, :] = sig(mm(e2a, s3_ref[2]) + mm(o2b, s3_ref[0]) + b6).astype(odt)  # rows 4u+1
    out_ref[2, :, :] = sig(mm(o2b, s3_ref[1]) + b6).astype(odt)                       # rows 4u+2
    out_ref[3, :, :] = sig(mm(o2b, s3_ref[2]) + mm(e2s, s3_ref[0]) + b6).astype(odt)  # rows 4u+3


def _tiled_spec(shape):
    rest = len(shape) - 1
    return pl.BlockSpec((pl.Squeezed(),) + tuple(shape[1:]),
                        lambda t, _r=rest: (t,) + (0,) * _r)


def _const_spec(shape):
    nd = len(shape)
    return pl.BlockSpec(tuple(shape), lambda t, _nd=nd: (0,) * _nd)


# ---------------------------------------------------------------------------
# Forward pass (mirrors Autoencoder.forward); glue is input/output-only XLA.
# ---------------------------------------------------------------------------
@functools.partial(jax.jit, static_argnames=("final_kernel", "block_batch"))
def autoencoder_forward(x_nchw, params, final_kernel=7, block_batch=None):
    q = final_kernel
    n, cin, h, w = x_nchw.shape
    assert cin == 4 and h == 4 * q and w == 4 * q     # geometry implied by the module
    win = w * cin                                     # 112 real input lanes

    # Batch tile: multiple of 8 (sublane-aligned slices), capped so that the
    # VMEM footprint stays far below v7x's 64 MiB (and v5e/v6e's 128 MiB).
    bt = block_batch if block_batch is not None else _round_up(min(n, 32), 8)
    n_pad = _round_up(n, bt)
    nt = n_pad // bt

    # NCHW -> lane-packed rows (lane-padded to 128), 4 leading zero rows,
    # 4-row-phase split, images of one batch tile interleaved along the row axis.
    x = jnp.transpose(x_nchw, (0, 2, 3, 1)).reshape(n, h, win)
    x = jnp.pad(x, ((0, n_pad - n), (4, 0), (0, L_IN - win)))
    x = x.reshape(nt, bt, q + 1, 4, L_IN)
    x = jnp.transpose(x, (0, 3, 2, 1, 4)).reshape(nt, 4, (q + 1) * bt, L_IN)
    x = x.astype(jnp.bfloat16)

    wkeys = ("t1", "t2", "v3c", "u4c", "s2", "s3",
             "b1r", "b2r", "b3r", "b4r", "b5r", "b6r")
    out_shape = (nt, 4, q * bt, L_OUT)

    out = pl.pallas_call(
        functools.partial(_autoencoder_kernel, bt=bt, q=q),
        out_shape=jax.ShapeDtypeStruct(out_shape, jnp.bfloat16),
        grid=(nt,),
        in_specs=[_tiled_spec(x.shape)] + [_const_spec(params[k].shape) for k in wkeys],
        out_specs=_tiled_spec(out_shape),
        scratch_shapes=[pltpu.VMEM(((q + 1) * bt, L_MID), jnp.bfloat16),   # o1 (shifted)
                        pltpu.VMEM(((q + 1) * bt, L_MID), jnp.bfloat16),   # d1 (shifted)
                        pltpu.VMEM(((q + 1) * bt, L_MID), jnp.bfloat16),   # e2 (shifted)
                        pltpu.VMEM((bt, q * L_MID), jnp.bfloat16)],        # a2 lane-major
        compiler_params=pltpu.CompilerParams(dimension_semantics=("parallel",)),
    )(x, *[params[k] for k in wkeys])

    # (tiles, 4 row-phases, q rows, bt images, 128 lanes) -> NCHW, drop padding.
    y = out.reshape(nt, 4, q, bt, L_OUT)
    y = jnp.transpose(y, (0, 3, 2, 1, 4)).reshape(n_pad, h, L_OUT)
    y = y[:n, :, :win].reshape(n, h, w, cin).astype(jnp.float32)
    return jnp.transpose(y, (0, 3, 1, 2))


# ---------------------------------------------------------------------------
# Plain-XLA reference of the same module (for the in-script correctness check).
# ---------------------------------------------------------------------------
def reference_forward(x_nchw, w):
    dn = ("NHWC", "HWIO", "NHWC")
    conv = functools.partial(jax.lax.conv_general_dilated, dimension_numbers=dn,
                             precision=jax.lax.Precision.HIGHEST)

    def convT(x, wt, s, p, op):
        k = wt.shape[0]
        pad = (k - 1 - p, k - 1 - p + op)
        return conv(x, wt[::-1, ::-1], (1, 1), (pad, pad), lhs_dilation=(s, s))

    x = jnp.transpose(x_nchw, (0, 2, 3, 1))
    x = jax.nn.relu(conv(x, w["w1"], (2, 2), ((1, 1), (1, 1))) + w["b1"])
    x = jax.nn.relu(conv(x, w["w2"], (2, 2), ((1, 1), (1, 1))) + w["b2"])
    x = conv(x, w["w3"], (1, 1), ((0, 0), (0, 0))) + w["b3"]
    x = jax.nn.relu(convT(x, w["w4"], 1, 0, 0) + w["b4"])
    x = jax.nn.relu(convT(x, w["w5"], 2, 1, 1) + w["b5"])
    x = jax.nn.sigmoid(convT(x, w["w6"], 2, 1, 1) + w["b6"])
    return jnp.transpose(x, (0, 3, 1, 2))


# ---------------------------------------------------------------------------
if __name__ == "__main__":
    final_kernel = 7
    batch, cin, spatial = 2, 4, 4 * final_kernel   # 28 -> 14 -> 7 -> 1 -> 7 -> 14 -> 28
    x = jax.random.uniform(jax.random.PRNGKey(0), (batch, cin, spatial, spatial),
                           dtype=jnp.float32)

    kparams, raw = init_params(final_kernel)
    y = autoencoder_forward(x, kparams, final_kernel=final_kernel)
    y = jax.block_until_ready(y)

    assert y.shape == (batch, cin, spatial, spatial), y.shape
    assert bool(jnp.all(jnp.isfinite(y)))
    assert bool(jnp.all((y >= 0.0) & (y <= 1.0)))   # sigmoid output range

    # correctness vs a plain-XLA implementation of the same module
    y_ref = jax.block_until_ready(reference_forward(x, raw))
    err = float(jnp.max(jnp.abs(y - y_ref)))
    assert err < 5e-2, f"mismatch vs reference: {err}"

    print("KERNEL_OK")
</pallas_src>

<mosaic_0001>
module attributes {stable_mosaic.version = 11 : i64} {
  func.func @_autoencoder_kernel(%arg0: i32, %arg1: memref<1x4x64x128xbf16, #tpu.memory_space<vmem>>, %arg2: memref<3x128x256xbf16, #tpu.memory_space<vmem>>, %arg3: memref<3x256x256xbf16, #tpu.memory_space<vmem>>, %arg4: memref<1792x64xbf16, #tpu.memory_space<vmem>>, %arg5: memref<64x1792xbf16, #tpu.memory_space<vmem>>, %arg6: memref<3x256x256xbf16, #tpu.memory_space<vmem>>, %arg7: memref<3x256x128xbf16, #tpu.memory_space<vmem>>, %arg8: memref<1x256xf32, #tpu.memory_space<vmem>>, %arg9: memref<1x256xf32, #tpu.memory_space<vmem>>, %arg10: memref<1x64xf32, #tpu.memory_space<vmem>>, %arg11: memref<1x1792xf32, #tpu.memory_space<vmem>>, %arg12: memref<1x256xf32, #tpu.memory_space<vmem>>, %arg13: memref<1x128xf32, #tpu.memory_space<vmem>>, %arg14: memref<1x4x56x128xbf16, #tpu.memory_space<vmem>>, %arg15: memref<64x256xbf16, #tpu.memory_space<vmem>>, %arg16: memref<64x256xbf16, #tpu.memory_space<vmem>>, %arg17: memref<64x256xbf16, #tpu.memory_space<vmem>>, %arg18: memref<8x1792xbf16, #tpu.memory_space<vmem>>) attributes {dimension_semantics = [#tpu.dimension_semantics<parallel>], iteration_bounds = array<i64: 1>, scalar_prefetch = 0 : i64, scratch_operands = 4 : i64, tpu.core_type = #tpu.core_type<tc>, window_params = [{transform_indices = @transform_0, window_bounds = array<i64: 1, 4, 64, 128>}, {pipeline_mode = #tpu.pipeline_mode<synchronous>, transform_indices = @transform_1, window_bounds = array<i64: 3, 128, 256>}, {pipeline_mode = #tpu.pipeline_mode<synchronous>, transform_indices = @transform_2, window_bounds = array<i64: 3, 256, 256>}, {pipeline_mode = #tpu.pipeline_mode<synchronous>, transform_indices = @transform_3, window_bounds = array<i64: 1792, 64>}, {pipeline_mode = #tpu.pipeline_mode<synchronous>, transform_indices = @transform_4, window_bounds = array<i64: 64, 1792>}, {pipeline_mode = #tpu.pipeline_mode<synchronous>, transform_indices = @transform_5, window_bounds = array<i64: 3, 256, 256>}, {pipeline_mode = #tpu.pipeline_mode<synchronous>, transform_indices = @transform_6, window_bounds = array<i64: 3, 256, 128>}, {pipeline_mode = #tpu.pipeline_mode<synchronous>, transform_indices = @transform_7, window_bounds = array<i64: 1, 256>}, {pipeline_mode = #tpu.pipeline_mode<synchronous>, transform_indices = @transform_8, window_bounds = array<i64: 1, 256>}, {pipeline_mode = #tpu.pipeline_mode<synchronous>, transform_indices = @transform_9, window_bounds = array<i64: 1, 64>}, {pipeline_mode = #tpu.pipeline_mode<synchronous>, transform_indices = @transform_10, window_bounds = array<i64: 1, 1792>}, {pipeline_mode = #tpu.pipeline_mode<synchronous>, transform_indices = @transform_11, window_bounds = array<i64: 1, 256>}, {pipeline_mode = #tpu.pipeline_mode<synchronous>, transform_indices = @transform_12, window_bounds = array<i64: 1, 128>}, {transform_indices = @transform_13, window_bounds = array<i64: 1, 4, 56, 128>}]} {
    %cst = arith.constant 0.000000e+00 : bf16
    %0 = vector.broadcast %cst : bf16 to vector<8x256xbf16>
    %c0 = arith.constant 0 : index
    %c0_0 = arith.constant 0 : index
    %1 = vector.load %arg15[%c0, %c0_0] : memref<64x256xbf16, #tpu.memory_space<vmem>>, vector<8x256xbf16>
    tpu.vector_store %arg15[%c0, %c0_0], %0 {strides = array<i32>} : memref<64x256xbf16, #tpu.memory_space<vmem>>, vector<8x256xbf16>,
    %c56 = arith.constant 56 : index
    %c0_1 = arith.constant 0 : index
    %2 = vector.load %arg16[%c56, %c0_1] : memref<64x256xbf16, #tpu.memory_space<vmem>>, vector<8x256xbf16>
    tpu.vector_store %arg16[%c56, %c0_1], %0 {strides = array<i32>} : memref<64x256xbf16, #tpu.memory_space<vmem>>, vector<8x256xbf16>,
    %c56_2 = arith.constant 56 : index
    %c0_3 = arith.constant 0 : index
    %3 = vector.load %arg17[%c56_2, %c0_3] : memref<64x256xbf16, #tpu.memory_space<vmem>>, vector<8x256xbf16>
    tpu.vector_store %arg17[%c56_2, %c0_3], %0 {strides = array<i32>} : memref<64x256xbf16, #tpu.memory_space<vmem>>, vector<8x256xbf16>,
    %c0_4 = arith.constant 0 : index
    %c3 = arith.constant 3 : index
    %c0_5 = arith.constant 0 : index
    %c0_6 = arith.constant 0 : index
    %4 = vector.load %arg1[%c0_4, %c3, %c0_5, %c0_6] : memref<1x4x64x128xbf16, #tpu.memory_space<vmem>>, vector<1x1x56x128xbf16>
    %5 = vector.shape_cast %4 : vector<1x1x56x128xbf16> to vector<56x128xbf16>
    %c0_7 = arith.constant 0 : index
    %c0_8 = arith.constant 0 : index
    %c8 = arith.constant 8 : index
    %c0_9 = arith.constant 0 : index
    %6 = vector.load %arg1[%c0_7, %c0_8, %c8, %c0_9] : memref<1x4x64x128xbf16, #tpu.memory_space<vmem>>, vector<1x1x56x128xbf16>
    %7 = vector.shape_cast %6 : vector<1x1x56x128xbf16> to vector<56x128xbf16>
    %c0_10 = arith.constant 0 : index
    %c1 = arith.constant 1 : index
    %c8_11 = arith.constant 8 : index
    %c0_12 = arith.constant 0 : index
    %8 = vector.load %arg1[%c0_10, %c1, %c8_11, %c0_12] : memref<1x4x64x128xbf16, #tpu.memory_space<vmem>>, vector<1x1x56x128xbf16>
    %9 = vector.shape_cast %8 : vector<1x1x56x128xbf16> to vector<56x128xbf16>
    %c0_13 = arith.constant 0 : index
    %c2 = arith.constant 2 : index
    %c8_14 = arith.constant 8 : index
    %c0_15 = arith.constant 0 : index
    %10 = vector.load %arg1[%c0_13, %c2, %c8_14, %c0_15] : memref<1x4x64x128xbf16, #tpu.memory_space<vmem>>, vector<1x1x56x128xbf16>
    %11 = vector.shape_cast %10 : vector<1x1x56x128xbf16> to vector<56x128xbf16>
    %c0_16 = arith.constant 0 : index
    %c3_17 = arith.constant 3 : index
    %c8_18 = arith.constant 8 : index
    %c0_19 = arith.constant 0 : index
    %12 = vector.load %arg1[%c0_16, %c3_17, %c8_18, %c0_19] : memref<1x4x64x128xbf16, #tpu.memory_space<vmem>>, vector<1x1x56x128xbf16>
    %13 = vector.shape_cast %12 : vector<1x1x56x128xbf16> to vector<56x128xbf16>
    %c0_20 = arith.constant 0 : index
    %c0_21 = arith.constant 0 : index
    %14 = vector.load %arg8[%c0_20, %c0_21] : memref<1x256xf32, #tpu.memory_space<vmem>>, vector<1x256xf32>
    %c0_22 = arith.constant 0 : index
    %c0_23 = arith.constant 0 : index
    %c0_24 = arith.constant 0 : index
    %15 = vector.load %arg2[%c0_22, %c0_23, %c0_24] : memref<3x128x256xbf16, #tpu.memory_space<vmem>>, vector<1x128x256xbf16>
    %16 = vector.shape_cast %15 : vector<1x128x256xbf16> to vector<128x256xbf16>
    %cst_25 = arith.constant dense<0.000000e+00> : vector<56x256xf32>
    %17 = tpu.matmul %5, %16, %cst_25 {dimension_numbers = #tpu.dot_dimension_numbers<[1], [0], [0], [1], [0, 0, 1, 1], [], []>} : vector<56x128xbf16>, vector<128x256xbf16>, vector<56x256xf32> -> vector<56x256xf32>
    %c1_26 = arith.constant 1 : index
    %c0_27 = arith.constant 0 : index
    %c0_28 = arith.constant 0 : index
    %18 = vector.load %arg2[%c1_26, %c0_27, %c0_28] : memref<3x128x256xbf16, #tpu.memory_space<vmem>>, vector<1x128x256xbf16>
    %19 = vector.shape_cast %18 : vector<1x128x256xbf16> to vector<128x256xbf16>
    %cst_29 = arith.constant dense<0.000000e+00> : vector<56x256xf32>
    %20 = tpu.matmul %7, %19, %cst_29 {dimension_numbers = #tpu.dot_dimension_numbers<[1], [0], [0], [1], [0, 0, 1, 1], [], []>} : vector<56x128xbf16>, vector<128x256xbf16>, vector<56x256xf32> -> vector<56x256xf32>
    %21 = arith.addf %17, %20 : vector<56x256xf32>
    %c2_30 = arith.constant 2 : index
    %c0_31 = arith.constant 0 : index
    %c0_32 = arith.constant 0 : index
    %22 = vector.load %arg2[%c2_30, %c0_31, %c0_32] : memref<3x128x256xbf16, #tpu.memory_space<vmem>>, vector<1x128x256xbf16>
    %23 = vector.shape_cast %22 : vector<1x128x256xbf16> to vector<128x256xbf16>
    %cst_33 = arith.constant dense<0.000000e+00> : vector<56x256xf32>
    %24 = tpu.matmul %9, %23, %cst_33 {dimension_numbers = #tpu.dot_dimension_numbers<[1], [0], [0], [1], [0, 0, 1, 1], [], []>} : vector<56x128xbf16>, vector<128x256xbf16>, vector<56x256xf32> -> vector<56x256xf32>
    %25 = arith.addf %21, %24 : vector<56x256xf32>
    %26 = vector.broadcast %14 : vector<1x256xf32> to vector<56x256xf32>
    %27 = arith.addf %25, %26 : vector<56x256xf32>
    %cst_34 = arith.constant 0.000000e+00 : f32
    %28 = vector.broadcast %cst_34 : f32 to vector<56x256xf32>
    %29 = arith.maximumf %27, %28 : vector<56x256xf32>
    %c0_35 = arith.constant 0 : index
    %c0_36 = arith.constant 0 : index
    %c0_37 = arith.constant 0 : index
    %30 = vector.load %arg2[%c0_35, %c0_36, %c0_37] : memref<3x128x256xbf16, #tpu.memory_space<vmem>>, vector<1x128x256xbf16>
    %31 = vector.shape_cast %30 : vector<1x128x256xbf16> to vector<128x256xbf16>
    %cst_38 = arith.constant dense<0.000000e+00> : vector<56x256xf32>
    %32 = tpu.matmul %9, %31, %cst_38 {dimension_numbers = #tpu.dot_dimension_numbers<[1], [0], [0], [1], [0, 0, 1, 1], [], []>} : vector<56x128xbf16>, vector<128x256xbf16>, vector<56x256xf32> -> vector<56x256xf32>
    %c1_39 = arith.constant 1 : index
    %c0_40 = arith.constant 0 : index
    %c0_41 = arith.constant 0 : index
    %33 = vector.load %arg2[%c1_39, %c0_40, %c0_41] : memref<3x128x256xbf16, #tpu.memory_space<vmem>>, vector<1x128x256xbf16>
    %34 = vector.shape_cast %33 : vector<1x128x256xbf16> to vector<128x256xbf16>
    %cst_42 = arith.constant dense<0.000000e+00> : vector<56x256xf32>
    %35 = tpu.matmul %11, %34, %cst_42 {dimension_numbers = #tpu.dot_dimension_numbers<[1], [0], [0], [1], [0, 0, 1, 1], [], []>} : vector<56x128xbf16>, vector<128x256xbf16>, vector<56x256xf32> -> vector<56x256xf32>
    %36 = arith.addf %32, %35 : vector<56x256xf32>
    %c2_43 = arith.constant 2 : index
    %c0_44 = arith.constant 0 : index
    %c0_45 = arith.constant 0 : index
    %37 = vector.load %arg2[%c2_43, %c0_44, %c0_45] : memref<3x128x256xbf16, #tpu.memory_space<vmem>>, vector<1x128x256xbf16>
    %38 = vector.shape_cast %37 : vector<1x128x256xbf16> to vector<128x256xbf16>
    %cst_46 = arith.constant dense<0.000000e+00> : vector<56x256xf32>
    %39 = tpu.matmul %13, %38, %cst_46 {dimension_numbers = #tpu.dot_dimension_numbers<[1], [0], [0], [1], [0, 0, 1, 1], [], []>} : vector<56x128xbf16>, vector<128x256xbf16>, vector<56x256xf32> -> vector<56x256xf32>
    %40 = arith.addf %36, %39 : vector<56x256xf32>
    %41 = vector.broadcast %14 : vector<1x256xf32> to vector<56x256xf32>
    %42 = arith.addf %40, %41 : vector<56x256xf32>
    %cst_47 = arith.constant 0.000000e+00 : f32
    %43 = vector.broadcast %cst_47 : f32 to vector<56x256xf32>
    %44 = arith.maximumf %42, %43 : vector<56x256xf32>
    %45 = arith.truncf %44 : vector<56x256xf32> to vector<56x256xbf16>
    %c8_48 = arith.constant 8 : index
    %c0_49 = arith.constant 0 : index
    %46 = vector.load %arg15[%c8_48, %c0_49] : memref<64x256xbf16, #tpu.memory_space<vmem>>, vector<56x256xbf16>
    tpu.vector_store %arg15[%c8_48, %c0_49], %45 {strides = array<i32>} : memref<64x256xbf16, #tpu.memory_space<vmem>>, vector<56x256xbf16>,
    %47 = arith.truncf %29 : vector<56x256xf32> to vector<56x256xbf16>
    %c0_50 = arith.constant 0 : index
    %c0_51 = arith.constant 0 : index
    %48 = vector.load %arg15[%c0_50, %c0_51] : memref<64x256xbf16, #tpu.memory_space<vmem>>, vector<56x256xbf16>
    %c8_52 = arith.constant 8 : index
    %c0_53 = arith.constant 0 : index
    %49 = vector.load %arg15[%c8_52, %c0_53] : memref<64x256xbf16, #tpu.memory_space<vmem>>, vector<56x256xbf16>
    %c0_54 = arith.constant 0 : index
    %c0_55 = arith.constant 0 : index
    %c0_56 = arith.constant 0 : index
    %50 = vector.load %arg3[%c0_54, %c0_55, %c0_56] : memref<3x256x256xbf16, #tpu.memory_space<vmem>>, vector<1x256x256xbf16>
    %51 = vector.shape_cast %50 : vector<1x256x256xbf16> to vector<256x256xbf16>
    %cst_57 = arith.constant dense<0.000000e+00> : vector<56x256xf32>
    %52 = tpu.matmul %48, %51, %cst_57 {dimension_numbers = #tpu.dot_dimension_numbers<[1], [0], [0], [1], [0, 0, 1, 1], [], []>} : vector<56x256xbf16>, vector<256x256xbf16>, vector<56x256xf32> -> vector<56x256xf32>
    %c1_58 = arith.constant 1 : index
    %c0_59 = arith.constant 0 : index
    %c0_60 = arith.constant 0 : index
    %53 = vector.load %arg3[%c1_58, %c0_59, %c0_60] : memref<3x256x256xbf16, #tpu.memory_space<vmem>>, vector<1x256x256xbf16>
    %54 = vector.shape_cast %53 : vector<1x256x256xbf16> to vector<256x256xbf16>
    %cst_61 = arith.constant dense<0.000000e+00> : vector<56x256xf32>
    %55 = tpu.matmul %47, %54, %cst_61 {dimension_numbers = #tpu.dot_dimension_numbers<[1], [0], [0], [1], [0, 0, 1, 1], [], []>} : vector<56x256xbf16>, vector<256x256xbf16>, vector<56x256xf32> -> vector<56x256xf32>
    %56 = arith.addf %52, %55 : vector<56x256xf32>
    %c2_62 = arith.constant 2 : index
    %c0_63 = arith.constant 0 : index
    %c0_64 = arith.constant 0 : index
    %57 = vector.load %arg3[%c2_62, %c0_63, %c0_64] : memref<3x256x256xbf16, #tpu.memory_space<vmem>>, vector<1x256x256xbf16>
    %58 = vector.shape_cast %57 : vector<1x256x256xbf16> to vector<256x256xbf16>
    %cst_65 = arith.constant dense<0.000000e+00> : vector<56x256xf32>
    %59 = tpu.matmul %49, %58, %cst_65 {dimension_numbers = #tpu.dot_dimension_numbers<[1], [0], [0], [1], [0, 0, 1, 1], [], []>} : vector<56x256xbf16>, vector<256x256xbf16>, vector<56x256xf32> -> vector<56x256xf32>
    %60 = arith.addf %56, %59 : vector<56x256xf32>
    %c0_66 = arith.constant 0 : index
    %c0_67 = arith.constant 0 : index
    %61 = vector.load %arg9[%c0_66, %c0_67] : memref<1x256xf32, #tpu.memory_space<vmem>>, vector<1x256xf32>
    %62 = vector.broadcast %61 : vector<1x256xf32> to vector<56x256xf32>
    %63 = arith.addf %60, %62 : vector<56x256xf32>
    %cst_68 = arith.constant 0.000000e+00 : f32
    %64 = vector.broadcast %cst_68 : f32 to vector<56x256xf32>
    %65 = arith.maximumf %63, %64 : vector<56x256xf32>
    %66 = vector.extract_strided_slice %65 {offsets = [0, 0], sizes = [8, 256], strides = [1, 1]} : vector<56x256xf32> to vector<8x256xf32>
    %67 = arith.truncf %66 : vector<8x256xf32> to vector<8x256xbf16>
    %c0_69 = arith.constant 0 : index
    %c0_70 = arith.constant 0 : index
    %68 = vector.load %arg18[%c0_69, %c0_70] : memref<8x1792xbf16, #tpu.memory_space<vmem>>, vector<8x256xbf16>
    tpu.vector_store %arg18[%c0_69, %c0_70], %67 {strides = array<i32>} : memref<8x1792xbf16, #tpu.memory_space<vmem>>, vector<8x256xbf16>,
    %69 = vector.extract_strided_slice %65 {offsets = [8, 0], sizes = [8, 256], strides = [1, 1]} : vector<56x256xf32> to vector<8x256xf32>
    %70 = arith.truncf %69 : vector<8x256xf32> to vector<8x256xbf16>
    %c0_71 = arith.constant 0 : index
    %c256 = arith.constant 256 : index
    %71 = vector.load %arg18[%c0_71, %c256] : memref<8x1792xbf16, #tpu.memory_space<vmem>>, vector<8x256xbf16>
    tpu.vector_store %arg18[%c0_71, %c256], %70 {strides = array<i32>} : memref<8x1792xbf16, #tpu.memory_space<vmem>>, vector<8x256xbf16>,
    %72 = vector.extract_strided_slice %65 {offsets = [16, 0], sizes = [8, 256], strides = [1, 1]} : vector<56x256xf32> to vector<8x256xf32>
    %73 = arith.truncf %72 : vector<8x256xf32> to vector<8x256xbf16>
    %c0_72 = arith.constant 0 : index
    %c512 = arith.constant 512 : index
    %74 = vector.load %arg18[%c0_72, %c512] : memref<8x1792xbf16, #tpu.memory_space<vmem>>, vector<8x256xbf16>
    tpu.vector_store %arg18[%c0_72, %c512], %73 {strides = array<i32>} : memref<8x1792xbf16, #tpu.memory_space<vmem>>, vector<8x256xbf16>,
    %75 = vector.extract_strided_slice %65 {offsets = [24, 0], sizes = [8, 256], strides = [1, 1]} : vector<56x256xf32> to vector<8x256xf32>
    %76 = arith.truncf %75 : vector<8x256xf32> to vector<8x256xbf16>
    %c0_73 = arith.constant 0 : index
    %c768 = arith.constant 768 : index
    %77 = vector.load %arg18[%c0_73, %c768] : memref<8x1792xbf16, #tpu.memory_space<vmem>>, vector<8x256xbf16>
    tpu.vector_store %arg18[%c0_73, %c768], %76 {strides = array<i32>} : memref<8x1792xbf16, #tpu.memory_space<vmem>>, vector<8x256xbf16>,
    %78 = vector.extract_strided_slice %65 {offsets = [32, 0], sizes = [8, 256], strides = [1, 1]} : vector<56x256xf32> to vector<8x256xf32>
    %79 = arith.truncf %78 : vector<8x256xf32> to vector<8x256xbf16>
    %c0_74 = arith.constant 0 : index
    %c1024 = arith.constant 1024 : index
    %80 = vector.load %arg18[%c0_74, %c1024] : memref<8x1792xbf16, #tpu.memory_space<vmem>>, vector<8x256xbf16>
    tpu.vector_store %arg18[%c0_74, %c1024], %79 {strides = array<i32>} : memref<8x1792xbf16, #tpu.memory_space<vmem>>, vector<8x256xbf16>,
    %81 = vector.extract_strided_slice %65 {offsets = [40, 0], sizes = [8, 256], strides = [1, 1]} : vector<56x256xf32> to vector<8x256xf32>
    %82 = arith.truncf %81 : vector<8x256xf32> to vector<8x256xbf16>
    %c0_75 = arith.constant 0 : index
    %c1280 = arith.constant 1280 : index
    %83 = vector.load %arg18[%c0_75, %c1280] : memref<8x1792xbf16, #tpu.memory_space<vmem>>, vector<8x256xbf16>
    tpu.vector_store %arg18[%c0_75, %c1280], %82 {strides = array<i32>} : memref<8x1792xbf16, #tpu.memory_space<vmem>>, vector<8x256xbf16>,
    %84 = vector.extract_strided_slice %65 {offsets = [48, 0], sizes = [8, 256], strides = [1, 1]} : vector<56x256xf32> to vector<8x256xf32>
    %85 = arith.truncf %84 : vector<8x256xf32> to vector<8x256xbf16>
    %c0_76 = arith.constant 0 : index
    %c1536 = arith.constant 1536 : index
    %86 = vector.load %arg18[%c0_76, %c1536] : memref<8x1792xbf16, #tpu.memory_space<vmem>>, vector<8x256xbf16>
    tpu.vector_store %arg18[%c0_76, %c1536], %85 {strides = array<i32>} : memref<8x1792xbf16, #tpu.memory_space<vmem>>, vector<8x256xbf16>,
    %c0_77 = arith.constant 0 : index
    %c0_78 = arith.constant 0 : index
    %87 = vector.load %arg18[%c0_77, %c0_78] : memref<8x1792xbf16, #tpu.memory_space<vmem>>, vector<8x1792xbf16>
    %c0_79 = arith.constant 0 : index
    %c0_80 = arith.constant 0 : index
    %88 = vector.load %arg4[%c0_79, %c0_80] : memref<1792x64xbf16, #tpu.memory_space<vmem>>, vector<1792x64xbf16>
    %cst_81 = arith.constant dense<0.000000e+00> : vector<8x64xf32>
    %89 = tpu.matmul %87, %88, %cst_81 {dimension_numbers = #tpu.dot_dimension_numbers<[1], [0], [0], [1], [0, 0, 1, 1], [], []>} : vector<8x1792xbf16>, vector<1792x64xbf16>, vector<8x64xf32> -> vector<8x64xf32>
    %c0_82 = arith.constant 0 : index
    %c0_83 = arith.constant 0 : index
    %90 = vector.load %arg10[%c0_82, %c0_83] : memref<1x64xf32, #tpu.memory_space<vmem>>, vector<1x64xf32>
    %91 = vector.broadcast %90 : vector<1x64xf32> to vector<8x64xf32>
    %92 = arith.addf %89, %91 : vector<8x64xf32>
    %93 = arith.truncf %92 : vector<8x64xf32> to vector<8x64xbf16>
    %c0_84 = arith.constant 0 : index
    %c0_85 = arith.constant 0 : index
    %94 = vector.load %arg5[%c0_84, %c0_85] : memref<64x1792xbf16, #tpu.memory_space<vmem>>, vector<64x1792xbf16>
    %cst_86 = arith.constant dense<0.000000e+00> : vector<8x1792xf32>
    %95 = tpu.matmul %93, %94, %cst_86 {dimension_numbers = #tpu.dot_dimension_numbers<[1], [0], [0], [1], [0, 0, 1, 1], [], []>} : vector<8x64xbf16>, vector<64x1792xbf16>, vector<8x1792xf32> -> vector<8x1792xf32>
    %c0_87 = arith.constant 0 : index
    %c0_88 = arith.constant 0 : index
    %96 = vector.load %arg11[%c0_87, %c0_88] : memref<1x1792xf32, #tpu.memory_space<vmem>>, vector<1x1792xf32>
    %97 = vector.broadcast %96 : vector<1x1792xf32> to vector<8x1792xf32>
    %98 = arith.addf %95, %97 : vector<8x1792xf32>
    %cst_89 = arith.constant 0.000000e+00 : f32
    %99 = vector.broadcast %cst_89 : f32 to vector<8x1792xf32>
    %100 = arith.maximumf %98, %99 : vector<8x1792xf32>
    %101 = vector.extract_strided_slice %100 {offsets = [0, 0], sizes = [8, 256], strides = [1, 1]} : vector<8x1792xf32> to vector<8x256xf32>
    %102 = arith.truncf %101 : vector<8x256xf32> to vector<8x256xbf16>
    %c0_90 = arith.constant 0 : index
    %c0_91 = arith.constant 0 : index
    %103 = vector.load %arg16[%c0_90, %c0_91] : memref<64x256xbf16, #tpu.memory_space<vmem>>, vector<8x256xbf16>
    tpu.vector_store %arg16[%c0_90, %c0_91], %102 {strides = array<i32>} : memref<64x256xbf16, #tpu.memory_space<vmem>>, vector<8x256xbf16>,
    %104 = vector.extract_strided_slice %100 {offsets = [0, 256], sizes = [8, 256], strides = [1, 1]} : vector<8x1792xf32> to vector<8x256xf32>
    %105 = arith.truncf %104 : vector<8x256xf32> to vector<8x256xbf16>
    %c8_92 = arith.constant 8 : index
    %c0_93 = arith.constant 0 : index
    %106 = vector.load %arg16[%c8_92, %c0_93] : memref<64x256xbf16, #tpu.memory_space<vmem>>, vector<8x256xbf16>
    tpu.vector_store %arg16[%c8_92, %c0_93], %105 {strides = array<i32>} : memref<64x256xbf16, #tpu.memory_space<vmem>>, vector<8x256xbf16>,
    %107 = vector.extract_strided_slice %100 {offsets = [0, 512], sizes = [8, 256], strides = [1, 1]} : vector<8x1792xf32> to vector<8x256xf32>
    %108 = arith.truncf %107 : vector<8x256xf32> to vector<8x256xbf16>
    %c16 = arith.constant 16 : index
    %c0_94 = arith.constant 0 : index
    %109 = vector.load %arg16[%c16, %c0_94] : memref<64x256xbf16, #tpu.memory_space<vmem>>, vector<8x256xbf16>
    tpu.vector_store %arg16[%c16, %c0_94], %108 {strides = array<i32>} : memref<64x256xbf16, #tpu.memory_space<vmem>>, vector<8x256xbf16>,
    %110 = vector.extract_strided_slice %100 {offsets = [0, 768], sizes = [8, 256], strides = [1, 1]} : vector<8x1792xf32> to vector<8x256xf32>
    %111 = arith.truncf %110 : vector<8x256xf32> to vector<8x256xbf16>
    %c24 = arith.constant 24 : index
    %c0_95 = arith.constant 0 : index
    %112 = vector.load %arg16[%c24, %c0_95] : memref<64x256xbf16, #tpu.memory_space<vmem>>, vector<8x256xbf16>
    tpu.vector_store %arg16[%c24, %c0_95], %111 {strides = array<i32>} : memref<64x256xbf16, #tpu.memory_space<vmem>>, vector<8x256xbf16>,
    %113 = vector.extract_strided_slice %100 {offsets = [0, 1024], sizes = [8, 256], strides = [1, 1]} : vector<8x1792xf32> to vector<8x256xf32>
    %114 = arith.truncf %113 : vector<8x256xf32> to vector<8x256xbf16>
    %c32 = arith.constant 32 : index
    %c0_96 = arith.constant 0 : index
    %115 = vector.load %arg16[%c32, %c0_96] : memref<64x256xbf16, #tpu.memory_space<vmem>>, vector<8x256xbf16>
    tpu.vector_store %arg16[%c32, %c0_96], %114 {strides = array<i32>} : memref<64x256xbf16, #tpu.memory_space<vmem>>, vector<8x256xbf16>,
    %116 = vector.extract_strided_slice %100 {offsets = [0, 1280], sizes = [8, 256], strides = [1, 1]} : vector<8x1792xf32> to vector<8x256xf32>
    %117 = arith.truncf %116 : vector<8x256xf32> to vector<8x256xbf16>
    %c40 = arith.constant 40 : index
    %c0_97 = arith.constant 0 : index
    %118 = vector.load %arg16[%c40, %c0_97] : memref<64x256xbf16, #tpu.memory_space<vmem>>, vector<8x256xbf16>
    tpu.vector_store %arg16[%c40, %c0_97], %117 {strides = array<i32>} : memref<64x256xbf16, #tpu.memory_space<vmem>>, vector<8x256xbf16>,
    %119 = vector.extract_strided_slice %100 {offsets = [0, 1536], sizes = [8, 256], strides = [1, 1]} : vector<8x1792xf32> to vector<8x256xf32>
    %120 = arith.truncf %119 : vector<8x256xf32> to vector<8x256xbf16>
    %c48 = arith.constant 48 : index
    %c0_98 = arith.constant 0 : index
    %121 = vector.load %arg16[%c48, %c0_98] : memref<64x256xbf16, #tpu.memory_space<vmem>>, vector<8x256xbf16>
    tpu.vector_store %arg16[%c48, %c0_98], %120 {strides = array<i32>} : memref<64x256xbf16, #tpu.memory_space<vmem>>, vector<8x256xbf16>,
    %c0_99 = arith.constant 0 : index
    %c0_100 = arith.constant 0 : index
    %122 = vector.load %arg16[%c0_99, %c0_100] : memref<64x256xbf16, #tpu.memory_space<vmem>>, vector<56x256xbf16>
    %c8_101 = arith.constant 8 : index
    %c0_102 = arith.constant 0 : index
    %123 = vector.load %arg16[%c8_101, %c0_102] : memref<64x256xbf16, #tpu.memory_space<vmem>>, vector<56x256xbf16>
    %c0_103 = arith.constant 0 : index
    %c0_104 = arith.constant 0 : index
    %124 = vector.load %arg12[%c0_103, %c0_104] : memref<1x256xf32, #tpu.memory_space<vmem>>, vector<1x256xf32>
    %c1_105 = arith.constant 1 : index
    %c0_106 = arith.constant 0 : index
    %c0_107 = arith.constant 0 : index
    %125 = vector.load %arg6[%c1_105, %c0_106, %c0_107] : memref<3x256x256xbf16, #tpu.memory_space<vmem>>, vector<1x256x256xbf16>
    %126 = vector.shape_cast %125 : vector<1x256x256xbf16> to vector<256x256xbf16>
    %cst_108 = arith.constant dense<0.000000e+00> : vector<56x256xf32>
    %127 = tpu.matmul %122, %126, %cst_108 {dimension_numbers = #tpu.dot_dimension_numbers<[1], [0], [0], [1], [0, 0, 1, 1], [], []>} : vector<56x256xbf16>, vector<256x256xbf16>, vector<56x256xf32> -> vector<56x256xf32>
    %128 = vector.broadcast %124 : vector<1x256xf32> to vector<56x256xf32>
    %129 = arith.addf %127, %128 : vector<56x256xf32>
    %cst_109 = arith.constant 0.000000e+00 : f32
    %130 = vector.broadcast %cst_109 : f32 to vector<56x256xf32>
    %131 = arith.maximumf %129, %130 : vector<56x256xf32>
    %c2_110 = arith.constant 2 : index
    %c0_111 = arith.constant 0 : index
    %c0_112 = arith.constant 0 : index
    %132 = vector.load %arg6[%c2_110, %c0_111, %c0_112] : memref<3x256x256xbf16, #tpu.memory_space<vmem>>, vector<1x256x256xbf16>
    %133 = vector.shape_cast %132 : vector<1x256x256xbf16> to vector<256x256xbf16>
    %cst_113 = arith.constant dense<0.000000e+00> : vector<56x256xf32>
    %134 = tpu.matmul %122, %133, %cst_113 {dimension_numbers = #tpu.dot_dimension_numbers<[1], [0], [0], [1], [0, 0, 1, 1], [], []>} : vector<56x256xbf16>, vector<256x256xbf16>, vector<56x256xf32> -> vector<56x256xf32>
    %c0_114 = arith.constant 0 : index
    %c0_115 = arith.constant 0 : index
    %c0_116 = arith.constant 0 : index
    %135 = vector.load %arg6[%c0_114, %c0_115, %c0_116] : memref<3x256x256xbf16, #tpu.memory_space<vmem>>, vector<1x256x256xbf16>
    %136 = vector.shape_cast %135 : vector<1x256x256xbf16> to vector<256x256xbf16>
    %cst_117 = arith.constant dense<0.000000e+00> : vector<56x256xf32>
    %137 = tpu.matmul %123, %136, %cst_117 {dimension_numbers = #tpu.dot_dimension_numbers<[1], [0], [0], [1], [0, 0, 1, 1], [], []>} : vector<56x256xbf16>, vector<256x256xbf16>, vector<56x256xf32> -> vector<56x256xf32>
    %138 = arith.addf %134, %137 : vector<56x256xf32>
    %139 = vector.broadcast %124 : vector<1x256xf32> to vector<56x256xf32>
    %140 = arith.addf %138, %139 : vector<56x256xf32>
    %cst_118 = arith.constant 0.000000e+00 : f32
    %141 = vector.broadcast %cst_118 : f32 to vector<56x256xf32>
    %142 = arith.maximumf %140, %141 : vector<56x256xf32>
    %143 = arith.truncf %131 : vector<56x256xf32> to vector<56x256xbf16>
    %c0_119 = arith.constant 0 : index
    %c0_120 = arith.constant 0 : index
    %144 = vector.load %arg17[%c0_119, %c0_120] : memref<64x256xbf16, #tpu.memory_space<vmem>>, vector<56x256xbf16>
    tpu.vector_store %arg17[%c0_119, %c0_120], %143 {strides = array<i32>} : memref<64x256xbf16, #tpu.memory_space<vmem>>, vector<56x256xbf16>,
    %145 = arith.truncf %131 : vector<56x256xf32> to vector<56x256xbf16>
    %c8_121 = arith.constant 8 : index
    %c0_122 = arith.constant 0 : index
    %146 = vector.load %arg17[%c8_121, %c0_122] : memref<64x256xbf16, #tpu.memory_space<vmem>>, vector<56x256xbf16>
    %147 = arith.truncf %142 : vector<56x256xf32> to vector<56x256xbf16>
    %c0_123 = arith.constant 0 : index
    %c0_124 = arith.constant 0 : index
    %148 = vector.load %arg13[%c0_123, %c0_124] : memref<1x128xf32, #tpu.memory_space<vmem>>, vector<1x128xf32>
    %c1_125 = arith.constant 1 : index
    %c0_126 = arith.constant 0 : index
    %c0_127 = arith.constant 0 : index
    %149 = vector.load %arg7[%c1_125, %c0_126, %c0_127] : memref<3x256x128xbf16, #tpu.memory_space<vmem>>, vector<1x256x128xbf16>
    %150 = vector.shape_cast %149 : vector<1x256x128xbf16> to vector<256x128xbf16>
    %cst_128 = arith.constant dense<0.000000e+00> : vector<56x128xf32>
    %151 = tpu.matmul %145, %150, %cst_128 {dimension_numbers = #tpu.dot_dimension_numbers<[1], [0], [0], [1], [0, 0, 1, 1], [], []>} : vector<56x256xbf16>, vector<256x128xbf16>, vector<56x128xf32> -> vector<56x128xf32>
    %152 = vector.broadcast %148 : vector<1x128xf32> to vector<56x128xf32>
    %153 = arith.addf %151, %152 : vector<56x128xf32>
    %cst_129 = arith.constant 5.000000e-01 : f32
    %154 = vector.broadcast %cst_129 : f32 to vector<56x128xf32>
    %155 = arith.mulf %154, %153 : vector<56x128xf32>
    %156 = math.tanh %155 : vector<56x128xf32>
    %cst_130 = arith.constant 5.000000e-01 : f32
    %157 = vector.broadcast %cst_130 : f32 to vector<56x128xf32>
    %158 = arith.mulf %157, %156 : vector<56x128xf32>
    %cst_131 = arith.constant 5.000000e-01 : f32
    %159 = vector.broadcast %cst_131 : f32 to vector<56x128xf32>
    %160 = arith.addf %158, %159 : vector<56x128xf32>
    %161 = arith.truncf %160 : vector<56x128xf32> to vector<56x128xbf16>
    %c0_132 = arith.constant 0 : index
    %c0_133 = arith.constant 0 : index
    %c0_134 = arith.constant 0 : index
    %c0_135 = arith.constant 0 : index
    %162 = vector.load %arg14[%c0_132, %c0_133, %c0_134, %c0_135] : memref<1x4x56x128xbf16, #tpu.memory_space<vmem>>, vector<1x1x56x128xbf16>
    %163 = vector.shape_cast %162 : vector<1x1x56x128xbf16> to vector<56x128xbf16>
    %164 = vector.shape_cast %161 : vector<56x128xbf16> to vector<1x1x56x128xbf16>
    tpu.vector_store %arg14[%c0_132, %c0_133, %c0_134, %c0_135], %164 {strides = array<i32>} : memref<1x4x56x128xbf16, #tpu.memory_space<vmem>>, vector<1x1x56x128xbf16>,
    %c2_136 = arith.constant 2 : index
    %c0_137 = arith.constant 0 : index
    %c0_138 = arith.constant 0 : index
    %165 = vector.load %arg7[%c2_136, %c0_137, %c0_138] : memref<3x256x128xbf16, #tpu.memory_space<vmem>>, vector<1x256x128xbf16>
    %166 = vector.shape_cast %165 : vector<1x256x128xbf16> to vector<256x128xbf16>
    %cst_139 = arith.constant dense<0.000000e+00> : vector<56x128xf32>
    %167 = tpu.matmul %145, %166, %cst_139 {dimension_numbers = #tpu.dot_dimension_numbers<[1], [0], [0], [1], [0, 0, 1, 1], [], []>} : vector<56x256xbf16>, vector<256x128xbf16>, vector<56x128xf32> -> vector<56x128xf32>
    %c0_140 = arith.constant 0 : index
    %c0_141 = arith.constant 0 : index
    %c0_142 = arith.constant 0 : index
    %168 = vector.load %arg7[%c0_140, %c0_141, %c0_142] : memref<3x256x128xbf16, #tpu.memory_space<vmem>>, vector<1x256x128xbf16>
    %169 = vector.shape_cast %168 : vector<1x256x128xbf16> to vector<256x128xbf16>
    %cst_143 = arith.constant dense<0.000000e+00> : vector<56x128xf32>
    %170 = tpu.matmul %147, %169, %cst_143 {dimension_numbers = #tpu.dot_dimension_numbers<[1], [0], [0], [1], [0, 0, 1, 1], [], []>} : vector<56x256xbf16>, vector<256x128xbf16>, vector<56x128xf32> -> vector<56x128xf32>
    %171 = arith.addf %167, %170 : vector<56x128xf32>
    %172 = vector.broadcast %148 : vector<1x128xf32> to vector<56x128xf32>
    %173 = arith.addf %171, %172 : vector<56x128xf32>
    %cst_144 = arith.constant 5.000000e-01 : f32
    %174 = vector.broadcast %cst_144 : f32 to vector<56x128xf32>
    %175 = arith.mulf %174, %173 : vector<56x128xf32>
    %176 = math.tanh %175 : vector<56x128xf32>
    %cst_145 = arith.constant 5.000000e-01 : f32
    %177 = vector.broadcast %cst_145 : f32 to vector<56x128xf32>
    %178 = arith.mulf %177, %176 : vector<56x128xf32>
    %cst_146 = arith.constant 5.000000e-01 : f32
    %179 = vector.broadcast %cst_146 : f32 to vector<56x128xf32>
    %180 = arith.addf %178, %179 : vector<56x128xf32>
    %181 = arith.truncf %180 : vector<56x128xf32> to vector<56x128xbf16>
    %c0_147 = arith.constant 0 : index
    %c1_148 = arith.constant 1 : index
    %c0_149 = arith.constant 0 : index
    %c0_150 = arith.constant 0 : index
    %182 = vector.load %arg14[%c0_147, %c1_148, %c0_149, %c0_150] : memref<1x4x56x128xbf16, #tpu.memory_space<vmem>>, vector<1x1x56x128xbf16>
    %183 = vector.shape_cast %182 : vector<1x1x56x128xbf16> to vector<56x128xbf16>
    %184 = vector.shape_cast %181 : vector<56x128xbf16> to vector<1x1x56x128xbf16>
    tpu.vector_store %arg14[%c0_147, %c1_148, %c0_149, %c0_150], %184 {strides = array<i32>} : memref<1x4x56x128xbf16, #tpu.memory_space<vmem>>, vector<1x1x56x128xbf16>,
    %c1_151 = arith.constant 1 : index
    %c0_152 = arith.constant 0 : index
    %c0_153 = arith.constant 0 : index
    %185 = vector.load %arg7[%c1_151, %c0_152, %c0_153] : memref<3x256x128xbf16, #tpu.memory_space<vmem>>, vector<1x256x128xbf16>
    %186 = vector.shape_cast %185 : vector<1x256x128xbf16> to vector<256x128xbf16>
    %cst_154 = arith.constant dense<0.000000e+00> : vector<56x128xf32>
    %187 = tpu.matmul %147, %186, %cst_154 {dimension_numbers = #tpu.dot_dimension_numbers<[1], [0], [0], [1], [0, 0, 1, 1], [], []>} : vector<56x256xbf16>, vector<256x128xbf16>, vector<56x128xf32> -> vector<56x128xf32>
    %188 = vector.broadcast %148 : vector<1x128xf32> to vector<56x128xf32>
    %189 = arith.addf %187, %188 : vector<56x128xf32>
    %cst_155 = arith.constant 5.000000e-01 : f32
    %190 = vector.broadcast %cst_155 : f32 to vector<56x128xf32>
    %191 = arith.mulf %190, %189 : vector<56x128xf32>
    %192 = math.tanh %191 : vector<56x128xf32>
    %cst_156 = arith.constant 5.000000e-01 : f32
    %193 = vector.broadcast %cst_156 : f32 to vector<56x128xf32>
    %194 = arith.mulf %193, %192 : vector<56x128xf32>
    %cst_157 = arith.constant 5.000000e-01 : f32
    %195 = vector.broadcast %cst_157 : f32 to vector<56x128xf32>
    %196 = arith.addf %194, %195 : vector<56x128xf32>
    %197 = arith.truncf %196 : vector<56x128xf32> to vector<56x128xbf16>
    %c0_158 = arith.constant 0 : index
    %c2_159 = arith.constant 2 : index
    %c0_160 = arith.constant 0 : index
    %c0_161 = arith.constant 0 : index
    %198 = vector.load %arg14[%c0_158, %c2_159, %c0_160, %c0_161] : memref<1x4x56x128xbf16, #tpu.memory_space<vmem>>, vector<1x1x56x128xbf16>
    %199 = vector.shape_cast %198 : vector<1x1x56x128xbf16> to vector<56x128xbf16>
    %200 = vector.shape_cast %197 : vector<56x128xbf16> to vector<1x1x56x128xbf16>
    tpu.vector_store %arg14[%c0_158, %c2_159, %c0_160, %c0_161], %200 {strides = array<i32>} : memref<1x4x56x128xbf16, #tpu.memory_space<vmem>>, vector<1x1x56x128xbf16>,
    %c2_162 = arith.constant 2 : index
    %c0_163 = arith.constant 0 : index
    %c0_164 = arith.constant 0 : index
    %201 = vector.load %arg7[%c2_162, %c0_163, %c0_164] : memref<3x256x128xbf16, #tpu.memory_space<vmem>>, vector<1x256x128xbf16>
    %202 = vector.shape_cast %201 : vector<1x256x128xbf16> to vector<256x128xbf16>
    %cst_165 = arith.constant dense<0.000000e+00> : vector<56x128xf32>
    %203 = tpu.matmul %147, %202, %cst_165 {dimension_numbers = #tpu.dot_dimension_numbers<[1], [0], [0], [1], [0, 0, 1, 1], [], []>} : vector<56x256xbf16>, vector<256x128xbf16>, vector<56x128xf32> -> vector<56x128xf32>
    %c0_166 = arith.constant 0 : index
    %c0_167 = arith.constant 0 : index
    %c0_168 = arith.constant 0 : index
    %204 = vector.load %arg7[%c0_166, %c0_167, %c0_168] : memref<3x256x128xbf16, #tpu.memory_space<vmem>>, vector<1x256x128xbf16>
    %205 = vector.shape_cast %204 : vector<1x256x128xbf16> to vector<256x128xbf16>
    %cst_169 = arith.constant dense<0.000000e+00> : vector<56x128xf32>
    %206 = tpu.matmul %146, %205, %cst_169 {dimension_numbers = #tpu.dot_dimension_numbers<[1], [0], [0], [1], [0, 0, 1, 1], [], []>} : vector<56x256xbf16>, vector<256x128xbf16>, vector<56x128xf32> -> vector<56x128xf32>
    %207 = arith.addf %203, %206 : vector<56x128xf32>
    %208 = vector.broadcast %148 : vector<1x128xf32> to vector<56x128xf32>
    %209 = arith.addf %207, %208 : vector<56x128xf32>
    %cst_170 = arith.constant 5.000000e-01 : f32
    %210 = vector.broadcast %cst_170 : f32 to vector<56x128xf32>
    %211 = arith.mulf %210, %209 : vector<56x128xf32>
    %212 = math.tanh %211 : vector<56x128xf32>
    %cst_171 = arith.constant 5.000000e-01 : f32
    %213 = vector.broadcast %cst_171 : f32 to vector<56x128xf32>
    %214 = arith.mulf %213, %212 : vector<56x128xf32>
    %cst_172 = arith.constant 5.000000e-01 : f32
    %215 = vector.broadcast %cst_172 : f32 to vector<56x128xf32>
    %216 = arith.addf %214, %215 : vector<56x128xf32>
    %217 = arith.truncf %216 : vector<56x128xf32> to vector<56x128xbf16>
    %c0_173 = arith.constant 0 : index
    %c3_174 = arith.constant 3 : index
    %c0_175 = arith.constant 0 : index
    %c0_176 = arith.constant 0 : index
    %218 = vector.load %arg14[%c0_173, %c3_174, %c0_175, %c0_176] : memref<1x4x56x128xbf16, #tpu.memory_space<vmem>>, vector<1x1x56x128xbf16>
    %219 = vector.shape_cast %218 : vector<1x1x56x128xbf16> to vector<56x128xbf16>
    %220 = vector.shape_cast %217 : vector<56x128xbf16> to vector<1x1x56x128xbf16>
    tpu.vector_store %arg14[%c0_173, %c3_174, %c0_175, %c0_176], %220 {strides = array<i32>} : memref<1x4x56x128xbf16, #tpu.memory_space<vmem>>, vector<1x1x56x128xbf16>,
    return
  }
  func.func @transform_0(%arg0: i32) -> (i32, i32, i32, i32) {
    %c0_i32 = arith.constant 0 : i32
    %c0_i32_0 = arith.constant 0 : i32
    %c0_i32_1 = arith.constant 0 : i32
    %c0_i32_2 = arith.constant 0 : i32
    return %arg0, %c0_i32, %c0_i32_0, %c0_i32_1 : i32, i32, i32, i32
  }
  func.func @transform_1(%arg0: i32) -> (i32, i32, i32) {
    %c0_i32 = arith.constant 0 : i32
    %c0_i32_0 = arith.constant 0 : i32
    %c0_i32_1 = arith.constant 0 : i32
    %c0_i32_2 = arith.constant 0 : i32
    return %c0_i32, %c0_i32_0, %c0_i32_1 : i32, i32, i32
  }
  func.func @transform_2(%arg0: i32) -> (i32, i32, i32) {
    %c0_i32 = arith.constant 0 : i32
    %c0_i32_0 = arith.constant 0 : i32
    %c0_i32_1 = arith.constant 0 : i32
    %c0_i32_2 = arith.constant 0 : i32
    return %c0_i32, %c0_i32_0, %c0_i32_1 : i32, i32, i32
  }
  func.func @transform_3(%arg0: i32) -> (i32, i32) {
    %c0_i32 = arith.constant 0 : i32
    %c0_i32_0 = arith.constant 0 : i32
    %c0_i32_1 = arith.constant 0 : i32
    return %c0_i32, %c0_i32_0 : i32, i32
  }
  func.func @transform_4(%arg0: i32) -> (i32, i32) {
    %c0_i32 = arith.constant 0 : i32
    %c0_i32_0 = arith.constant 0 : i32
    %c0_i32_1 = arith.constant 0 : i32
    return %c0_i32, %c0_i32_0 : i32, i32
  }
  func.func @transform_5(%arg0: i32) -> (i32, i32, i32) {
    %c0_i32 = arith.constant 0 : i32
    %c0_i32_0 = arith.constant 0 : i32
    %c0_i32_1 = arith.constant 0 : i32
    %c0_i32_2 = arith.constant 0 : i32
    return %c0_i32, %c0_i32_0, %c0_i32_1 : i32, i32, i32
  }
  func.func @transform_6(%arg0: i32) -> (i32, i32, i32) {
    %c0_i32 = arith.constant 0 : i32
    %c0_i32_0 = arith.constant 0 : i32
    %c0_i32_1 = arith.constant 0 : i32
    %c0_i32_2 = arith.constant 0 : i32
    return %c0_i32, %c0_i32_0, %c0_i32_1 : i32, i32, i32
  }
  func.func @transform_7(%arg0: i32) -> (i32, i32) {
    %c0_i32 = arith.constant 0 : i32
    %c0_i32_0 = arith.constant 0 : i32
    %c0_i32_1 = arith.constant 0 : i32
    return %c0_i32, %c0_i32_0 : i32, i32
  }
  func.func @transform_8(%arg0: i32) -> (i32, i32) {
    %c0_i32 = arith.constant 0 : i32
    %c0_i32_0 = arith.constant 0 : i32
    %c0_i32_1 = arith.constant 0 : i32
    return %c0_i32, %c0_i32_0 : i32, i32
  }
  func.func @transform_9(%arg0: i32) -> (i32, i32) {
    %c0_i32 = arith.constant 0 : i32
    %c0_i32_0 = arith.constant 0 : i32
    %c0_i32_1 = arith.constant 0 : i32
    return %c0_i32, %c0_i32_0 : i32, i32
  }
  func.func @transform_10(%arg0: i32) -> (i32, i32) {
    %c0_i32 = arith.constant 0 : i32
    %c0_i32_0 = arith.constant 0 : i32
    %c0_i32_1 = arith.constant 0 : i32
    return %c0_i32, %c0_i32_0 : i32, i32
  }
  func.func @transform_11(%arg0: i32) -> (i32, i32) {
    %c0_i32 = arith.constant 0 : i32
    %c0_i32_0 = arith.constant 0 : i32
    %c0_i32_1 = arith.constant 0 : i32
    return %c0_i32, %c0_i32_0 : i32, i32
  }
  func.func @transform_12(%arg0: i32) -> (i32, i32) {
    %c0_i32 = arith.constant 0 : i32
    %c0_i32_0 = arith.constant 0 : i32
    %c0_i32_1 = arith.constant 0 : i32
    return %c0_i32, %c0_i32_0 : i32, i32
  }
  func.func @transform_13(%arg0: i32) -> (i32, i32, i32, i32) {
    %c0_i32 = arith.constant 0 : i32
    %c0_i32_0 = arith.constant 0 : i32
    %c0_i32_1 = arith.constant 0 : i32
    %c0_i32_2 = arith.constant 0 : i32
    return %arg0, %c0_i32, %c0_i32_0, %c0_i32_1 : i32, i32, i32, i32
  }
}

</mosaic_0001>

<llo_original>
// kernel: autoencoder_forward.1
$region0: #{autoencoder_forward.1}
  #allocation0 [shape = 'u32[]', space=smem, size = 0x4, offset = 0x4, fixed_abs, tag = 'smem constant byte address 0x4 - core index']
  #allocation1 [shape = 'u32[144,128]{1,0:T(1,128)}', space=vmem, size = 0x12000, scoped, tag = 'internal scratch']
  #allocation2 [shape = 'bf16[64,256]{1,0:T(16,128)(2,1)}', space=vmem, size = 0x8000, scoped, tag = 'scratch operand']
  #allocation3 [shape = 'bf16[64,256]{1,0:T(16,128)(2,1)}', space=vmem, size = 0x8000, scoped, tag = 'scratch operand']
  #allocation4 [shape = 'bf16[64,256]{1,0:T(16,128)(2,1)}', space=vmem, size = 0x8000, scoped, tag = 'scratch operand']
  #allocation5 [shape = 'bf16[8,1792]{1,0:T(8,128)(2,1)}', space=vmem, size = 0x7000, scoped, tag = 'scratch operand']
  %s0 = inlined_call_operand.vmem [shape: bf16[1,4,64,128], index: 0, kind: input, shape index: {}]
  %s1 = inlined_call_operand.hbm [shape: bf16[3,128,256], index: 1, kind: input, shape index: {}]
  %s2 = inlined_call_operand.vmem [shape: bf16[3,256,256], index: 2, kind: input, shape index: {}]
  %s3 = inlined_call_operand.vmem [shape: bf16[1792,64], index: 3, kind: input, shape index: {}]
  %s4 = inlined_call_operand.vmem [shape: bf16[64,1792], index: 4, kind: input, shape index: {}]
  %s5 = inlined_call_operand.vmem [shape: bf16[3,256,256], index: 5, kind: input, shape index: {}]
  %s6 = inlined_call_operand.hbm [shape: bf16[3,256,128], index: 6, kind: input, shape index: {}]
  %s7 = inlined_call_operand.vmem [shape: f32[1,256], index: 7, kind: input, shape index: {}]
  %s8 = inlined_call_operand.vmem [shape: f32[1,256], index: 8, kind: input, shape index: {}]
  %s9 = inlined_call_operand.vmem [shape: f32[1,64], index: 9, kind: input, shape index: {}]
  %s10 = inlined_call_operand.vmem [shape: f32[1,1792], index: 10, kind: input, shape index: {}]
  %s11 = inlined_call_operand.vmem [shape: f32[1,256], index: 11, kind: input, shape index: {}]
  %s12 = inlined_call_operand.vmem [shape: f32[1,128], index: 12, kind: input, shape index: {}]
  %s13 = inlined_call_operand.vmem [shape: bf16[1,4,56,128], index: 13, kind: output, shape index: {}]
  %s14 = sld [smem:[#allocation0]]
  $region70: #{autoencoder_forward.1} parent=0
    _
  %s16 = ssub.s32 1, %s14
  %s17 = scalar_select 0, %s16, %s14
  $region1: #{autoencoder_forward.1} parent=0
    #allocation6 [shape = 'u8[196608]{0}', space=vmem, size = 0x30000, scoped, tag = 'input window, operand 1, single buffered']
    #allocation7 [shape = 's32[1]{0}', space=sflag, size = 0x4, scoped, tag = 'scoped memory for autoencoder_forward.1']
    #allocation8 [shape = 'u8[196608]{0}', space=vmem, size = 0x30000, scoped, tag = 'input window, operand 6, single buffered']
    #allocation9 [shape = 's32[1]{0}', space=sflag, size = 0x4, scoped, tag = 'scoped memory for autoencoder_forward.1']
    %18 = vsyncpa [#allocation7], 0
    %19 = vsyncpa [#allocation9], 0
    // Predicated region
    $region2: #{autoencoder_forward.1} parent=1 // pred_check
      _
    $region3: #{autoencoder_forward.1} parent=1 // pred_check_branch
      %21 = sbr.rel (0) target = $region5
    $region4: #{autoencoder_forward.1} parent=1 // pred_region
      _
    $region5: #{autoencoder_forward.1} parent=1 // pred_fallthru
      _
    // Predicated region
    $region6: #{autoencoder_forward.1} parent=1 // pred_check
      _
    $region7: #{autoencoder_forward.1} parent=1 // pred_check_branch
      %23 = sbr.rel (0) target = $region9
    $region8: #{autoencoder_forward.1} parent=1 // pred_region
      %s25 = ssub.s32 6144, 6144
      %26 = vsyncadd [#allocation7], %s25
      %s27 = sshll.u32 [#allocation6], 4
      %s28 = int_to_ptr.vmem [resolvable:$true] %s27
      %33 = dma.hbm_to_vmem [thread:$0]  %s1, 6144, %s28, [#allocation7], 128, 128, 8
    $region9: #{autoencoder_forward.1} parent=1 // pred_fallthru
      _
    // Predicated region
    $region10: #{autoencoder_forward.1} parent=1 // pred_check
      _
    $region11: #{autoencoder_forward.1} parent=1 // pred_check_branch
      %35 = sbr.rel (0) target = $region13
    $region12: #{autoencoder_forward.1} parent=1 // pred_region
      _
    $region13: #{autoencoder_forward.1} parent=1 // pred_fallthru
      _
    // Predicated region
    $region14: #{autoencoder_forward.1} parent=1 // pred_check
      _
    $region15: #{autoencoder_forward.1} parent=1 // pred_check_branch
      %37 = sbr.rel (0) target = $region17
    $region16: #{autoencoder_forward.1} parent=1 // pred_region
      _
    $region17: #{autoencoder_forward.1} parent=1 // pred_fallthru
      _
    // Predicated region
    $region18: #{autoencoder_forward.1} parent=1 // pred_check
      _
    $region19: #{autoencoder_forward.1} parent=1 // pred_check_branch
      %39 = sbr.rel (0) target = $region21
    $region20: #{autoencoder_forward.1} parent=1 // pred_region
      _
    $region21: #{autoencoder_forward.1} parent=1 // pred_fallthru
      _
    // Predicated region
    $region22: #{autoencoder_forward.1} parent=1 // pred_check
      _
    $region23: #{autoencoder_forward.1} parent=1 // pred_check_branch
      %41 = sbr.rel (0) target = $region25
    $region24: #{autoencoder_forward.1} parent=1 // pred_region
      _
    $region25: #{autoencoder_forward.1} parent=1 // pred_fallthru
      _
    // Predicated region
    $region26: #{autoencoder_forward.1} parent=1 // pred_check
      _
    $region27: #{autoencoder_forward.1} parent=1 // pred_check_branch
      %43 = sbr.rel (0) target = $region29
    $region28: #{autoencoder_forward.1} parent=1 // pred_region
      %s45 = ssub.s32 6144, 6144
      %46 = vsyncadd [#allocation9], %s45
      %s47 = sshll.u32 [#allocation8], 4
      %s48 = int_to_ptr.vmem [resolvable:$true] %s47
      %53 = dma.hbm_to_vmem [thread:$0]  %s6, 6144, %s48, [#allocation9], 64, 64, 4
    $region29: #{autoencoder_forward.1} parent=1 // pred_fallthru
      _
    // Predicated region
    $region30: #{autoencoder_forward.1} parent=1 // pred_check
      _
    $region31: #{autoencoder_forward.1} parent=1 // pred_check_branch
      %55 = sbr.rel (0) target = $region33
    $region32: #{autoencoder_forward.1} parent=1 // pred_region
      _
    $region33: #{autoencoder_forward.1} parent=1 // pred_fallthru
      _
    // Predicated region
    $region34: #{autoencoder_forward.1} parent=1 // pred_check
      _
    $region35: #{autoencoder_forward.1} parent=1 // pred_check_branch
      %57 = sbr.rel (0) target = $region37
    $region36: #{autoencoder_forward.1} parent=1 // pred_region
      _
    $region37: #{autoencoder_forward.1} parent=1 // pred_fallthru
      _
    // Predicated region
    $region38: #{autoencoder_forward.1} parent=1 // pred_check
      _
    $region39: #{autoencoder_forward.1} parent=1 // pred_check_branch
      %59 = sbr.rel (0) target = $region41
    $region40: #{autoencoder_forward.1} parent=1 // pred_region
      _
    $region41: #{autoencoder_forward.1} parent=1 // pred_fallthru
      _
    // Predicated region
    $region42: #{autoencoder_forward.1} parent=1 // pred_check
      _
    $region43: #{autoencoder_forward.1} parent=1 // pred_check_branch
      %61 = sbr.rel (0) target = $region45
    $region44: #{autoencoder_forward.1} parent=1 // pred_region
      _
    $region45: #{autoencoder_forward.1} parent=1 // pred_fallthru
      _
    // Predicated region
    $region46: #{autoencoder_forward.1} parent=1 // pred_check
      _
    $region47: #{autoencoder_forward.1} parent=1 // pred_check_branch
      %63 = sbr.rel (0) target = $region49
    $region48: #{autoencoder_forward.1} parent=1 // pred_region
      _
    $region49: #{autoencoder_forward.1} parent=1 // pred_fallthru
      _
    // Predicated region
    $region50: #{autoencoder_forward.1} parent=1 // pred_check
      _
    $region51: #{autoencoder_forward.1} parent=1 // pred_check_branch
      %65 = sbr.rel (0) target = $region53
    $region52: #{autoencoder_forward.1} parent=1 // pred_region
      _
    $region53: #{autoencoder_forward.1} parent=1 // pred_fallthru
      _
    // Predicated region
    $region54: #{autoencoder_forward.1} parent=1 // pred_check
      _
    $region55: #{autoencoder_forward.1} parent=1 // pred_check_branch
      %67 = sbr.rel (0) target = $region57
    $region56: #{autoencoder_forward.1} parent=1 // pred_region
      %68 = dma.done [#allocation7], 6144
    $region57: #{autoencoder_forward.1} parent=1 // pred_fallthru
      _
    // Predicated region
    $region58: #{autoencoder_forward.1} parent=1 // pred_check
      _
    $region59: #{autoencoder_forward.1} parent=1 // pred_check_branch
      %70 = sbr.rel (0) target = $region61
    $region60: #{autoencoder_forward.1} parent=1 // pred_region
      %71 = dma.done [#allocation9], 6144
    $region61: #{autoencoder_forward.1} parent=1 // pred_fallthru
      _
    %73 = vst [vmem:[#allocation2] sm:$0xf] 0
    %74 = vst [vmem:[#allocation2 + $0x8] sm:$0xf] 0
    %75 = vst [vmem:[#allocation3 + $0x30] sm:$0xf0] 0
    %76 = vst [vmem:[#allocation3 + $0x38] sm:$0xf0] 0
    %77 = vst [vmem:[#allocation4 + $0x30] sm:$0xf0] 0
    %78 = vst [vmem:[#allocation4 + $0x38] sm:$0xf0] 0
    %s79 = scalar_lea.vmem %s0, 96
    %v80 = vld [vmem:[%s79] sm:$0xf]
    %v81 = vld [vmem:[%s79 + $0x4] sm:$0xf]
    %v82 = vld [vmem:[%s79 + $0x8] sm:$0xf]
    %v83 = vld [vmem:[%s79 + $0xc] sm:$0xf]
    %v84 = vld [vmem:[%s79 + $0x10] sm:$0xf]
    %v85 = vld [vmem:[%s79 + $0x14] sm:$0xf]
    %v86 = vld [vmem:[%s79 + $0x18] sm:$0xf]
    %v87 = vld [vmem:[%s0 + $0x4] sm:$0xf]
    %v88 = vld [vmem:[%s0 + $0x8] sm:$0xf]
    %v89 = vld [vmem:[%s0 + $0xc] sm:$0xf]
    %v90 = vld [vmem:[%s0 + $0x10] sm:$0xf]
    %v91 = vld [vmem:[%s0 + $0x14] sm:$0xf]
    %v92 = vld [vmem:[%s0 + $0x18] sm:$0xf]
    %v93 = vld [vmem:[%s0 + $0x1c] sm:$0xf]
    %s94 = scalar_lea.vmem %s0, 32
    %v95 = vld [vmem:[%s94 + $0x4] sm:$0xf]
    %v96 = vld [vmem:[%s94 + $0x8] sm:$0xf]
    %v97 = vld [vmem:[%s94 + $0xc] sm:$0xf]
    %v98 = vld [vmem:[%s94 + $0x10] sm:$0xf]
    %v99 = vld [vmem:[%s94 + $0x14] sm:$0xf]
    %v100 = vld [vmem:[%s94 + $0x18] sm:$0xf]
    %v101 = vld [vmem:[%s94 + $0x1c] sm:$0xf]
    %s102 = scalar_lea.vmem %s0, 64
    %v103 = vld [vmem:[%s102 + $0x4] sm:$0xf]
    %v104 = vld [vmem:[%s102 + $0x8] sm:$0xf]
    %v105 = vld [vmem:[%s102 + $0xc] sm:$0xf]
    %v106 = vld [vmem:[%s102 + $0x10] sm:$0xf]
    %v107 = vld [vmem:[%s102 + $0x14] sm:$0xf]
    %v108 = vld [vmem:[%s102 + $0x18] sm:$0xf]
    %v109 = vld [vmem:[%s102 + $0x1c] sm:$0xf]
    %v110 = vld [vmem:[%s79 + $0x1c] sm:$0xf]
    %v111 = vld [vmem:[%s7] sm:$0x3]
    %v112 = vld [vmem:[#allocation6] sm:$0xff]
    %v113 = vld [vmem:[#allocation6 + $0x8] sm:$0xff]
    %v114 = vld [vmem:[#allocation6 + $0x10] sm:$0xff]
    %v115 = vld [vmem:[#allocation6 + $0x18] sm:$0xff]
    %v116 = vld [vmem:[#allocation6 + $0x20] sm:$0xff]
    %v117 = vld [vmem:[#allocation6 + $0x28] sm:$0xff]
    %v118 = vld [vmem:[#allocation6 + $0x30] sm:$0xff]
    %v119 = vld [vmem:[#allocation6 + $0x38] sm:$0xff]
    %v120 = vld [vmem:[#allocation6 + $0x40] sm:$0xff]
    %v121 = vld [vmem:[#allocation6 + $0x48] sm:$0xff]
    %v122 = vld [vmem:[#allocation6 + $0x50] sm:$0xff]
    %v123 = vld [vmem:[#allocation6 + $0x58] sm:$0xff]
    %v124 = vld [vmem:[#allocation6 + $0x60] sm:$0xff]
    %v125 = vld [vmem:[#allocation6 + $0x68] sm:$0xff]
    %v126 = vld [vmem:[#allocation6 + $0x70] sm:$0xff]
    %v127 = vld [vmem:[#allocation6 + $0x78] sm:$0xff]
    %s128 = scalar_lea.vmem [#allocation6], 128
    %v129 = vld [vmem:[%s128] sm:$0xff]
    %v130 = vld [vmem:[%s128 + $0x8] sm:$0xff]
    %v131 = vld [vmem:[%s128 + $0x10] sm:$0xff]
    %v132 = vld [vmem:[%s128 + $0x18] sm:$0xff]
    %v133 = vld [vmem:[%s128 + $0x20] sm:$0xff]
    %v134 = vld [vmem:[%s128 + $0x28] sm:$0xff]
    %v135 = vld [vmem:[%s128 + $0x30] sm:$0xff]
    %v136 = vld [vmem:[%s128 + $0x38] sm:$0xff]
    %v137 = vld [vmem:[%s128 + $0x40] sm:$0xff]
    %v138 = vld [vmem:[%s128 + $0x48] sm:$0xff]
    %v139 = vld [vmem:[%s128 + $0x50] sm:$0xff]
    %v140 = vld [vmem:[%s128 + $0x58] sm:$0xff]
    %v141 = vld [vmem:[%s128 + $0x60] sm:$0xff]
    %v142 = vld [vmem:[%s128 + $0x68] sm:$0xff]
    %v143 = vld [vmem:[%s128 + $0x70] sm:$0xff]
    %v144 = vld [vmem:[%s128 + $0x78] sm:$0xff]
    %v152 = vunpack.c.l.b16 %v87
    %v153 = vunpack.c.l.b16 %v88
    %v154 = vunpack.c.l.b16 %v89
    %v155 = vunpack.c.l.b16 %v90
    %v156 = vunpack.c.l.b16 %v91
    %v157 = vunpack.c.l.b16 %v92
    %v158 = vunpack.c.l.b16 %v93
    %v159 = vpack.c.b16 %v153, %v152
    %v160 = vpack.c.b16 %v155, %v154
    %v161 = vpack.c.b16 %v157, %v156
    %v162 = vpack.c.b16 %v158, %v158
    %v183 = vunpack.c.l.b16 %v129
    %v184 = vunpack.c.h.b16 %v129
    %v185 = vunpack.c.l.b16 %v130
    %v186 = vunpack.c.h.b16 %v130
    %v187 = vunpack.c.l.b16 %v131
    %v188 = vunpack.c.h.b16 %v131
    %v189 = vunpack.c.l.b16 %v132
    %v190 = vunpack.c.h.b16 %v132
    %v191 = vunpack.c.l.b16 %v133
    %v192 = vunpack.c.h.b16 %v133
    %v193 = vunpack.c.l.b16 %v134
    %v194 = vunpack.c.h.b16 %v134
    %v195 = vunpack.c.l.b16 %v135
    %v196 = vunpack.c.h.b16 %v135
    %v197 = vunpack.c.l.b16 %v136
    %v198 = vunpack.c.h.b16 %v136
    %v199 = vunpack.c.l.b16 %v137
    %v200 = vunpack.c.h.b16 %v137
    %v201 = vunpack.c.l.b16 %v138
    %v202 = vunpack.c.h.b16 %v138
    %v203 = vunpack.c.l.b16 %v139
    %v204 = vunpack.c.h.b16 %v139
    %v205 = vunpack.c.l.b16 %v140
    %v206 = vunpack.c.h.b16 %v140
    %v207 = vunpack.c.l.b16 %v141
    %v208 = vunpack.c.h.b16 %v141
    %v209 = vunpack.c.l.b16 %v142
    %v210 = vunpack.c.h.b16 %v142
    %v211 = vunpack.c.l.b16 %v143
    %v212 = vunpack.c.h.b16 %v143
    %v213 = vunpack.c.l.b16 %v144
    %v214 = vunpack.c.h.b16 %v144
    %v215 = vpack.c.b16 %v185, %v183
    %v216 = vpack.c.b16 %v186, %v184
    %v217 = vpack.c.b16 %v189, %v187
    %v218 = vpack.c.b16 %v190, %v188
    %v219 = vpack.c.b16 %v193, %v191
    %v220 = vpack.c.b16 %v194, %v192
    %v221 = vpack.c.b16 %v197, %v195
    %v222 = vpack.c.b16 %v198, %v196
    %v223 = vpack.c.b16 %v201, %v199
    %v224 = vpack.c.b16 %v202, %v200
    %v225 = vpack.c.b16 %v205, %v203
    %v226 = vpack.c.b16 %v206, %v204
    %v227 = vpack.c.b16 %v209, %v207
    %v228 = vpack.c.b16 %v210, %v208
    %v229 = vpack.c.b16 %v213, %v211
    %v230 = vpack.c.b16 %v214, %v212
    %247 = vmatprep.subr.bf16.mxu0 %v216
    %248 = vmatpush1.bf16.msra.mxu0 %v215
    %249 = vmatprep.subr.bf16.mxu0 %v218
    %250 = vmatpush1.bf16.msra.mxu0 %v217
    %251 = vmatprep.subr.bf16.mxu0 %v220
    %252 = vmatpush1.bf16.msra.mxu0 %v219
    %253 = vmatprep.subr.bf16.mxu0 %v222
    %254 = vmatpush1.bf16.msra.mxu0 %v221
    %255 = vmatprep.subr.bf16.mxu0 %v224
    %256 = vmatpush1.bf16.msra.mxu0 %v223
    %257 = vmatprep.subr.bf16.mxu0 %v226
    %258 = vmatpush1.bf16.msra.mxu0 %v225
    %259 = vmatprep.subr.bf16.mxu0 %v228
    %260 = vmatpush1.bf16.msra.mxu0 %v227
    %261 = vmatprep.subr.bf16.mxu0 %v230
    %262 = vmatpush1.bf16.msra.mxu0 %v229
    %263 = vmatprep.subr.bf16.mxu0 0
    %264 = vmatpush1.bf16.msra.mxu0 0
    %265 = vmatprep.subr.bf16.mxu0 0
    %266 = vmatpush1.bf16.msra.mxu0 0
    %267 = vmatprep.subr.bf16.mxu0 0
    %268 = vmatpush1.bf16.msra.mxu0 0
    %269 = vmatprep.subr.bf16.mxu0 0
    %270 = vmatpush1.bf16.msra.mxu0 0
    %271 = vmatprep.subr.bf16.mxu0 0
    %272 = vmatpush1.bf16.msra.mxu0 0
    %273 = vmatprep.subr.bf16.mxu0 0
    %274 = vmatpush1.bf16.msra.mxu0 0
    %275 = vmatprep.subr.bf16.mxu0 0
    %276 = vmatpush1.bf16.msra.mxu0 0
    %277 = vmatprep.subr.bf16.mxu0 0
    %278 = vmatpush1.bf16.msra.mxu0 0
    %279 = vmatprep.mubr.bf16.mxu0 0
    %280 = vmatmul.mubr.bf16.gmra.mrb[0].mxu0 %v159
    %v281 = vpop.f32.mrb[0].mxu0
    %v282 = vadd.f32 0.0, %v281
    %v283 = vpop.f32.mrb[0].mxu0
    %v284 = vadd.f32 0.0, %v283
    %v285 = vpop.f32.mrb[0].mxu0
    %v286 = vadd.f32 0.0, %v285
    %v287 = vpop.f32.mrb[0].mxu0
    %v288 = vadd.f32 0.0, %v287
    %289 = vmatprep.mubr.bf16.mxu0 0
    %290 = vmatmul.mubr.bf16.gmra.mrb[0].mxu0 %v160
    %v291 = vpop.f32.mrb[0].mxu0
    %v292 = vadd.f32 0.0, %v291
    %v293 = vpop.f32.mrb[0].mxu0
    %v294 = vadd.f32 0.0, %v293
    %v295 = vpop.f32.mrb[0].mxu0
    %v296 = vadd.f32 0.0, %v295
    %v297 = vpop.f32.mrb[0].mxu0
    %v298 = vadd.f32 0.0, %v297
    %299 = vmatprep.mubr.bf16.mxu0 0
    %300 = vmatmul.mubr.bf16.gmra.mrb[0].mxu0 %v161
    %v301 = vpop.f32.mrb[0].mxu0
    %v302 = vadd.f32 0.0, %v301
    %v303 = vpop.f32.mrb[0].mxu0
    %v304 = vadd.f32 0.0, %v303
    %v305 = vpop.f32.mrb[0].mxu0
    %v306 = vadd.f32 0.0, %v305
    %v307 = vpop.f32.mrb[0].mxu0
    %v308 = vadd.f32 0.0, %v307
    %309 = vmatprep.mubr.bf16.mxu0 0
    %310 = vmatmul.mubr.bf16.gmra.mrb[0].mxu0 %v162
    %v311 = vpop.f32.mrb[0].mxu0
    %v312 = vadd.f32 0.0, %v311
    %v313 = vpop.f32.mrb[0].mxu0
    %v314 = vadd.f32 0.0, %v313
    %v315 = vpop.f32.mrb[0].mxu0
    %v316 = vpop.f32.mrb[0].mxu0
    %317 = vdwg.mxu0
    %v325 = vunpack.c.l.b16 %v80
    %v326 = vunpack.c.l.b16 %v81
    %v327 = vunpack.c.l.b16 %v82
    %v328 = vunpack.c.l.b16 %v83
    %v329 = vunpack.c.l.b16 %v84
    %v330 = vunpack.c.l.b16 %v85
    %v331 = vunpack.c.l.b16 %v86
    %v332 = vpack.c.b16 %v326, %v325
    %v333 = vpack.c.b16 %v328, %v327
    %v334 = vpack.c.b16 %v330, %v329
    %v335 = vpack.c.b16 %v331, %v331
    %v356 = vunpack.c.l.b16 %v112
    %v357 = vunpack.c.h.b16 %v112
    %v358 = vunpack.c.l.b16 %v113
    %v359 = vunpack.c.h.b16 %v113
    %v360 = vunpack.c.l.b16 %v114
    %v361 = vunpack.c.h.b16 %v114
    %v362 = vunpack.c.l.b16 %v115
    %v363 = vunpack.c.h.b16 %v115
    %v364 = vunpack.c.l.b16 %v116
    %v365 = vunpack.c.h.b16 %v116
    %v366 = vunpack.c.l.b16 %v117
    %v367 = vunpack.c.h.b16 %v117
    %v368 = vunpack.c.l.b16 %v118
    %v369 = vunpack.c.h.b16 %v118
    %v370 = vunpack.c.l.b16 %v119
    %v371 = vunpack.c.h.b16 %v119
    %v372 = vunpack.c.l.b16 %v120
    %v373 = vunpack.c.h.b16 %v120
    %v374 = vunpack.c.l.b16 %v121
    %v375 = vunpack.c.h.b16 %v121
    %v376 = vunpack.c.l.b16 %v122
    %v377 = vunpack.c.h.b16 %v122
    %v378 = vunpack.c.l.b16 %v123
    %v379 = vunpack.c.h.b16 %v123
    %v380 = vunpack.c.l.b16 %v124
    %v381 = vunpack.c.h.b16 %v124
    %v382 = vunpack.c.l.b16 %v125
    %v383 = vunpack.c.h.b16 %v125
    %v384 = vunpack.c.l.b16 %v126
    %v385 = vunpack.c.h.b16 %v126
    %v386 = vunpack.c.l.b16 %v127
    %v387 = vunpack.c.h.b16 %v127
    %v388 = vpack.c.b16 %v358, %v356
    %v389 = vpack.c.b16 %v359, %v357
    %v390 = vpack.c.b16 %v362, %v360
    %v391 = vpack.c.b16 %v363, %v361
    %v392 = vpack.c.b16 %v366, %v364
    %v393 = vpack.c.b16 %v367, %v365
    %v394 = vpack.c.b16 %v370, %v368
    %v395 = vpack.c.b16 %v371, %v369
    %v396 = vpack.c.b16 %v374, %v372
    %v397 = vpack.c.b16 %v375, %v373
    %v398 = vpack.c.b16 %v378, %v376
    %v399 = vpack.c.b16 %v379, %v377
    %v400 = vpack.c.b16 %v382, %v380
    %v401 = vpack.c.b16 %v383, %v381
    %v402 = vpack.c.b16 %v386, %v384
    %v403 = vpack.c.b16 %v387, %v385
    %420 = vmatprep.subr.bf16.mxu0 %v389
    %421 = vmatpush1.bf16.msra.mxu0 %v388
    %422 = vmatprep.subr.bf16.mxu0 %v391
    %423 = vmatpush1.bf16.msra.mxu0 %v390
    %424 = vmatprep.subr.bf16.mxu0 %v393
    %425 = vmatpush1.bf16.msra.mxu0 %v392
    %426 = vmatprep.subr.bf16.mxu0 %v395
    %427 = vmatpush1.bf16.msra.mxu0 %v394
    %428 = vmatprep.subr.bf16.mxu0 %v397
    %429 = vmatpush1.bf16.msra.mxu0 %v396
    %430 = vmatprep.subr.bf16.mxu0 %v399
    %431 = vmatpush1.bf16.msra.mxu0 %v398
    %432 = vmatprep.subr.bf16.mxu0 %v401
    %433 = vmatpush1.bf16.msra.mxu0 %v400
    %434 = vmatprep.subr.bf16.mxu0 %v403
    %435 = vmatpush1.bf16.msra.mxu0 %v402
    %436 = vmatprep.subr.bf16.mxu0 0
    %437 = vmatpush1.bf16.msra.mxu0 0
    %438 = vmatprep.subr.bf16.mxu0 0
    %439 = vmatpush1.bf16.msra.mxu0 0
    %440 = vmatprep.subr.bf16.mxu0 0
    %441 = vmatpush1.bf16.msra.mxu0 0
    %442 = vmatprep.subr.bf16.mxu0 0
    %443 = vmatpush1.bf16.msra.mxu0 0
    %444 = vmatprep.subr.bf16.mxu0 0
    %445 = vmatpush1.bf16.msra.mxu0 0
    %446 = vmatprep.subr.bf16.mxu0 0
    %447 = vmatpush1.bf16.msra.mxu0 0
    %448 = vmatprep.subr.bf16.mxu0 0
    %449 = vmatpush1.bf16.msra.mxu0 0
    %450 = vmatprep.subr.bf16.mxu0 0
    %451 = vmatpush1.bf16.msra.mxu0 0
    %452 = vmatprep.mubr.bf16.mxu0 0
    %453 = vmatmul.mubr.bf16.gmra.mrb[0].mxu0 %v332
    %v454 = vpop.f32.mrb[0].mxu0
    %v455 = vadd.f32 %v282, %v454
    %v456 = vpop.f32.mrb[0].mxu0
    %v457 = vadd.f32 %v284, %v456
    %v458 = vpop.f32.mrb[0].mxu0
    %v459 = vadd.f32 %v286, %v458
    %v460 = vpop.f32.mrb[0].mxu0
    %v461 = vadd.f32 %v288, %v460
    %462 = vmatprep.mubr.bf16.mxu0 0
    %463 = vmatmul.mubr.bf16.gmra.mrb[0].mxu0 %v333
    %v464 = vpop.f32.mrb[0].mxu0
    %v465 = vadd.f32 %v292, %v464
    %v466 = vpop.f32.mrb[0].mxu0
    %v467 = vadd.f32 %v294, %v466
    %v468 = vpop.f32.mrb[0].mxu0
    %v469 = vadd.f32 %v296, %v468
    %v470 = vpop.f32.mrb[0].mxu0
    %v471 = vadd.f32 %v298, %v470
    %472 = vmatprep.mubr.bf16.mxu0 0
    %473 = vmatmul.mubr.bf16.gmra.mrb[0].mxu0 %v334
    %v474 = vpop.f32.mrb[0].mxu0
    %v475 = vadd.f32 %v302, %v474
    %v476 = vpop.f32.mrb[0].mxu0
    %v477 = vadd.f32 %v304, %v476
    %v478 = vpop.f32.mrb[0].mxu0
    %v479 = vadd.f32 %v306, %v478
    %v480 = vpop.f32.mrb[0].mxu0
    %v481 = vadd.f32 %v308, %v480
    %482 = vmatprep.mubr.bf16.mxu0 0
    %483 = vmatmul.mubr.bf16.gmra.mrb[0].mxu0 %v335
    %v484 = vpop.f32.mrb[0].mxu0
    %v485 = vadd.f32 %v312, %v484
    %v486 = vpop.f32.mrb[0].mxu0
    %v487 = vadd.f32 %v314, %v486
    %v488 = vpop.f32.mrb[0].mxu0
    %v489 = vpop.f32.mrb[0].mxu0
    %490 = vdwg.mxu0
    %s491 = scalar_lea.vmem [#allocation6], 256
    %v492 = vld [vmem:[%s491] sm:$0xff]
    %v493 = vld [vmem:[%s491 + $0x8] sm:$0xff]
    %v494 = vld [vmem:[%s491 + $0x10] sm:$0xff]
    %v495 = vld [vmem:[%s491 + $0x18] sm:$0xff]
    %v496 = vld [vmem:[%s491 + $0x20] sm:$0xff]
    %v497 = vld [vmem:[%s491 + $0x28] sm:$0xff]
    %v498 = vld [vmem:[%s491 + $0x30] sm:$0xff]
    %v499 = vld [vmem:[%s491 + $0x38] sm:$0xff]
    %v500 = vld [vmem:[%s491 + $0x40] sm:$0xff]
    %v501 = vld [vmem:[%s491 + $0x48] sm:$0xff]
    %v502 = vld [vmem:[%s491 + $0x50] sm:$0xff]
    %v503 = vld [vmem:[%s491 + $0x58] sm:$0xff]
    %v504 = vld [vmem:[%s491 + $0x60] sm:$0xff]
    %v505 = vld [vmem:[%s491 + $0x68] sm:$0xff]
    %v506 = vld [vmem:[%s491 + $0x70] sm:$0xff]
    %v507 = vld [vmem:[%s491 + $0x78] sm:$0xff]
    %v515 = vunpack.c.l.b16 %v95
    %v516 = vunpack.c.l.b16 %v96
    %v517 = vunpack.c.l.b16 %v97
    %v518 = vunpack.c.l.b16 %v98
    %v519 = vunpack.c.l.b16 %v99
    %v520 = vunpack.c.l.b16 %v100
    %v521 = vunpack.c.l.b16 %v101
    %v522 = vpack.c.b16 %v516, %v515
    %v523 = vpack.c.b16 %v518, %v517
    %v524 = vpack.c.b16 %v520, %v519
    %v525 = vpack.c.b16 %v521, %v521
    %v546 = vunpack.c.l.b16 %v492
    %v547 = vunpack.c.h.b16 %v492
    %v548 = vunpack.c.l.b16 %v493
    %v549 = vunpack.c.h.b16 %v493
    %v550 = vunpack.c.l.b16 %v494
    %v551 = vunpack.c.h.b16 %v494
    %v552 = vunpack.c.l.b16 %v495
    %v553 = vunpack.c.h.b16 %v495
    %v554 = vunpack.c.l.b16 %v496
    %v555 = vunpack.c.h.b16 %v496
    %v556 = vunpack.c.l.b16 %v497
    %v557 = vunpack.c.h.b16 %v497
    %v558 = vunpack.c.l.b16 %v498
    %v559 = vunpack.c.h.b16 %v498
    %v560 = vunpack.c.l.b16 %v499
    %v561 = vunpack.c.h.b16 %v499
    %v562 = vunpack.c.l.b16 %v500
    %v563 = vunpack.c.h.b16 %v500
    %v564 = vunpack.c.l.b16 %v501
    %v565 = vunpack.c.h.b16 %v501
    %v566 = vunpack.c.l.b16 %v502
    %v567 = vunpack.c.h.b16 %v502
    %v568 = vunpack.c.l.b16 %v503
    %v569 = vunpack.c.h.b16 %v503
    %v570 = vunpack.c.l.b16 %v504
    %v571 = vunpack.c.h.b16 %v504
    %v572 = vunpack.c.l.b16 %v505
    %v573 = vunpack.c.h.b16 %v505
    %v574 = vunpack.c.l.b16 %v506
    %v575 = vunpack.c.h.b16 %v506
    %v576 = vunpack.c.l.b16 %v507
    %v577 = vunpack.c.h.b16 %v507
    %v578 = vpack.c.b16 %v548, %v546
    %v579 = vpack.c.b16 %v549, %v547
    %v580 = vpack.c.b16 %v552, %v550
    %v581 = vpack.c.b16 %v553, %v551
    %v582 = vpack.c.b16 %v556, %v554
    %v583 = vpack.c.b16 %v557, %v555
    %v584 = vpack.c.b16 %v560, %v558
    %v585 = vpack.c.b16 %v561, %v559
    %v586 = vpack.c.b16 %v564, %v562
    %v587 = vpack.c.b16 %v565, %v563
    %v588 = vpack.c.b16 %v568, %v566
    %v589 = vpack.c.b16 %v569, %v567
    %v590 = vpack.c.b16 %v572, %v570
    %v591 = vpack.c.b16 %v573, %v571
    %v592 = vpack.c.b16 %v576, %v574
    %v593 = vpack.c.b16 %v577, %v575
    %610 = vmatprep.subr.bf16.mxu0 %v579
    %611 = vmatpush1.bf16.msra.mxu0 %v578
    %612 = vmatprep.subr.bf16.mxu0 %v581
    %613 = vmatpush1.bf16.msra.mxu0 %v580
    %614 = vmatprep.subr.bf16.mxu0 %v583
    %615 = vmatpush1.bf16.msra.mxu0 %v582
    %616 = vmatprep.subr.bf16.mxu0 %v585
    %617 = vmatpush1.bf16.msra.mxu0 %v584
    %618 = vmatprep.subr.bf16.mxu0 %v587
    %619 = vmatpush1.bf16.msra.mxu0 %v586
    %620 = vmatprep.subr.bf16.mxu0 %v589
    %621 = vmatpush1.bf16.msra.mxu0 %v588
    %622 = vmatprep.subr.bf16.mxu0 %v591
    %623 = vmatpush1.bf16.msra.mxu0 %v590
    %624 = vmatprep.subr.bf16.mxu0 %v593
    %625 = vmatpush1.bf16.msra.mxu0 %v592
    %626 = vmatprep.subr.bf16.mxu0 0
    %627 = vmatpush1.bf16.msra.mxu0 0
    %628 = vmatprep.subr.bf16.mxu0 0
    %629 = vmatpush1.bf16.msra.mxu0 0
    %630 = vmatprep.subr.bf16.mxu0 0
    %631 = vmatpush1.bf16.msra.mxu0 0
    %632 = vmatprep.subr.bf16.mxu0 0
    %633 = vmatpush1.bf16.msra.mxu0 0
    %634 = vmatprep.subr.bf16.mxu0 0
    %635 = vmatpush1.bf16.msra.mxu0 0
    %636 = vmatprep.subr.bf16.mxu0 0
    %637 = vmatpush1.bf16.msra.mxu0 0
    %638 = vmatprep.subr.bf16.mxu0 0
    %639 = vmatpush1.bf16.msra.mxu0 0
    %640 = vmatprep.subr.bf16.mxu0 0
    %641 = vmatpush1.bf16.msra.mxu0 0
    %642 = vmatprep.mubr.bf16.mxu0 0
    %643 = vmatmul.mubr.bf16.gmra.mrb[0].mxu0 %v522
    %v644 = vpop.f32.mrb[0].mxu0
    %v645 = vadd.f32 0.0, %v644
    %v646 = vpop.f32.mrb[0].mxu0
    %v647 = vadd.f32 0.0, %v646
    %v648 = vpop.f32.mrb[0].mxu0
    %v649 = vadd.f32 0.0, %v648
    %v650 = vpop.f32.mrb[0].mxu0
    %v651 = vadd.f32 0.0, %v650
    %652 = vmatprep.mubr.bf16.mxu0 0
    %653 = vmatmul.mubr.bf16.gmra.mrb[0].mxu0 %v523
    %v654 = vpop.f32.mrb[0].mxu0
    %v655 = vadd.f32 0.0, %v654
    %v656 = vpop.f32.mrb[0].mxu0
    %v657 = vadd.f32 0.0, %v656
    %v658 = vpop.f32.mrb[0].mxu0
    %v659 = vadd.f32 0.0, %v658
    %v660 = vpop.f32.mrb[0].mxu0
    %v661 = vadd.f32 0.0, %v660
    %662 = vmatprep.mubr.bf16.mxu0 0
    %663 = vmatmul.mubr.bf16.gmra.mrb[0].mxu0 %v524
    %v664 = vpop.f32.mrb[0].mxu0
    %v665 = vadd.f32 0.0, %v664
    %v666 = vpop.f32.mrb[0].mxu0
    %v667 = vadd.f32 0.0, %v666
    %v668 = vpop.f32.mrb[0].mxu0
    %v669 = vadd.f32 0.0, %v668
    %v670 = vpop.f32.mrb[0].mxu0
    %v671 = vadd.f32 0.0, %v670
    %672 = vmatprep.mubr.bf16.mxu0 0
    %673 = vmatmul.mubr.bf16.gmra.mrb[0].mxu0 %v525
    %v674 = vpop.f32.mrb[0].mxu0
    %v675 = vadd.f32 0.0, %v674
    %v676 = vpop.f32.mrb[0].mxu0
    %v677 = vadd.f32 0.0, %v676
    %v678 = vpop.f32.mrb[0].mxu0
    %v679 = vpop.f32.mrb[0].mxu0
    %680 = vdwg.mxu0
    %v681 = vadd.f32 %v455, %v645
    %v682 = vadd.f32 %v457, %v647
    %v683 = vadd.f32 %v459, %v649
    %v684 = vadd.f32 %v461, %v651
    %v685 = vadd.f32 %v465, %v655
    %v686 = vadd.f32 %v467, %v657
    %v687 = vadd.f32 %v469, %v659
    %v688 = vadd.f32 %v471, %v661
    %v689 = vadd.f32 %v475, %v665
    %v690 = vadd.f32 %v477, %v667
    %v691 = vadd.f32 %v479, %v669
    %v692 = vadd.f32 %v481, %v671
    %v693 = vadd.f32 %v485, %v675
    %v694 = vadd.f32 %v487, %v677
    %v696 = vlaneseq
    %v697 = vshrl.u32 %v696, 7
    %v698 = vsub.s32 0, %v697
    %v699 = vrot.slane %v111, %v698
    %v700 = vlaneseq
    %v701 = vshrl.u32 %v700, 7
    %v702 = vsub.s32 1, %v701
    %v703 = vrot.slane %v111, %v702
    %v706 = vadd.f32 %v681, %v699
    %v707 = vadd.f32 %v682, %v703
    %v708 = vadd.f32 %v683, %v699
    %v709 = vadd.f32 %v684, %v703
    %v710 = vadd.f32 %v685, %v699
    %v711 = vadd.f32 %v686, %v703
    %v712 = vadd.f32 %v687, %v699
    %v713 = vadd.f32 %v688, %v703
    %v714 = vadd.f32 %v689, %v699
    %v715 = vadd.f32 %v690, %v703
    %v716 = vadd.f32 %v691, %v699
    %v717 = vadd.f32 %v692, %v703
    %v718 = vadd.f32 %v693, %v699
    %v719 = vadd.f32 %v694, %v703
    %v720 = vmax.f32 %v706, 0.0
    %v721 = vmax.f32 %v707, 0.0
    %v722 = vmax.f32 %v708, 0.0
    %v723 = vmax.f32 %v709, 0.0
    %v724 = vmax.f32 %v710, 0.0
    %v725 = vmax.f32 %v711, 0.0
    %v726 = vmax.f32 %v712, 0.0
    %v727 = vmax.f32 %v713, 0.0
    %v728 = vmax.f32 %v714, 0.0
    %v729 = vmax.f32 %v715, 0.0
    %v730 = vmax.f32 %v716, 0.0
    %v731 = vmax.f32 %v717, 0.0
    %v732 = vmax.f32 %v718, 0.0
    %v733 = vmax.f32 %v719, 0.0
    %v741 = vunpack.c.l.b16 %v103
    %v742 = vunpack.c.l.b16 %v104
    %v743 = vunpack.c.l.b16 %v105
    %v744 = vunpack.c.l.b16 %v106
    %v745 = vunpack.c.l.b16 %v107
    %v746 = vunpack.c.l.b16 %v108
    %v747 = vunpack.c.l.b16 %v109
    %v748 = vpack.c.b16 %v742, %v741
    %v749 = vpack.c.b16 %v744, %v743
    %v750 = vpack.c.b16 %v746, %v745
    %v751 = vpack.c.b16 %v747, %v747
    %756 = vmatprep.subr.bf16.mxu0 %v216
    %757 = vmatpush1.bf16.msra.mxu0 %v215
    %758 = vmatprep.subr.bf16.mxu0 %v218
    %759 = vmatpush1.bf16.msra.mxu0 %v217
    %760 = vmatprep.subr.bf16.mxu0 %v220
    %761 = vmatpush1.bf16.msra.mxu0 %v219
    %762 = vmatprep.subr.bf16.mxu0 %v222
    %763 = vmatpush1.bf16.msra.mxu0 %v221
    %764 = vmatprep.subr.bf16.mxu0 %v224
    %765 = vmatpush1.bf16.msra.mxu0 %v223
    %766 = vmatprep.subr.bf16.mxu0 %v226
    %767 = vmatpush1.bf16.msra.mxu0 %v225
    %768 = vmatprep.subr.bf16.mxu0 %v228
    %769 = vmatpush1.bf16.msra.mxu0 %v227
    %770 = vmatprep.subr.bf16.mxu0 %v230
    %771 = vmatpush1.bf16.msra.mxu0 %v229
    %772 = vmatprep.subr.bf16.mxu0 0
    %773 = vmatpush1.bf16.msra.mxu0 0
    %774 = vmatprep.subr.bf16.mxu0 0
    %775 = vmatpush1.bf16.msra.mxu0 0
    %776 = vmatprep.subr.bf16.mxu0 0
    %777 = vmatpush1.bf16.msra.mxu0 0
    %778 = vmatprep.subr.bf16.mxu0 0
    %779 = vmatpush1.bf16.msra.mxu0 0
    %780 = vmatprep.subr.bf16.mxu0 0
    %781 = vmatpush1.bf16.msra.mxu0 0
    %782 = vmatprep.subr.bf16.mxu0 0
    %783 = vmatpush1.bf16.msra.mxu0 0
    %784 = vmatprep.subr.bf16.mxu0 0
    %785 = vmatpush1.bf16.msra.mxu0 0
    %786 = vmatprep.subr.bf16.mxu0 0
    %787 = vmatpush1.bf16.msra.mxu0 0
    %788 = vmatprep.mubr.bf16.mxu0 0
    %789 = vmatmul.mubr.bf16.gmra.mrb[0].mxu0 %v748
    %v790 = vpop.f32.mrb[0].mxu0
    %v791 = vadd.f32 0.0, %v790
    %v792 = vpop.f32.mrb[0].mxu0
    %v793 = vadd.f32 0.0, %v792
    %v794 = vpop.f32.mrb[0].mxu0
    %v795 = vadd.f32 0.0, %v794
    %v796 = vpop.f32.mrb[0].mxu0
    %v797 = vadd.f32 0.0, %v796
    %798 = vmatprep.mubr.bf16.mxu0 0
    %799 = vmatmul.mubr.bf16.gmra.mrb[0].mxu0 %v749
    %v800 = vpop.f32.mrb[0].mxu0
    %v801 = vadd.f32 0.0, %v800
    %v802 = vpop.f32.mrb[0].mxu0
    %v803 = vadd.f32 0.0, %v802
    %v804 = vpop.f32.mrb[0].mxu0
    %v805 = vadd.f32 0.0, %v804
    %v806 = vpop.f32.mrb[0].mxu0
    %v807 = vadd.f32 0.0, %v806
    %808 = vmatprep.mubr.bf16.mxu0 0
    %809 = vmatmul.mubr.bf16.gmra.mrb[0].mxu0 %v750
    %v810 = vpop.f32.mrb[0].mxu0
    %v811 = vadd.f32 0.0, %v810
    %v812 = vpop.f32.mrb[0].mxu0
    %v813 = vadd.f32 0.0, %v812
    %v814 = vpop.f32.mrb[0].mxu0
    %v815 = vadd.f32 0.0, %v814
    %v816 = vpop.f32.mrb[0].mxu0
    %v817 = vadd.f32 0.0, %v816
    %818 = vmatprep.mubr.bf16.mxu0 0
    %819 = vmatmul.mubr.bf16.gmra.mrb[0].mxu0 %v751
    %v820 = vpop.f32.mrb[0].mxu0
    %v821 = vadd.f32 0.0, %v820
    %v822 = vpop.f32.mrb[0].mxu0
    %v823 = vadd.f32 0.0, %v822
    %v824 = vpop.f32.mrb[0].mxu0
    %v825 = vpop.f32.mrb[0].mxu0
    %826 = vdwg.mxu0
    %827 = vmatprep.subr.bf16.mxu0 %v389
    %828 = vmatpush1.bf16.msra.mxu0 %v388
    %829 = vmatprep.subr.bf16.mxu0 %v391
    %830 = vmatpush1.bf16.msra.mxu0 %v390
    %831 = vmatprep.subr.bf16.mxu0 %v393
    %832 = vmatpush1.bf16.msra.mxu0 %v392
    %833 = vmatprep.subr.bf16.mxu0 %v395
    %834 = vmatpush1.bf16.msra.mxu0 %v394
    %835 = vmatprep.subr.bf16.mxu0 %v397
    %836 = vmatpush1.bf16.msra.mxu0 %v396
    %837 = vmatprep.subr.bf16.mxu0 %v399
    %838 = vmatpush1.bf16.msra.mxu0 %v398
    %839 = vmatprep.subr.bf16.mxu0 %v401
    %840 = vmatpush1.bf16.msra.mxu0 %v400
    %841 = vmatprep.subr.bf16.mxu0 %v403
    %842 = vmatpush1.bf16.msra.mxu0 %v402
    %843 = vmatprep.subr.bf16.mxu0 0
    %844 = vmatpush1.bf16.msra.mxu0 0
    %845 = vmatprep.subr.bf16.mxu0 0
    %846 = vmatpush1.bf16.msra.mxu0 0
    %847 = vmatprep.subr.bf16.mxu0 0
    %848 = vmatpush1.bf16.msra.mxu0 0
    %849 = vmatprep.subr.bf16.mxu0 0
    %850 = vmatpush1.bf16.msra.mxu0 0
    %851 = vmatprep.subr.bf16.mxu0 0
    %852 = vmatpush1.bf16.msra.mxu0 0
    %853 = vmatprep.subr.bf16.mxu0 0
    %854 = vmatpush1.bf16.msra.mxu0 0
    %855 = vmatprep.subr.bf16.mxu0 0
    %856 = vmatpush1.bf16.msra.mxu0 0
    %857 = vmatprep.subr.bf16.mxu0 0
    %858 = vmatpush1.bf16.msra.mxu0 0
    %859 = vmatprep.mubr.bf16.mxu0 0
    %860 = vmatmul.mubr.bf16.gmra.mrb[0].mxu0 %v522
    %v861 = vpop.f32.mrb[0].mxu0
    %v862 = vadd.f32 %v791, %v861
    %v863 = vpop.f32.mrb[0].mxu0
    %v864 = vadd.f32 %v793, %v863
    %v865 = vpop.f32.mrb[0].mxu0
    %v866 = vadd.f32 %v795, %v865
    %v867 = vpop.f32.mrb[0].mxu0
    %v868 = vadd.f32 %v797, %v867
    %869 = vmatprep.mubr.bf16.mxu0 0
    %870 = vmatmul.mubr.bf16.gmra.mrb[0].mxu0 %v523
    %v871 = vpop.f32.mrb[0].mxu0
    %v872 = vadd.f32 %v801, %v871
    %v873 = vpop.f32.mrb[0].mxu0
    %v874 = vadd.f32 %v803, %v873
    %v875 = vpop.f32.mrb[0].mxu0
    %v876 = vadd.f32 %v805, %v875
    %v877 = vpop.f32.mrb[0].mxu0
    %v878 = vadd.f32 %v807, %v877
    %879 = vmatprep.mubr.bf16.mxu0 0
    %880 = vmatmul.mubr.bf16.gmra.mrb[0].mxu0 %v524
    %v881 = vpop.f32.mrb[0].mxu0
    %v882 = vadd.f32 %v811, %v881
    %v883 = vpop.f32.mrb[0].mxu0
    %v884 = vadd.f32 %v813, %v883
    %v885 = vpop.f32.mrb[0].mxu0
    %v886 = vadd.f32 %v815, %v885
    %v887 = vpop.f32.mrb[0].mxu0
    %v888 = vadd.f32 %v817, %v887
    %889 = vmatprep.mubr.bf16.mxu0 0
    %890 = vmatmul.mubr.bf16.gmra.mrb[0].mxu0 %v525
    %v891 = vpop.f32.mrb[0].mxu0
    %v892 = vadd.f32 %v821, %v891
    %v893 = vpop.f32.mrb[0].mxu0
    %v894 = vadd.f32 %v823, %v893
    %v895 = vpop.f32.mrb[0].mxu0
    %v896 = vpop.f32.mrb[0].mxu0
    %897 = vdwg.mxu0
    %v899 = vunpack.c.l.b16 %v110
    %v900 = vpack.c.b16 %v327, %v326
    %v901 = vpack.c.b16 %v329, %v328
    %v902 = vpack.c.b16 %v331, %v330
    %v903 = vpack.c.b16 %v899, %v899
    %908 = vmatprep.subr.bf16.mxu0 %v579
    %909 = vmatpush1.bf16.msra.mxu0 %v578
    %910 = vmatprep.subr.bf16.mxu0 %v581
    %911 = vmatpush1.bf16.msra.mxu0 %v580
    %912 = vmatprep.subr.bf16.mxu0 %v583
    %913 = vmatpush1.bf16.msra.mxu0 %v582
    %914 = vmatprep.subr.bf16.mxu0 %v585
    %915 = vmatpush1.bf16.msra.mxu0 %v584
    %916 = vmatprep.subr.bf16.mxu0 %v587
    %917 = vmatpush1.bf16.msra.mxu0 %v586
    %918 = vmatprep.subr.bf16.mxu0 %v589
    %919 = vmatpush1.bf16.msra.mxu0 %v588
    %920 = vmatprep.subr.bf16.mxu0 %v591
    %921 = vmatpush1.bf16.msra.mxu0 %v590
    %922 = vmatprep.subr.bf16.mxu0 %v593
    %923 = vmatpush1.bf16.msra.mxu0 %v592
    %924 = vmatprep.subr.bf16.mxu0 0
    %925 = vmatpush1.bf16.msra.mxu0 0
    %926 = vmatprep.subr.bf16.mxu0 0
    %927 = vmatpush1.bf16.msra.mxu0 0
    %928 = vmatprep.subr.bf16.mxu0 0
    %929 = vmatpush1.bf16.msra.mxu0 0
    %930 = vmatprep.subr.bf16.mxu0 0
    %931 = vmatpush1.bf16.msra.mxu0 0
    %932 = vmatprep.subr.bf16.mxu0 0
    %933 = vmatpush1.bf16.msra.mxu0 0
    %934 = vmatprep.subr.bf16.mxu0 0
    %935 = vmatpush1.bf16.msra.mxu0 0
    %936 = vmatprep.subr.bf16.mxu0 0
    %937 = vmatpush1.bf16.msra.mxu0 0
    %938 = vmatprep.subr.bf16.mxu0 0
    %939 = vmatpush1.bf16.msra.mxu0 0
    %940 = vmatprep.mubr.bf16.mxu0 0
    %941 = vmatmul.mubr.bf16.gmra.mrb[0].mxu0 %v900
    %v942 = vpop.f32.mrb[0].mxu0
    %v943 = vadd.f32 0.0, %v942
    %v944 = vpop.f32.mrb[0].mxu0
    %v945 = vadd.f32 0.0, %v944
    %v946 = vpop.f32.mrb[0].mxu0
    %v947 = vadd.f32 0.0, %v946
    %v948 = vpop.f32.mrb[0].mxu0
    %v949 = vadd.f32 0.0, %v948
    %950 = vmatprep.mubr.bf16.mxu0 0
    %951 = vmatmul.mubr.bf16.gmra.mrb[0].mxu0 %v901
    %v952 = vpop.f32.mrb[0].mxu0
    %v953 = vadd.f32 0.0, %v952
    %v954 = vpop.f32.mrb[0].mxu0
    %v955 = vadd.f32 0.0, %v954
    %v956 = vpop.f32.mrb[0].mxu0
    %v957 = vadd.f32 0.0, %v956
    %v958 = vpop.f32.mrb[0].mxu0
    %v959 = vadd.f32 0.0, %v958
    %960 = vmatprep.mubr.bf16.mxu0 0
    %961 = vmatmul.mubr.bf16.gmra.mrb[0].mxu0 %v902
    %v962 = vpop.f32.mrb[0].mxu0
    %v963 = vadd.f32 0.0, %v962
    %v964 = vpop.f32.mrb[0].mxu0
    %v965 = vadd.f32 0.0, %v964
    %v966 = vpop.f32.mrb[0].mxu0
    %v967 = vadd.f32 0.0, %v966
    %v968 = vpop.f32.mrb[0].mxu0
    %v969 = vadd.f32 0.0, %v968
    %970 = vmatprep.mubr.bf16.mxu0 0
    %971 = vmatmul.mubr.bf16.gmra.mrb[0].mxu0 %v903
    %v972 = vpop.f32.mrb[0].mxu0
    %v973 = vadd.f32 0.0, %v972
    %v974 = vpop.f32.mrb[0].mxu0
    %v975 = vadd.f32 0.0, %v974
    %v976 = vpop.f32.mrb[0].mxu0
    %v977 = vpop.f32.mrb[0].mxu0
    %978 = vdwg.mxu0
    %v979 = vadd.f32 %v862, %v943
    %v980 = vadd.f32 %v864, %v945
    %v981 = vadd.f32 %v866, %v947
    %v982 = vadd.f32 %v868, %v949
    %v983 = vadd.f32 %v872, %v953
    %v984 = vadd.f32 %v874, %v955
    %v985 = vadd.f32 %v876, %v957
    %v986 = vadd.f32 %v878, %v959
    %v987 = vadd.f32 %v882, %v963
    %v988 = vadd.f32 %v884, %v965
    %v989 = vadd.f32 %v886, %v967
    %v990 = vadd.f32 %v888, %v969
    %v991 = vadd.f32 %v892, %v973
    %v992 = vadd.f32 %v894, %v975
    %v993 = vadd.f32 %v979, %v699
    %v994 = vadd.f32 %v980, %v703
    %v995 = vadd.f32 %v981, %v699
    %v996 = vadd.f32 %v982, %v703
    %v997 = vadd.f32 %v983, %v699
    %v998 = vadd.f32 %v984, %v703
    %v999 = vadd.f32 %v985, %v699
    %v1000 = vadd.f32 %v986, %v703
    %v1001 = vadd.f32 %v987, %v699
    %v1002 = vadd.f32 %v988, %v703
    %v1003 = vadd.f32 %v989, %v699
    %v1004 = vadd.f32 %v990, %v703
    %v1005 = vadd.f32 %v991, %v699
    %v1006 = vadd.f32 %v992, %v703
    %v1007 = vmax.f32 %v993, 0.0
    %v1008 = vmax.f32 %v994, 0.0
    %v1009 = vmax.f32 %v995, 0.0
    %v1010 = vmax.f32 %v996, 0.0
    %v1011 = vmax.f32 %v997, 0.0
    %v1012 = vmax.f32 %v998, 0.0
    %v1013 = vmax.f32 %v999, 0.0
    %v1014 = vmax.f32 %v1000, 0.0
    %v1015 = vmax.f32 %v1001, 0.0
    %v1016 = vmax.f32 %v1002, 0.0
    %v1017 = vmax.f32 %v1003, 0.0
    %v1018 = vmax.f32 %v1004, 0.0
    %v1019 = vmax.f32 %v1005, 0.0
    %v1020 = vmax.f32 %v1006, 0.0
    %v1021 = vpack.c.bf16 %v1009, %v1007
    %v1022 = vpack.c.bf16 %v1010, %v1008
    %v1023 = vpack.c.bf16 %v1013, %v1011
    %v1024 = vpack.c.bf16 %v1014, %v1012
    %v1025 = vpack.c.bf16 %v1017, %v1015
    %v1026 = vpack.c.bf16 %v1018, %v1016
    %v1027 = vpack.c.bf16 %v1019, %v1019
    %v1028 = vpack.c.bf16 %v1020, %v1020
    %vm1037 = vcmask 1043456
    %v1038 = vrot.slane %v1021, 4
    %v1039 = vrot.slane %v1022, 4
    %v1040 = vrot.slane %v1023, 4
    %v1041 = vsel %vm1037, %v1038, %v1040
    %v1042 = vrot.slane %v1024, 4
    %v1043 = vsel %vm1037, %v1039, %v1042
    %v1044 = vrot.slane %v1025, 4
    %v1045 = vsel %vm1037, %v1040, %v1044
    %v1046 = vrot.slane %v1026, 4
    %v1047 = vsel %vm1037, %v1042, %v1046
    %v1048 = vrot.slane %v1027, 4
    %v1049 = vsel %vm1037, %v1044, %v1048
    %v1050 = vrot.slane %v1028, 4
    %v1051 = vsel %vm1037, %v1046, %v1050
    %1060 = vst [vmem:[#allocation2] sm:$0xf0] %v1038
    %1061 = vst [vmem:[#allocation2 + $0x8] sm:$0xf0] %v1039
    %1062 = vst [vmem:[#allocation2 + $0x10] sm:$0xff] %v1041
    %1063 = vst [vmem:[#allocation2 + $0x18] sm:$0xff] %v1043
    %1064 = vst [vmem:[#allocation2 + $0x20] sm:$0xff] %v1045
    %1065 = vst [vmem:[#allocation2 + $0x28] sm:$0xff] %v1047
    %1066 = vst [vmem:[#allocation2 + $0x30] sm:$0xff] %v1049
    %1067 = vst [vmem:[#allocation2 + $0x38] sm:$0xff] %v1051
    %v1068 = vpack.c.bf16 %v722, %v720
    %v1069 = vpack.c.bf16 %v723, %v721
    %v1070 = vpack.c.bf16 %v726, %v724
    %v1071 = vpack.c.bf16 %v727, %v725
    %v1072 = vpack.c.bf16 %v730, %v728
    %v1073 = vpack.c.bf16 %v731, %v729
    %v1074 = vpack.c.bf16 %v732, %v732
    %v1075 = vpack.c.bf16 %v733, %v733
    %v1076 = vld [vmem:[#allocation2] sm:$0xff]
    %v1077 = vld [vmem:[#allocation2 + $0x8] sm:$0xff]
    %v1078 = vld [vmem:[#allocation2 + $0x10] sm:$0xff]
    %v1079 = vld [vmem:[#allocation2 + $0x18] sm:$0xff]
    %v1080 = vld [vmem:[#allocation2 + $0x20] sm:$0xff]
    %v1081 = vld [vmem:[#allocation2 + $0x28] sm:$0xff]
    %v1082 = vld [vmem:[#allocation2 + $0x30] sm:$0xf]
    %v1083 = vld [vmem:[#allocation2 + $0x38] sm:$0xf]
    %v1084 = vld [vmem:[#allocation2] sm:$0xf0]
    %v1085 = vld [vmem:[#allocation2 + $0x8] sm:$0xf0]
    %v1086 = vld [vmem:[#allocation2 + $0x30] sm:$0xff]
    %v1087 = vld [vmem:[#allocation2 + $0x38] sm:$0xff]
    %v1088 = vld [vmem:[%s2] sm:$0xff]
    %v1089 = vld [vmem:[%s2 + $0x8] sm:$0xff]
    %v1090 = vld [vmem:[%s2 + $0x10] sm:$0xff]
    %v1091 = vld [vmem:[%s2 + $0x18] sm:$0xff]
    %v1092 = vld [vmem:[%s2 + $0x20] sm:$0xff]
    %v1093 = vld [vmem:[%s2 + $0x28] sm:$0xff]
    %v1094 = vld [vmem:[%s2 + $0x30] sm:$0xff]
    %v1095 = vld [vmem:[%s2 + $0x38] sm:$0xff]
    %v1096 = vld [vmem:[%s2 + $0x40] sm:$0xff]
    %v1097 = vld [vmem:[%s2 + $0x48] sm:$0xff]
    %v1098 = vld [vmem:[%s2 + $0x50] sm:$0xff]
    %v1099 = vld [vmem:[%s2 + $0x58] sm:$0xff]
    %v1100 = vld [vmem:[%s2 + $0x60] sm:$0xff]
    %v1101 = vld [vmem:[%s2 + $0x68] sm:$0xff]
    %v1102 = vld [vmem:[%s2 + $0x70] sm:$0xff]
    %v1103 = vld [vmem:[%s2 + $0x78] sm:$0xff]
    %v1104 = vld [vmem:[%s2 + $0x80] sm:$0xff]
    %v1105 = vld [vmem:[%s2 + $0x88] sm:$0xff]
    %v1106 = vld [vmem:[%s2 + $0x90] sm:$0xff]
    %v1107 = vld [vmem:[%s2 + $0x98] sm:$0xff]
    %v1108 = vld [vmem:[%s2 + $0xa0] sm:$0xff]
    %v1109 = vld [vmem:[%s2 + $0xa8] sm:$0xff]
    %v1110 = vld [vmem:[%s2 + $0xb0] sm:$0xff]
    %v1111 = vld [vmem:[%s2 + $0xb8] sm:$0xff]
    %v1112 = vld [vmem:[%s2 + $0xc0] sm:$0xff]
    %v1113 = vld [vmem:[%s2 + $0xc8] sm:$0xff]
    %v1114 = vld [vmem:[%s2 + $0xd0] sm:$0xff]
    %v1115 = vld [vmem:[%s2 + $0xd8] sm:$0xff]
    %v1116 = vld [vmem:[%s2 + $0xe0] sm:$0xff]
    %v1117 = vld [vmem:[%s2 + $0xe8] sm:$0xff]
    %v1118 = vld [vmem:[%s2 + $0xf0] sm:$0xff]
    %v1119 = vld [vmem:[%s2 + $0xf8] sm:$0xff]
    %s1120 = scalar_lea.vmem %s2, 256
    %v1121 = vld [vmem:[%s1120] sm:$0xff]
    %v1122 = vld [vmem:[%s1120 + $0x8] sm:$0xff]
    %v1123 = vld [vmem:[%s1120 + $0x10] sm:$0xff]
    %v1124 = vld [vmem:[%s1120 + $0x18] sm:$0xff]
    %v1125 = vld [vmem:[%s1120 + $0x20] sm:$0xff]
    %v1126 = vld [vmem:[%s1120 + $0x28] sm:$0xff]
    %v1127 = vld [vmem:[%s1120 + $0x30] sm:$0xff]
    %v1128 = vld [vmem:[%s1120 + $0x38] sm:$0xff]
    %v1129 = vld [vmem:[%s1120 + $0x40] sm:$0xff]
    %v1130 = vld [vmem:[%s1120 + $0x48] sm:$0xff]
    %v1131 = vld [vmem:[%s1120 + $0x50] sm:$0xff]
    %v1132 = vld [vmem:[%s1120 + $0x58] sm:$0xff]
    %v1133 = vld [vmem:[%s1120 + $0x60] sm:$0xff]
    %v1134 = vld [vmem:[%s1120 + $0x68] sm:$0xff]
    %v1135 = vld [vmem:[%s1120 + $0x70] sm:$0xff]
    %v1136 = vld [vmem:[%s1120 + $0x78] sm:$0xff]
    %v1137 = vld [vmem:[%s1120 + $0x80] sm:$0xff]
    %v1138 = vld [vmem:[%s1120 + $0x88] sm:$0xff]
    %v1139 = vld [vmem:[%s1120 + $0x90] sm:$0xff]
    %v1140 = vld [vmem:[%s1120 + $0x98] sm:$0xff]
    %v1141 = vld [vmem:[%s1120 + $0xa0] sm:$0xff]
    %v1142 = vld [vmem:[%s1120 + $0xa8] sm:$0xff]
    %v1143 = vld [vmem:[%s1120 + $0xb0] sm:$0xff]
    %v1144 = vld [vmem:[%s1120 + $0xb8] sm:$0xff]
    %v1145 = vld [vmem:[%s1120 + $0xc0] sm:$0xff]
    %v1146 = vld [vmem:[%s1120 + $0xc8] sm:$0xff]
    %v1147 = vld [vmem:[%s1120 + $0xd0] sm:$0xff]
    %v1148 = vld [vmem:[%s1120 + $0xd8] sm:$0xff]
    %v1149 = vld [vmem:[%s1120 + $0xe0] sm:$0xff]
    %v1150 = vld [vmem:[%s1120 + $0xe8] sm:$0xff]
    %v1151 = vld [vmem:[%s1120 + $0xf0] sm:$0xff]
    %v1152 = vld [vmem:[%s1120 + $0xf8] sm:$0xff]
    %v1185 = vunpack.c.l.b16 %v1121
    %v1186 = vunpack.c.h.b16 %v1121
    %v1187 = vunpack.c.l.b16 %v1122
    %v1188 = vunpack.c.h.b16 %v1122
    %v1189 = vunpack.c.l.b16 %v1123
    %v1190 = vunpack.c.h.b16 %v1123
    %v1191 = vunpack.c.l.b16 %v1124
    %v1192 = vunpack.c.h.b16 %v1124
    %v1193 = vunpack.c.l.b16 %v1125
    %v1194 = vunpack.c.h.b16 %v1125
    %v1195 = vunpack.c.l.b16 %v1126
    %v1196 = vunpack.c.h.b16 %v1126
    %v1197 = vunpack.c.l.b16 %v1127
    %v1198 = vunpack.c.h.b16 %v1127
    %v1199 = vunpack.c.l.b16 %v1128
    %v1200 = vunpack.c.h.b16 %v1128
    %v1201 = vunpack.c.l.b16 %v1129
    %v1202 = vunpack.c.h.b16 %v1129
    %v1203 = vunpack.c.l.b16 %v1130
    %v1204 = vunpack.c.h.b16 %v1130
    %v1205 = vunpack.c.l.b16 %v1131
    %v1206 = vunpack.c.h.b16 %v1131
    %v1207 = vunpack.c.l.b16 %v1132
    %v1208 = vunpack.c.h.b16 %v1132
    %v1209 = vunpack.c.l.b16 %v1133
    %v1210 = vunpack.c.h.b16 %v1133
    %v1211 = vunpack.c.l.b16 %v1134
    %v1212 = vunpack.c.h.b16 %v1134
    %v1213 = vunpack.c.l.b16 %v1135
    %v1214 = vunpack.c.h.b16 %v1135
    %v1215 = vunpack.c.l.b16 %v1136
    %v1216 = vunpack.c.h.b16 %v1136
    %v1217 = vunpack.c.l.b16 %v1137
    %v1218 = vunpack.c.h.b16 %v1137
    %v1219 = vunpack.c.l.b16 %v1138
    %v1220 = vunpack.c.h.b16 %v1138
    %v1221 = vunpack.c.l.b16 %v1139
    %v1222 = vunpack.c.h.b16 %v1139
    %v1223 = vunpack.c.l.b16 %v1140
    %v1224 = vunpack.c.h.b16 %v1140
    %v1225 = vunpack.c.l.b16 %v1141
    %v1226 = vunpack.c.h.b16 %v1141
    %v1227 = vunpack.c.l.b16 %v1142
    %v1228 = vunpack.c.h.b16 %v1142
    %v1229 = vunpack.c.l.b16 %v1143
    %v1230 = vunpack.c.h.b16 %v1143
    %v1231 = vunpack.c.l.b16 %v1144
    %v1232 = vunpack.c.h.b16 %v1144
    %v1233 = vunpack.c.l.b16 %v1145
    %v1234 = vunpack.c.h.b16 %v1145
    %v1235 = vunpack.c.l.b16 %v1146
    %v1236 = vunpack.c.h.b16 %v1146
    %v1237 = vunpack.c.l.b16 %v1147
    %v1238 = vunpack.c.h.b16 %v1147
    %v1239 = vunpack.c.l.b16 %v1148
    %v1240 = vunpack.c.h.b16 %v1148
    %v1241 = vunpack.c.l.b16 %v1149
    %v1242 = vunpack.c.h.b16 %v1149
    %v1243 = vunpack.c.l.b16 %v1150
    %v1244 = vunpack.c.h.b16 %v1150
    %v1245 = vunpack.c.l.b16 %v1151
    %v1246 = vunpack.c.h.b16 %v1151
    %v1247 = vunpack.c.l.b16 %v1152
    %v1248 = vunpack.c.h.b16 %v1152
    %v1249 = vpack.c.b16 %v1187, %v1185
    %v1250 = vpack.c.b16 %v1188, %v1186
    %v1251 = vpack.c.b16 %v1191, %v1189
    %v1252 = vpack.c.b16 %v1192, %v1190
    %v1253 = vpack.c.b16 %v1195, %v1193
    %v1254 = vpack.c.b16 %v1196, %v1194
    %v1255 = vpack.c.b16 %v1199, %v1197
    %v1256 = vpack.c.b16 %v1200, %v1198
    %v1257 = vpack.c.b16 %v1203, %v1201
    %v1258 = vpack.c.b16 %v1204, %v1202
    %v1259 = vpack.c.b16 %v1207, %v1205
    %v1260 = vpack.c.b16 %v1208, %v1206
    %v1261 = vpack.c.b16 %v1211, %v1209
    %v1262 = vpack.c.b16 %v1212, %v1210
    %v1263 = vpack.c.b16 %v1215, %v1213
    %v1264 = vpack.c.b16 %v1216, %v1214
    %v1265 = vpack.c.b16 %v1219, %v1217
    %v1266 = vpack.c.b16 %v1220, %v1218
    %v1267 = vpack.c.b16 %v1223, %v1221
    %v1268 = vpack.c.b16 %v1224, %v1222
    %v1269 = vpack.c.b16 %v1227, %v1225
    %v1270 = vpack.c.b16 %v1228, %v1226
    %v1271 = vpack.c.b16 %v1231, %v1229
    %v1272 = vpack.c.b16 %v1232, %v1230
    %v1273 = vpack.c.b16 %v1235, %v1233
    %v1274 = vpack.c.b16 %v1236, %v1234
    %v1275 = vpack.c.b16 %v1239, %v1237
    %v1276 = vpack.c.b16 %v1240, %v1238
    %v1277 = vpack.c.b16 %v1243, %v1241
    %v1278 = vpack.c.b16 %v1244, %v1242
    %v1279 = vpack.c.b16 %v1247, %v1245
    %v1280 = vpack.c.b16 %v1248, %v1246
    %1313 = vmatprep.subr.bf16.mxu0 %v1250
    %1314 = vmatpush1.bf16.msra.mxu0 %v1249
    %1315 = vmatprep.subr.bf16.mxu0 %v1252
    %1316 = vmatpush1.bf16.msra.mxu0 %v1251
    %1317 = vmatprep.subr.bf16.mxu0 %v1254
    %1318 = vmatpush1.bf16.msra.mxu0 %v1253
    %1319 = vmatprep.subr.bf16.mxu0 %v1256
    %1320 = vmatpush1.bf16.msra.mxu0 %v1255
    %1321 = vmatprep.subr.bf16.mxu0 %v1258
    %1322 = vmatpush1.bf16.msra.mxu0 %v1257
    %1323 = vmatprep.subr.bf16.mxu0 %v1260
    %1324 = vmatpush1.bf16.msra.mxu0 %v1259
    %1325 = vmatprep.subr.bf16.mxu0 %v1262
    %1326 = vmatpush1.bf16.msra.mxu0 %v1261
    %1327 = vmatprep.subr.bf16.mxu0 %v1264
    %1328 = vmatpush1.bf16.msra.mxu0 %v1263
    %1329 = vmatprep.subr.bf16.mxu0 %v1266
    %1330 = vmatpush1.bf16.msra.mxu0 %v1265
    %1331 = vmatprep.subr.bf16.mxu0 %v1268
    %1332 = vmatpush1.bf16.msra.mxu0 %v1267
    %1333 = vmatprep.subr.bf16.mxu0 %v1270
    %1334 = vmatpush1.bf16.msra.mxu0 %v1269
    %1335 = vmatprep.subr.bf16.mxu0 %v1272
    %1336 = vmatpush1.bf16.msra.mxu0 %v1271
    %1337 = vmatprep.subr.bf16.mxu0 %v1274
    %1338 = vmatpush1.bf16.msra.mxu0 %v1273
    %1339 = vmatprep.subr.bf16.mxu0 %v1276
    %1340 = vmatpush1.bf16.msra.mxu0 %v1275
    %1341 = vmatprep.subr.bf16.mxu0 %v1278
    %1342 = vmatpush1.bf16.msra.mxu0 %v1277
    %1343 = vmatprep.subr.bf16.mxu0 %v1280
    %1344 = vmatpush1.bf16.msra.mxu0 %v1279
    %1345 = vmatprep.mubr.bf16.mxu0 %v1069
    %1346 = vmatmul.mubr.bf16.gmra.mrb[0].mxu0 %v1068
    %v1347 = vpop.f32.mrb[0].mxu0
    %v1348 = vadd.f32 0.0, %v1347
    %v1349 = vpop.f32.mrb[0].mxu0
    %v1350 = vadd.f32 0.0, %v1349
    %v1351 = vpop.f32.mrb[0].mxu0
    %v1352 = vadd.f32 0.0, %v1351
    %v1353 = vpop.f32.mrb[0].mxu0
    %v1354 = vadd.f32 0.0, %v1353
    %1355 = vmatprep.mubr.bf16.mxu0 %v1071
    %1356 = vmatmul.mubr.bf16.gmra.mrb[0].mxu0 %v1070
    %v1357 = vpop.f32.mrb[0].mxu0
    %v1358 = vadd.f32 0.0, %v1357
    %v1359 = vpop.f32.mrb[0].mxu0
    %v1360 = vadd.f32 0.0, %v1359
    %v1361 = vpop.f32.mrb[0].mxu0
    %v1362 = vadd.f32 0.0, %v1361
    %v1363 = vpop.f32.mrb[0].mxu0
    %v1364 = vadd.f32 0.0, %v1363
    %1365 = vmatprep.mubr.bf16.mxu0 %v1073
    %1366 = vmatmul.mubr.bf16.gmra.mrb[0].mxu0 %v1072
    %v1367 = vpop.f32.mrb[0].mxu0
    %v1368 = vadd.f32 0.0, %v1367
    %v1369 = vpop.f32.mrb[0].mxu0
    %v1370 = vadd.f32 0.0, %v1369
    %v1371 = vpop.f32.mrb[0].mxu0
    %v1372 = vadd.f32 0.0, %v1371
    %v1373 = vpop.f32.mrb[0].mxu0
    %v1374 = vadd.f32 0.0, %v1373
    %1375 = vmatprep.mubr.bf16.mxu0 %v1075
    %1376 = vmatmul.mubr.bf16.gmra.mrb[0].mxu0 %v1074
    %v1377 = vpop.f32.mrb[0].mxu0
    %v1378 = vadd.f32 0.0, %v1377
    %v1379 = vpop.f32.mrb[0].mxu0
    %v1380 = vadd.f32 0.0, %v1379
    %v1381 = vpop.f32.mrb[0].mxu0
    %v1382 = vpop.f32.mrb[0].mxu0
    %1383 = vdwg.mxu0
    %v1416 = vunpack.c.l.b16 %v1088
    %v1417 = vunpack.c.h.b16 %v1088
    %v1418 = vunpack.c.l.b16 %v1089
    %v1419 = vunpack.c.h.b16 %v1089
    %v1420 = vunpack.c.l.b16 %v1090
    %v1421 = vunpack.c.h.b16 %v1090
    %v1422 = vunpack.c.l.b16 %v1091
    %v1423 = vunpack.c.h.b16 %v1091
    %v1424 = vunpack.c.l.b16 %v1092
    %v1425 = vunpack.c.h.b16 %v1092
    %v1426 = vunpack.c.l.b16 %v1093
    %v1427 = vunpack.c.h.b16 %v1093
    %v1428 = vunpack.c.l.b16 %v1094
    %v1429 = vunpack.c.h.b16 %v1094
    %v1430 = vunpack.c.l.b16 %v1095
    %v1431 = vunpack.c.h.b16 %v1095
    %v1432 = vunpack.c.l.b16 %v1096
    %v1433 = vunpack.c.h.b16 %v1096
    %v1434 = vunpack.c.l.b16 %v1097
    %v1435 = vunpack.c.h.b16 %v1097
    %v1436 = vunpack.c.l.b16 %v1098
    %v1437 = vunpack.c.h.b16 %v1098
    %v1438 = vunpack.c.l.b16 %v1099
    %v1439 = vunpack.c.h.b16 %v1099
    %v1440 = vunpack.c.l.b16 %v1100
    %v1441 = vunpack.c.h.b16 %v1100
    %v1442 = vunpack.c.l.b16 %v1101
    %v1443 = vunpack.c.h.b16 %v1101
    %v1444 = vunpack.c.l.b16 %v1102
    %v1445 = vunpack.c.h.b16 %v1102
    %v1446 = vunpack.c.l.b16 %v1103
    %v1447 = vunpack.c.h.b16 %v1103
    %v1448 = vunpack.c.l.b16 %v1104
    %v1449 = vunpack.c.h.b16 %v1104
    %v1450 = vunpack.c.l.b16 %v1105
    %v1451 = vunpack.c.h.b16 %v1105
    %v1452 = vunpack.c.l.b16 %v1106
    %v1453 = vunpack.c.h.b16 %v1106
    %v1454 = vunpack.c.l.b16 %v1107
    %v1455 = vunpack.c.h.b16 %v1107
    %v1456 = vunpack.c.l.b16 %v1108
    %v1457 = vunpack.c.h.b16 %v1108
    %v1458 = vunpack.c.l.b16 %v1109
    %v1459 = vunpack.c.h.b16 %v1109
    %v1460 = vunpack.c.l.b16 %v1110
    %v1461 = vunpack.c.h.b16 %v1110
    %v1462 = vunpack.c.l.b16 %v1111
    %v1463 = vunpack.c.h.b16 %v1111
    %v1464 = vunpack.c.l.b16 %v1112
    %v1465 = vunpack.c.h.b16 %v1112
    %v1466 = vunpack.c.l.b16 %v1113
    %v1467 = vunpack.c.h.b16 %v1113
    %v1468 = vunpack.c.l.b16 %v1114
    %v1469 = vunpack.c.h.b16 %v1114
    %v1470 = vunpack.c.l.b16 %v1115
    %v1471 = vunpack.c.h.b16 %v1115
    %v1472 = vunpack.c.l.b16 %v1116
    %v1473 = vunpack.c.h.b16 %v1116
    %v1474 = vunpack.c.l.b16 %v1117
    %v1475 = vunpack.c.h.b16 %v1117
    %v1476 = vunpack.c.l.b16 %v1118
    %v1477 = vunpack.c.h.b16 %v1118
    %v1478 = vunpack.c.l.b16 %v1119
    %v1479 = vunpack.c.h.b16 %v1119
    %v1480 = vpack.c.b16 %v1418, %v1416
    %v1481 = vpack.c.b16 %v1419, %v1417
    %v1482 = vpack.c.b16 %v1422, %v1420
    %v1483 = vpack.c.b16 %v1423, %v1421
    %v1484 = vpack.c.b16 %v1426, %v1424
    %v1485 = vpack.c.b16 %v1427, %v1425
    %v1486 = vpack.c.b16 %v1430, %v1428
    %v1487 = vpack.c.b16 %v1431, %v1429
    %v1488 = vpack.c.b16 %v1434, %v1432
    %v1489 = vpack.c.b16 %v1435, %v1433
    %v1490 = vpack.c.b16 %v1438, %v1436
    %v1491 = vpack.c.b16 %v1439, %v1437
    %v1492 = vpack.c.b16 %v1442, %v1440
    %v1493 = vpack.c.b16 %v1443, %v1441
    %v1494 = vpack.c.b16 %v1446, %v1444
    %v1495 = vpack.c.b16 %v1447, %v1445
    %v1496 = vpack.c.b16 %v1450, %v1448
    %v1497 = vpack.c.b16 %v1451, %v1449
    %v1498 = vpack.c.b16 %v1454, %v1452
    %v1499 = vpack.c.b16 %v1455, %v1453
    %v1500 = vpack.c.b16 %v1458, %v1456
    %v1501 = vpack.c.b16 %v1459, %v1457
    %v1502 = vpack.c.b16 %v1462, %v1460
    %v1503 = vpack.c.b16 %v1463, %v1461
    %v1504 = vpack.c.b16 %v1466, %v1464
    %v1505 = vpack.c.b16 %v1467, %v1465
    %v1506 = vpack.c.b16 %v1470, %v1468
    %v1507 = vpack.c.b16 %v1471, %v1469
    %v1508 = vpack.c.b16 %v1474, %v1472
    %v1509 = vpack.c.b16 %v1475, %v1473
    %v1510 = vpack.c.b16 %v1478, %v1476
    %v1511 = vpack.c.b16 %v1479, %v1477
    %1544 = vmatprep.subr.bf16.mxu0 %v1481
    %1545 = vmatpush1.bf16.msra.mxu0 %v1480
    %1546 = vmatprep.subr.bf16.mxu0 %v1483
    %1547 = vmatpush1.bf16.msra.mxu0 %v1482
    %1548 = vmatprep.subr.bf16.mxu0 %v1485
    %1549 = vmatpush1.bf16.msra.mxu0 %v1484
    %1550 = vmatprep.subr.bf16.mxu0 %v1487
    %1551 = vmatpush1.bf16.msra.mxu0 %v1486
    %1552 = vmatprep.subr.bf16.mxu0 %v1489
    %1553 = vmatpush1.bf16.msra.mxu0 %v1488
    %1554 = vmatprep.subr.bf16.mxu0 %v1491
    %1555 = vmatpush1.bf16.msra.mxu0 %v1490
    %1556 = vmatprep.subr.bf16.mxu0 %v1493
    %1557 = vmatpush1.bf16.msra.mxu0 %v1492
    %1558 = vmatprep.subr.bf16.mxu0 %v1495
    %1559 = vmatpush1.bf16.msra.mxu0 %v1494
    %1560 = vmatprep.subr.bf16.mxu0 %v1497
    %1561 = vmatpush1.bf16.msra.mxu0 %v1496
    %1562 = vmatprep.subr.bf16.mxu0 %v1499
    %1563 = vmatpush1.bf16.msra.mxu0 %v1498
    %1564 = vmatprep.subr.bf16.mxu0 %v1501
    %1565 = vmatpush1.bf16.msra.mxu0 %v1500
    %1566 = vmatprep.subr.bf16.mxu0 %v1503
    %1567 = vmatpush1.bf16.msra.mxu0 %v1502
    %1568 = vmatprep.subr.bf16.mxu0 %v1505
    %1569 = vmatpush1.bf16.msra.mxu0 %v1504
    %1570 = vmatprep.subr.bf16.mxu0 %v1507
    %1571 = vmatpush1.bf16.msra.mxu0 %v1506
    %1572 = vmatprep.subr.bf16.mxu0 %v1509
    %1573 = vmatpush1.bf16.msra.mxu0 %v1508
    %1574 = vmatprep.subr.bf16.mxu0 %v1511
    %1575 = vmatpush1.bf16.msra.mxu0 %v1510
    %1576 = vmatprep.mubr.bf16.mxu0 %v1077
    %1577 = vmatmul.mubr.bf16.gmra.mrb[0].mxu0 %v1076
    %v1578 = vpop.f32.mrb[0].mxu0
    %v1579 = vadd.f32 %v1348, %v1578
    %v1580 = vpop.f32.mrb[0].mxu0
    %v1581 = vadd.f32 %v1350, %v1580
    %v1582 = vpop.f32.mrb[0].mxu0
    %v1583 = vadd.f32 %v1352, %v1582
    %v1584 = vpop.f32.mrb[0].mxu0
    %v1585 = vadd.f32 %v1354, %v1584
    %1586 = vmatprep.mubr.bf16.mxu0 %v1079
    %1587 = vmatmul.mubr.bf16.gmra.mrb[0].mxu0 %v1078
    %v1588 = vpop.f32.mrb[0].mxu0
    %v1589 = vadd.f32 %v1358, %v1588
    %v1590 = vpop.f32.mrb[0].mxu0
    %v1591 = vadd.f32 %v1360, %v1590
    %v1592 = vpop.f32.mrb[0].mxu0
    %v1593 = vadd.f32 %v1362, %v1592
    %v1594 = vpop.f32.mrb[0].mxu0
    %v1595 = vadd.f32 %v1364, %v1594
    %1596 = vmatprep.mubr.bf16.mxu0 %v1081
    %1597 = vmatmul.mubr.bf16.gmra.mrb[0].mxu0 %v1080
    %v1598 = vpop.f32.mrb[0].mxu0
    %v1599 = vadd.f32 %v1368, %v1598
    %v1600 = vpop.f32.mrb[0].mxu0
    %v1601 = vadd.f32 %v1370, %v1600
    %v1602 = vpop.f32.mrb[0].mxu0
    %v1603 = vadd.f32 %v1372, %v1602
    %v1604 = vpop.f32.mrb[0].mxu0
    %v1605 = vadd.f32 %v1374, %v1604
    %1606 = vmatprep.mubr.bf16.mxu0 %v1083
    %1607 = vmatmul.mubr.bf16.gmra.mrb[0].mxu0 %v1082
    %v1608 = vpop.f32.mrb[0].mxu0
    %v1609 = vadd.f32 %v1378, %v1608
    %v1610 = vpop.f32.mrb[0].mxu0
    %v1611 = vadd.f32 %v1380, %v1610
    %v1612 = vpop.f32.mrb[0].mxu0
    %v1613 = vpop.f32.mrb[0].mxu0
    %1614 = vdwg.mxu0
    %s1615 = scalar_lea.vmem %s2, 512
    %v1616 = vld [vmem:[%s1615] sm:$0xff]
    %v1617 = vld [vmem:[%s1615 + $0x8] sm:$0xff]
    %v1618 = vld [vmem:[%s1615 + $0x10] sm:$0xff]
    %v1619 = vld [vmem:[%s1615 + $0x18] sm:$0xff]
    %v1620 = vld [vmem:[%s1615 + $0x20] sm:$0xff]
    %v1621 = vld [vmem:[%s1615 + $0x28] sm:$0xff]
    %v1622 = vld [vmem:[%s1615 + $0x30] sm:$0xff]
    %v1623 = vld [vmem:[%s1615 + $0x38] sm:$0xff]
    %v1624 = vld [vmem:[%s1615 + $0x40] sm:$0xff]
    %v1625 = vld [vmem:[%s1615 + $0x48] sm:$0xff]
    %v1626 = vld [vmem:[%s1615 + $0x50] sm:$0xff]
    %v1627 = vld [vmem:[%s1615 + $0x58] sm:$0xff]
    %v1628 = vld [vmem:[%s1615 + $0x60] sm:$0xff]
    %v1629 = vld [vmem:[%s1615 + $0x68] sm:$0xff]
    %v1630 = vld [vmem:[%s1615 + $0x70] sm:$0xff]
    %v1631 = vld [vmem:[%s1615 + $0x78] sm:$0xff]
    %v1632 = vld [vmem:[%s1615 + $0x80] sm:$0xff]
    %v1633 = vld [vmem:[%s1615 + $0x88] sm:$0xff]
    %v1634 = vld [vmem:[%s1615 + $0x90] sm:$0xff]
    %v1635 = vld [vmem:[%s1615 + $0x98] sm:$0xff]
    %v1636 = vld [vmem:[%s1615 + $0xa0] sm:$0xff]
    %v1637 = vld [vmem:[%s1615 + $0xa8] sm:$0xff]
    %v1638 = vld [vmem:[%s1615 + $0xb0] sm:$0xff]
    %v1639 = vld [vmem:[%s1615 + $0xb8] sm:$0xff]
    %v1640 = vld [vmem:[%s1615 + $0xc0] sm:$0xff]
    %v1641 = vld [vmem:[%s1615 + $0xc8] sm:$0xff]
    %v1642 = vld [vmem:[%s1615 + $0xd0] sm:$0xff]
    %v1643 = vld [vmem:[%s1615 + $0xd8] sm:$0xff]
    %v1644 = vld [vmem:[%s1615 + $0xe0] sm:$0xff]
    %v1645 = vld [vmem:[%s1615 + $0xe8] sm:$0xff]
    %v1646 = vld [vmem:[%s1615 + $0xf0] sm:$0xff]
    %v1647 = vld [vmem:[%s1615 + $0xf8] sm:$0xff]
    %v1656 = vrot.slane %v1084, 4
    %v1657 = vrot.slane %v1078, 4
    %v1658 = vsel %vm1037, %v1656, %v1657
    %v1659 = vrot.slane %v1085, 4
    %v1660 = vrot.slane %v1079, 4
    %v1661 = vsel %vm1037, %v1659, %v1660
    %v1662 = vrot.slane %v1080, 4
    %v1663 = vsel %vm1037, %v1657, %v1662
    %v1664 = vrot.slane %v1081, 4
    %v1665 = vsel %vm1037, %v1660, %v1664
    %v1666 = vrot.slane %v1086, 4
    %v1667 = vsel %vm1037, %v1662, %v1666
    %v1668 = vrot.slane %v1087, 4
    %v1669 = vsel %vm1037, %v1664, %v1668
    %v1710 = vunpack.c.l.b16 %v1616
    %v1711 = vunpack.c.h.b16 %v1616
    %v1712 = vunpack.c.l.b16 %v1617
    %v1713 = vunpack.c.h.b16 %v1617
    %v1714 = vunpack.c.l.b16 %v1618
    %v1715 = vunpack.c.h.b16 %v1618
    %v1716 = vunpack.c.l.b16 %v1619
    %v1717 = vunpack.c.h.b16 %v1619
    %v1718 = vunpack.c.l.b16 %v1620
    %v1719 = vunpack.c.h.b16 %v1620
    %v1720 = vunpack.c.l.b16 %v1621
    %v1721 = vunpack.c.h.b16 %v1621
    %v1722 = vunpack.c.l.b16 %v1622
    %v1723 = vunpack.c.h.b16 %v1622
    %v1724 = vunpack.c.l.b16 %v1623
    %v1725 = vunpack.c.h.b16 %v1623
    %v1726 = vunpack.c.l.b16 %v1624
    %v1727 = vunpack.c.h.b16 %v1624
    %v1728 = vunpack.c.l.b16 %v1625
    %v1729 = vunpack.c.h.b16 %v1625
    %v1730 = vunpack.c.l.b16 %v1626
    %v1731 = vunpack.c.h.b16 %v1626
    %v1732 = vunpack.c.l.b16 %v1627
    %v1733 = vunpack.c.h.b16 %v1627
    %v1734 = vunpack.c.l.b16 %v1628
    %v1735 = vunpack.c.h.b16 %v1628
    %v1736 = vunpack.c.l.b16 %v1629
    %v1737 = vunpack.c.h.b16 %v1629
    %v1738 = vunpack.c.l.b16 %v1630
    %v1739 = vunpack.c.h.b16 %v1630
    %v1740 = vunpack.c.l.b16 %v1631
    %v1741 = vunpack.c.h.b16 %v1631
    %v1742 = vunpack.c.l.b16 %v1632
    %v1743 = vunpack.c.h.b16 %v1632
    %v1744 = vunpack.c.l.b16 %v1633
    %v1745 = vunpack.c.h.b16 %v1633
    %v1746 = vunpack.c.l.b16 %v1634
    %v1747 = vunpack.c.h.b16 %v1634
    %v1748 = vunpack.c.l.b16 %v1635
    %v1749 = vunpack.c.h.b16 %v1635
    %v1750 = vunpack.c.l.b16 %v1636
    %v1751 = vunpack.c.h.b16 %v1636
    %v1752 = vunpack.c.l.b16 %v1637
    %v1753 = vunpack.c.h.b16 %v1637
    %v1754 = vunpack.c.l.b16 %v1638
    %v1755 = vunpack.c.h.b16 %v1638
    %v1756 = vunpack.c.l.b16 %v1639
    %v1757 = vunpack.c.h.b16 %v1639
    %v1758 = vunpack.c.l.b16 %v1640
    %v1759 = vunpack.c.h.b16 %v1640
    %v1760 = vunpack.c.l.b16 %v1641
    %v1761 = vunpack.c.h.b16 %v1641
    %v1762 = vunpack.c.l.b16 %v1642
    %v1763 = vunpack.c.h.b16 %v1642
    %v1764 = vunpack.c.l.b16 %v1643
    %v1765 = vunpack.c.h.b16 %v1643
    %v1766 = vunpack.c.l.b16 %v1644
    %v1767 = vunpack.c.h.b16 %v1644
    %v1768 = vunpack.c.l.b16 %v1645
    %v1769 = vunpack.c.h.b16 %v1645
    %v1770 = vunpack.c.l.b16 %v1646
    %v1771 = vunpack.c.h.b16 %v1646
    %v1772 = vunpack.c.l.b16 %v1647
    %v1773 = vunpack.c.h.b16 %v1647
    %v1774 = vpack.c.b16 %v1712, %v1710
    %v1775 = vpack.c.b16 %v1713, %v1711
    %v1776 = vpack.c.b16 %v1716, %v1714
    %v1777 = vpack.c.b16 %v1717, %v1715
    %v1778 = vpack.c.b16 %v1720, %v1718
    %v1779 = vpack.c.b16 %v1721, %v1719
    %v1780 = vpack.c.b16 %v1724, %v1722
    %v1781 = vpack.c.b16 %v1725, %v1723
    %v1782 = vpack.c.b16 %v1728, %v1726
    %v1783 = vpack.c.b16 %v1729, %v1727
    %v1784 = vpack.c.b16 %v1732, %v1730
    %v1785 = vpack.c.b16 %v1733, %v1731
    %v1786 = vpack.c.b16 %v1736, %v1734
    %v1787 = vpack.c.b16 %v1737, %v1735
    %v1788 = vpack.c.b16 %v1740, %v1738
    %v1789 = vpack.c.b16 %v1741, %v1739
    %v1790 = vpack.c.b16 %v1744, %v1742
    %v1791 = vpack.c.b16 %v1745, %v1743
    %v1792 = vpack.c.b16 %v1748, %v1746
    %v1793 = vpack.c.b16 %v1749, %v1747
    %v1794 = vpack.c.b16 %v1752, %v1750
    %v1795 = vpack.c.b16 %v1753, %v1751
    %v1796 = vpack.c.b16 %v1756, %v1754
    %v1797 = vpack.c.b16 %v1757, %v1755
    %v1798 = vpack.c.b16 %v1760, %v1758
    %v1799 = vpack.c.b16 %v1761, %v1759
    %v1800 = vpack.c.b16 %v1764, %v1762
    %v1801 = vpack.c.b16 %v1765, %v1763
    %v1802 = vpack.c.b16 %v1768, %v1766
    %v1803 = vpack.c.b16 %v1769, %v1767
    %v1804 = vpack.c.b16 %v1772, %v1770
    %v1805 = vpack.c.b16 %v1773, %v1771
    %1838 = vmatprep.subr.bf16.mxu0 %v1775
    %1839 = vmatpush1.bf16.msra.mxu0 %v1774
    %1840 = vmatprep.subr.bf16.mxu0 %v1777
    %1841 = vmatpush1.bf16.msra.mxu0 %v1776
    %1842 = vmatprep.subr.bf16.mxu0 %v1779
    %1843 = vmatpush1.bf16.msra.mxu0 %v1778
    %1844 = vmatprep.subr.bf16.mxu0 %v1781
    %1845 = vmatpush1.bf16.msra.mxu0 %v1780
    %1846 = vmatprep.subr.bf16.mxu0 %v1783
    %1847 = vmatpush1.bf16.msra.mxu0 %v1782
    %1848 = vmatprep.subr.bf16.mxu0 %v1785
    %1849 = vmatpush1.bf16.msra.mxu0 %v1784
    %1850 = vmatprep.subr.bf16.mxu0 %v1787
    %1851 = vmatpush1.bf16.msra.mxu0 %v1786
    %1852 = vmatprep.subr.bf16.mxu0 %v1789
    %1853 = vmatpush1.bf16.msra.mxu0 %v1788
    %1854 = vmatprep.subr.bf16.mxu0 %v1791
    %1855 = vmatpush1.bf16.msra.mxu0 %v1790
    %1856 = vmatprep.subr.bf16.mxu0 %v1793
    %1857 = vmatpush1.bf16.msra.mxu0 %v1792
    %1858 = vmatprep.subr.bf16.mxu0 %v1795
    %1859 = vmatpush1.bf16.msra.mxu0 %v1794
    %1860 = vmatprep.subr.bf16.mxu0 %v1797
    %1861 = vmatpush1.bf16.msra.mxu0 %v1796
    %1862 = vmatprep.subr.bf16.mxu0 %v1799
    %1863 = vmatpush1.bf16.msra.mxu0 %v1798
    %1864 = vmatprep.subr.bf16.mxu0 %v1801
    %1865 = vmatpush1.bf16.msra.mxu0 %v1800
    %1866 = vmatprep.subr.bf16.mxu0 %v1803
    %1867 = vmatpush1.bf16.msra.mxu0 %v1802
    %1868 = vmatprep.subr.bf16.mxu0 %v1805
    %1869 = vmatpush1.bf16.msra.mxu0 %v1804
    %1870 = vmatprep.mubr.bf16.mxu0 %v1661
    %1871 = vmatmul.mubr.bf16.gmra.mrb[0].mxu0 %v1658
    %v1872 = vpop.f32.mrb[0].mxu0
    %v1873 = vadd.f32 0.0, %v1872
    %v1874 = vpop.f32.mrb[0].mxu0
    %v1875 = vadd.f32 0.0, %v1874
    %v1876 = vpop.f32.mrb[0].mxu0
    %v1877 = vadd.f32 0.0, %v1876
    %v1878 = vpop.f32.mrb[0].mxu0
    %v1879 = vadd.f32 0.0, %v1878
    %1880 = vmatprep.mubr.bf16.mxu0 %v1665
    %1881 = vmatmul.mubr.bf16.gmra.mrb[0].mxu0 %v1663
    %v1882 = vpop.f32.mrb[0].mxu0
    %v1883 = vadd.f32 0.0, %v1882
    %v1884 = vpop.f32.mrb[0].mxu0
    %v1885 = vadd.f32 0.0, %v1884
    %v1886 = vpop.f32.mrb[0].mxu0
    %v1887 = vadd.f32 0.0, %v1886
    %v1888 = vpop.f32.mrb[0].mxu0
    %v1889 = vadd.f32 0.0, %v1888
    %1890 = vmatprep.mubr.bf16.mxu0 %v1669
    %1891 = vmatmul.mubr.bf16.gmra.mrb[0].mxu0 %v1667
    %v1892 = vpop.f32.mrb[0].mxu0
    %v1893 = vadd.f32 0.0, %v1892
    %v1894 = vpop.f32.mrb[0].mxu0
    %v1895 = vadd.f32 0.0, %v1894
    %v1896 = vpop.f32.mrb[0].mxu0
    %v1897 = vadd.f32 0.0, %v1896
    %v1898 = vpop.f32.mrb[0].mxu0
    %v1899 = vadd.f32 0.0, %v1898
    %1900 = vmatprep.mubr.bf16.mxu0 %v1668
    %1901 = vmatmul.mubr.bf16.gmra.mrb[0].mxu0 %v1666
    %v1902 = vpop.f32.mrb[0].mxu0
    %v1903 = vadd.f32 0.0, %v1902
    %v1904 = vpop.f32.mrb[0].mxu0
    %v1905 = vadd.f32 0.0, %v1904
    %v1906 = vpop.f32.mrb[0].mxu0
    %v1907 = vpop.f32.mrb[0].mxu0
    %1908 = vdwg.mxu0
    %v1909 = vadd.f32 %v1579, %v1873
    %v1910 = vadd.f32 %v1581, %v1875
    %v1911 = vadd.f32 %v1583, %v1877
    %v1912 = vadd.f32 %v1585, %v1879
    %v1913 = vadd.f32 %v1589, %v1883
    %v1914 = vadd.f32 %v1591, %v1885
    %v1915 = vadd.f32 %v1593, %v1887
    %v1916 = vadd.f32 %v1595, %v1889
    %v1917 = vadd.f32 %v1599, %v1893
    %v1918 = vadd.f32 %v1601, %v1895
    %v1919 = vadd.f32 %v1603, %v1897
    %v1920 = vadd.f32 %v1605, %v1899
    %v1921 = vadd.f32 %v1609, %v1903
    %v1922 = vadd.f32 %v1611, %v1905
    %v1923 = vld [vmem:[%s8] sm:$0x3]
    %v1925 = vlaneseq
    %v1926 = vshrl.u32 %v1925, 7
    %v1927 = vsub.s32 0, %v1926
    %v1928 = vrot.slane %v1923, %v1927
    %v1929 = vlaneseq
    %v1930 = vshrl.u32 %v1929, 7
    %v1931 = vsub.s32 1, %v1930
    %v1932 = vrot.slane %v1923, %v1931
    %v1935 = vadd.f32 %v1909, %v1928
    %v1936 = vadd.f32 %v1910, %v1932
    %v1937 = vadd.f32 %v1911, %v1928
    %v1938 = vadd.f32 %v1912, %v1932
    %v1939 = vadd.f32 %v1913, %v1928
    %v1940 = vadd.f32 %v1914, %v1932
    %v1941 = vadd.f32 %v1915, %v1928
    %v1942 = vadd.f32 %v1916, %v1932
    %v1943 = vadd.f32 %v1917, %v1928
    %v1944 = vadd.f32 %v1918, %v1932
    %v1945 = vadd.f32 %v1919, %v1928
    %v1946 = vadd.f32 %v1920, %v1932
    %v1947 = vadd.f32 %v1921, %v1928
    %v1948 = vadd.f32 %v1922, %v1932
    %v1949 = vmax.f32 %v1935, 0.0
    %v1950 = vmax.f32 %v1936, 0.0
    %v1951 = vmax.f32 %v1937, 0.0
    %v1952 = vmax.f32 %v1938, 0.0
    %v1953 = vmax.f32 %v1939, 0.0
    %v1954 = vmax.f32 %v1940, 0.0
    %v1955 = vmax.f32 %v1941, 0.0
    %v1956 = vmax.f32 %v1942, 0.0
    %v1957 = vmax.f32 %v1943, 0.0
    %v1958 = vmax.f32 %v1944, 0.0
    %v1959 = vmax.f32 %v1945, 0.0
    %v1960 = vmax.f32 %v1946, 0.0
    %v1961 = vmax.f32 %v1947, 0.0
    %v1962 = vmax.f32 %v1948, 0.0
    %v1963 = vpack.c.bf16 %v1949, %v1949
    %v1964 = vpack.c.bf16 %v1950, %v1950
    %v1967 = vunpack.c.l.b16 %v1963
    %v1968 = vunpack.c.l.b16 %v1964
    %v1969 = vpack.c.b16 %v1968, %v1967
    %1971 = vst [vmem:[#allocation5] sm:$0xff] %v1969
    %v1972 = vpack.c.bf16 %v1951, %v1951
    %v1973 = vpack.c.bf16 %v1952, %v1952
    %v1976 = vunpack.c.l.b16 %v1972
    %v1977 = vunpack.c.l.b16 %v1973
    %v1978 = vpack.c.b16 %v1977, %v1976
    %1980 = vst [vmem:[#allocation5 + $0x8] sm:$0xff] %v1978
    %v1981 = vpack.c.bf16 %v1953, %v1953
    %v1982 = vpack.c.bf16 %v1954, %v1954
    %v1985 = vunpack.c.l.b16 %v1981
    %v1986 = vunpack.c.l.b16 %v1982
    %v1987 = vpack.c.b16 %v1986, %v1985
    %1989 = vst [vmem:[#allocation5 + $0x10] sm:$0xff] %v1987
    %v1990 = vpack.c.bf16 %v1955, %v1955
    %v1991 = vpack.c.bf16 %v1956, %v1956
    %v1994 = vunpack.c.l.b16 %v1990
    %v1995 = vunpack.c.l.b16 %v1991
    %v1996 = vpack.c.b16 %v1995, %v1994
    %1998 = vst [vmem:[#allocation5 + $0x18] sm:$0xff] %v1996
    %v1999 = vpack.c.bf16 %v1957, %v1957
    %v2000 = vpack.c.bf16 %v1958, %v1958
    %v2003 = vunpack.c.l.b16 %v1999
    %v2004 = vunpack.c.l.b16 %v2000
    %v2005 = vpack.c.b16 %v2004, %v2003
    %2007 = vst [vmem:[#allocation5 + $0x20] sm:$0xff] %v2005
    %v2008 = vpack.c.bf16 %v1959, %v1959
    %v2009 = vpack.c.bf16 %v1960, %v1960
    %v2012 = vunpack.c.l.b16 %v2008
    %v2013 = vunpack.c.l.b16 %v2009
    %v2014 = vpack.c.b16 %v2013, %v2012
    %2016 = vst [vmem:[#allocation5 + $0x28] sm:$0xff] %v2014
    %v2017 = vpack.c.bf16 %v1961, %v1961
    %v2018 = vpack.c.bf16 %v1962, %v1962
    %v2021 = vunpack.c.l.b16 %v2017
    %v2022 = vunpack.c.l.b16 %v2018
    %v2023 = vpack.c.b16 %v2022, %v2021
    %2025 = vst [vmem:[#allocation5 + $0x30] sm:$0xff] %v2023
    %v2026 = vld [vmem:[#allocation5] sm:$0xff]
    %v2027 = vld [vmem:[#allocation5 + $0x8] sm:$0xff]
    %v2028 = vld [vmem:[#allocation5 + $0x10] sm:$0xff]
    %v2029 = vld [vmem:[#allocation5 + $0x18] sm:$0xff]
    %v2030 = vld [vmem:[#allocation5 + $0x20] sm:$0xff]
    %v2031 = vld [vmem:[#allocation5 + $0x28] sm:$0xff]
    %v2032 = vld [vmem:[#allocation5 + $0x30] sm:$0xff]
    %v2033 = vld [vmem:[%s3] sm:$0xf]
    %v2034 = vld [vmem:[%s3 + $0x4] sm:$0xf]
    %v2035 = vld [vmem:[%s3 + $0x8] sm:$0xf]
    %v2036 = vld [vmem:[%s3 + $0xc] sm:$0xf]
    %v2037 = vld [vmem:[%s3 + $0x10] sm:$0xf]
    %v2038 = vld [vmem:[%s3 + $0x14] sm:$0xf]
    %v2039 = vld [vmem:[%s3 + $0x18] sm:$0xf]
    %v2040 = vld [vmem:[%s3 + $0x1c] sm:$0xf]
    %v2041 = vld [vmem:[%s3 + $0x20] sm:$0xf]
    %v2042 = vld [vmem:[%s3 + $0x24] sm:$0xf]
    %v2043 = vld [vmem:[%s3 + $0x28] sm:$0xf]
    %v2044 = vld [vmem:[%s3 + $0x2c] sm:$0xf]
    %v2045 = vld [vmem:[%s3 + $0x30] sm:$0xf]
    %v2046 = vld [vmem:[%s3 + $0x34] sm:$0xf]
    %v2047 = vld [vmem:[%s3 + $0x38] sm:$0xf]
    %v2048 = vld [vmem:[%s3 + $0x3c] sm:$0xf]
    %v2049 = vld [vmem:[%s3 + $0x40] sm:$0xf]
    %v2050 = vld [vmem:[%s3 + $0x44] sm:$0xf]
    %v2051 = vld [vmem:[%s3 + $0x48] sm:$0xf]
    %v2052 = vld [vmem:[%s3 + $0x4c] sm:$0xf]
    %v2053 = vld [vmem:[%s3 + $0x50] sm:$0xf]
    %v2054 = vld [vmem:[%s3 + $0x54] sm:$0xf]
    %v2055 = vld [vmem:[%s3 + $0x58] sm:$0xf]
    %v2056 = vld [vmem:[%s3 + $0x5c] sm:$0xf]
    %v2057 = vld [vmem:[%s3 + $0x60] sm:$0xf]
    %v2058 = vld [vmem:[%s3 + $0x64] sm:$0xf]
    %v2059 = vld [vmem:[%s3 + $0x68] sm:$0xf]
    %v2060 = vld [vmem:[%s3 + $0x6c] sm:$0xf]
    %v2061 = vld [vmem:[%s3 + $0x70] sm:$0xf]
    %v2062 = vld [vmem:[%s3 + $0x74] sm:$0xf]
    %v2063 = vld [vmem:[%s3 + $0x78] sm:$0xf]
    %v2064 = vld [vmem:[%s3 + $0x7c] sm:$0xf]
    %v2065 = vld [vmem:[%s3 + $0x80] sm:$0xf]
    %v2066 = vld [vmem:[%s3 + $0x84] sm:$0xf]
    %v2067 = vld [vmem:[%s3 + $0x88] sm:$0xf]
    %v2068 = vld [vmem:[%s3 + $0x8c] sm:$0xf]
    %v2069 = vld [vmem:[%s3 + $0x90] sm:$0xf]
    %v2070 = vld [vmem:[%s3 + $0x94] sm:$0xf]
    %v2071 = vld [vmem:[%s3 + $0x98] sm:$0xf]
    %v2072 = vld [vmem:[%s3 + $0x9c] sm:$0xf]
    %v2073 = vld [vmem:[%s3 + $0xa0] sm:$0xf]
    %v2074 = vld [vmem:[%s3 + $0xa4] sm:$0xf]
    %v2075 = vld [vmem:[%s3 + $0xa8] sm:$0xf]
    %v2076 = vld [vmem:[%s3 + $0xac] sm:$0xf]
    %v2077 = vld [vmem:[%s3 + $0xb0] sm:$0xf]
    %v2078 = vld [vmem:[%s3 + $0xb4] sm:$0xf]
    %v2079 = vld [vmem:[%s3 + $0xb8] sm:$0xf]
    %v2080 = vld [vmem:[%s3 + $0xbc] sm:$0xf]
    %v2081 = vld [vmem:[%s3 + $0xc0] sm:$0xf]
    %v2082 = vld [vmem:[%s3 + $0xc4] sm:$0xf]
    %v2083 = vld [vmem:[%s3 + $0xc8] sm:$0xf]
    %v2084 = vld [vmem:[%s3 + $0xcc] sm:$0xf]
    %v2085 = vld [vmem:[%s3 + $0xd0] sm:$0xf]
    %v2086 = vld [vmem:[%s3 + $0xd4] sm:$0xf]
    %v2087 = vld [vmem:[%s3 + $0xd8] sm:$0xf]
    %v2088 = vld [vmem:[%s3 + $0xdc] sm:$0xf]
    %v2089 = vld [vmem:[%s3 + $0xe0] sm:$0xf]
    %v2090 = vld [vmem:[%s3 + $0xe4] sm:$0xf]
    %v2091 = vld [vmem:[%s3 + $0xe8] sm:$0xf]
    %v2092 = vld [vmem:[%s3 + $0xec] sm:$0xf]
    %v2093 = vld [vmem:[%s3 + $0xf0] sm:$0xf]
    %v2094 = vld [vmem:[%s3 + $0xf4] sm:$0xf]
    %v2095 = vld [vmem:[%s3 + $0xf8] sm:$0xf]
    %v2096 = vld [vmem:[%s3 + $0xfc] sm:$0xf]
    %v2097 = vld [vmem:[%s3 + $0x100] sm:$0xf]
    %v2098 = vld [vmem:[%s3 + $0x104] sm:$0xf]
    %v2099 = vld [vmem:[%s3 + $0x108] sm:$0xf]
    %v2100 = vld [vmem:[%s3 + $0x10c] sm:$0xf]
    %v2101 = vld [vmem:[%s3 + $0x110] sm:$0xf]
    %v2102 = vld [vmem:[%s3 + $0x114] sm:$0xf]
    %v2103 = vld [vmem:[%s3 + $0x118] sm:$0xf]
    %v2104 = vld [vmem:[%s3 + $0x11c] sm:$0xf]
    %v2105 = vld [vmem:[%s3 + $0x120] sm:$0xf]
    %v2106 = vld [vmem:[%s3 + $0x124] sm:$0xf]
    %v2107 = vld [vmem:[%s3 + $0x128] sm:$0xf]
    %v2108 = vld [vmem:[%s3 + $0x12c] sm:$0xf]
    %v2109 = vld [vmem:[%s3 + $0x130] sm:$0xf]
    %v2110 = vld [vmem:[%s3 + $0x134] sm:$0xf]
    %v2111 = vld [vmem:[%s3 + $0x138] sm:$0xf]
    %v2112 = vld [vmem:[%s3 + $0x13c] sm:$0xf]
    %v2113 = vld [vmem:[%s3 + $0x140] sm:$0xf]
    %v2114 = vld [vmem:[%s3 + $0x144] sm:$0xf]
    %v2115 = vld [vmem:[%s3 + $0x148] sm:$0xf]
    %v2116 = vld [vmem:[%s3 + $0x14c] sm:$0xf]
    %v2117 = vld [vmem:[%s3 + $0x150] sm:$0xf]
    %v2118 = vld [vmem:[%s3 + $0x154] sm:$0xf]
    %v2119 = vld [vmem:[%s3 + $0x158] sm:$0xf]
    %v2120 = vld [vmem:[%s3 + $0x15c] sm:$0xf]
    %v2121 = vld [vmem:[%s3 + $0x160] sm:$0xf]
    %v2122 = vld [vmem:[%s3 + $0x164] sm:$0xf]
    %v2123 = vld [vmem:[%s3 + $0x168] sm:$0xf]
    %v2124 = vld [vmem:[%s3 + $0x16c] sm:$0xf]
    %v2125 = vld [vmem:[%s3 + $0x170] sm:$0xf]
    %v2126 = vld [vmem:[%s3 + $0x174] sm:$0xf]
    %v2127 = vld [vmem:[%s3 + $0x178] sm:$0xf]
    %v2128 = vld [vmem:[%s3 + $0x17c] sm:$0xf]
    %v2129 = vld [vmem:[%s3 + $0x180] sm:$0xf]
    %v2130 = vld [vmem:[%s3 + $0x184] sm:$0xf]
    %v2131 = vld [vmem:[%s3 + $0x188] sm:$0xf]
    %v2132 = vld [vmem:[%s3 + $0x18c] sm:$0xf]
    %v2133 = vld [vmem:[%s3 + $0x190] sm:$0xf]
    %v2134 = vld [vmem:[%s3 + $0x194] sm:$0xf]
    %v2135 = vld [vmem:[%s3 + $0x198] sm:$0xf]
    %v2136 = vld [vmem:[%s3 + $0x19c] sm:$0xf]
    %v2137 = vld [vmem:[%s3 + $0x1a0] sm:$0xf]
    %v2138 = vld [vmem:[%s3 + $0x1a4] sm:$0xf]
    %v2139 = vld [vmem:[%s3 + $0x1a8] sm:$0xf]
    %v2140 = vld [vmem:[%s3 + $0x1ac] sm:$0xf]
    %v2141 = vld [vmem:[%s3 + $0x1b0] sm:$0xf]
    %v2142 = vld [vmem:[%s3 + $0x1b4] sm:$0xf]
    %v2143 = vld [vmem:[%s3 + $0x1b8] sm:$0xf]
    %v2144 = vld [vmem:[%s3 + $0x1bc] sm:$0xf]
    %v2145 = vld [vmem:[%s3 + $0x1c0] sm:$0xf]
    %v2146 = vld [vmem:[%s3 + $0x1c4] sm:$0xf]
    %v2147 = vld [vmem:[%s3 + $0x1c8] sm:$0xf]
    %v2148 = vld [vmem:[%s3 + $0x1cc] sm:$0xf]
    %v2149 = vld [vmem:[%s3 + $0x1d0] sm:$0xf]
    %v2150 = vld [vmem:[%s3 + $0x1d4] sm:$0xf]
    %v2151 = vld [vmem:[%s3 + $0x1d8] sm:$0xf]
    %v2152 = vld [vmem:[%s3 + $0x1dc] sm:$0xf]
    %v2153 = vld [vmem:[%s3 + $0x1e0] sm:$0xf]
    %v2154 = vld [vmem:[%s3 + $0x1e4] sm:$0xf]
    %v2155 = vld [vmem:[%s3 + $0x1e8] sm:$0xf]
    %v2156 = vld [vmem:[%s3 + $0x1ec] sm:$0xf]
    %v2157 = vld [vmem:[%s3 + $0x1f0] sm:$0xf]
    %v2158 = vld [vmem:[%s3 + $0x1f4] sm:$0xf]
    %v2159 = vld [vmem:[%s3 + $0x1f8] sm:$0xf]
    %v2160 = vld [vmem:[%s3 + $0x1fc] sm:$0xf]
    %v2161 = vld [vmem:[%s3 + $0x200] sm:$0xf]
    %v2162 = vld [vmem:[%s3 + $0x204] sm:$0xf]
    %v2163 = vld [vmem:[%s3 + $0x208] sm:$0xf]
    %v2164 = vld [vmem:[%s3 + $0x20c] sm:$0xf]
    %v2165 = vld [vmem:[%s3 + $0x210] sm:$0xf]
    %v2166 = vld [vmem:[%s3 + $0x214] sm:$0xf]
    %v2167 = vld [vmem:[%s3 + $0x218] sm:$0xf]
    %v2168 = vld [vmem:[%s3 + $0x21c] sm:$0xf]
    %v2169 = vld [vmem:[%s3 + $0x220] sm:$0xf]
    %v2170 = vld [vmem:[%s3 + $0x224] sm:$0xf]
    %v2171 = vld [vmem:[%s3 + $0x228] sm:$0xf]
    %v2172 = vld [vmem:[%s3 + $0x22c] sm:$0xf]
    %v2173 = vld [vmem:[%s3 + $0x230] sm:$0xf]
    %v2174 = vld [vmem:[%s3 + $0x234] sm:$0xf]
    %v2175 = vld [vmem:[%s3 + $0x238] sm:$0xf]
    %v2176 = vld [vmem:[%s3 + $0x23c] sm:$0xf]
    %v2177 = vld [vmem:[%s3 + $0x240] sm:$0xf]
    %v2178 = vld [vmem:[%s3 + $0x244] sm:$0xf]
    %v2179 = vld [vmem:[%s3 + $0x248] sm:$0xf]
    %v2180 = vld [vmem:[%s3 + $0x24c] sm:$0xf]
    %v2181 = vld [vmem:[%s3 + $0x250] sm:$0xf]
    %v2182 = vld [vmem:[%s3 + $0x254] sm:$0xf]
    %v2183 = vld [vmem:[%s3 + $0x258] sm:$0xf]
    %v2184 = vld [vmem:[%s3 + $0x25c] sm:$0xf]
    %v2185 = vld [vmem:[%s3 + $0x260] sm:$0xf]
    %v2186 = vld [vmem:[%s3 + $0x264] sm:$0xf]
    %v2187 = vld [vmem:[%s3 + $0x268] sm:$0xf]
    %v2188 = vld [vmem:[%s3 + $0x26c] sm:$0xf]
    %v2189 = vld [vmem:[%s3 + $0x270] sm:$0xf]
    %v2190 = vld [vmem:[%s3 + $0x274] sm:$0xf]
    %v2191 = vld [vmem:[%s3 + $0x278] sm:$0xf]
    %v2192 = vld [vmem:[%s3 + $0x27c] sm:$0xf]
    %v2193 = vld [vmem:[%s3 + $0x280] sm:$0xf]
    %v2194 = vld [vmem:[%s3 + $0x284] sm:$0xf]
    %v2195 = vld [vmem:[%s3 + $0x288] sm:$0xf]
    %v2196 = vld [vmem:[%s3 + $0x28c] sm:$0xf]
    %v2197 = vld [vmem:[%s3 + $0x290] sm:$0xf]
    %v2198 = vld [vmem:[%s3 + $0x294] sm:$0xf]
    %v2199 = vld [vmem:[%s3 + $0x298] sm:$0xf]
    %v2200 = vld [vmem:[%s3 + $0x29c] sm:$0xf]
    %v2201 = vld [vmem:[%s3 + $0x2a0] sm:$0xf]
    %v2202 = vld [vmem:[%s3 + $0x2a4] sm:$0xf]
    %v2203 = vld [vmem:[%s3 + $0x2a8] sm:$0xf]
    %v2204 = vld [vmem:[%s3 + $0x2ac] sm:$0xf]
    %v2205 = vld [vmem:[%s3 + $0x2b0] sm:$0xf]
    %v2206 = vld [vmem:[%s3 + $0x2b4] sm:$0xf]
    %v2207 = vld [vmem:[%s3 + $0x2b8] sm:$0xf]
    %v2208 = vld [vmem:[%s3 + $0x2bc] sm:$0xf]
    %v2209 = vld [vmem:[%s3 + $0x2c0] sm:$0xf]
    %v2210 = vld [vmem:[%s3 + $0x2c4] sm:$0xf]
    %v2211 = vld [vmem:[%s3 + $0x2c8] sm:$0xf]
    %v2212 = vld [vmem:[%s3 + $0x2cc] sm:$0xf]
    %v2213 = vld [vmem:[%s3 + $0x2d0] sm:$0xf]
    %v2214 = vld [vmem:[%s3 + $0x2d4] sm:$0xf]
    %v2215 = vld [vmem:[%s3 + $0x2d8] sm:$0xf]
    %v2216 = vld [vmem:[%s3 + $0x2dc] sm:$0xf]
    %v2217 = vld [vmem:[%s3 + $0x2e0] sm:$0xf]
    %v2218 = vld [vmem:[%s3 + $0x2e4] sm:$0xf]
    %v2219 = vld [vmem:[%s3 + $0x2e8] sm:$0xf]
    %v2220 = vld [vmem:[%s3 + $0x2ec] sm:$0xf]
    %v2221 = vld [vmem:[%s3 + $0x2f0] sm:$0xf]
    %v2222 = vld [vmem:[%s3 + $0x2f4] sm:$0xf]
    %v2223 = vld [vmem:[%s3 + $0x2f8] sm:$0xf]
    %v2224 = vld [vmem:[%s3 + $0x2fc] sm:$0xf]
    %v2225 = vld [vmem:[%s3 + $0x300] sm:$0xf]
    %v2226 = vld [vmem:[%s3 + $0x304] sm:$0xf]
    %v2227 = vld [vmem:[%s3 + $0x308] sm:$0xf]
    %v2228 = vld [vmem:[%s3 + $0x30c] sm:$0xf]
    %v2229 = vld [vmem:[%s3 + $0x310] sm:$0xf]
    %v2230 = vld [vmem:[%s3 + $0x314] sm:$0xf]
    %v2231 = vld [vmem:[%s3 + $0x318] sm:$0xf]
    %v2232 = vld [vmem:[%s3 + $0x31c] sm:$0xf]
    %v2233 = vld [vmem:[%s3 + $0x320] sm:$0xf]
    %v2234 = vld [vmem:[%s3 + $0x324] sm:$0xf]
    %v2235 = vld [vmem:[%s3 + $0x328] sm:$0xf]
    %v2236 = vld [vmem:[%s3 + $0x32c] sm:$0xf]
    %v2237 = vld [vmem:[%s3 + $0x330] sm:$0xf]
    %v2238 = vld [vmem:[%s3 + $0x334] sm:$0xf]
    %v2239 = vld [vmem:[%s3 + $0x338] sm:$0xf]
    %v2240 = vld [vmem:[%s3 + $0x33c] sm:$0xf]
    %v2241 = vld [vmem:[%s3 + $0x340] sm:$0xf]
    %v2242 = vld [vmem:[%s3 + $0x344] sm:$0xf]
    %v2243 = vld [vmem:[%s3 + $0x348] sm:$0xf]
    %v2244 = vld [vmem:[%s3 + $0x34c] sm:$0xf]
    %v2245 = vld [vmem:[%s3 + $0x350] sm:$0xf]
    %v2246 = vld [vmem:[%s3 + $0x354] sm:$0xf]
    %v2247 = vld [vmem:[%s3 + $0x358] sm:$0xf]
    %v2248 = vld [vmem:[%s3 + $0x35c] sm:$0xf]
    %v2249 = vld [vmem:[%s3 + $0x360] sm:$0xf]
    %v2250 = vld [vmem:[%s3 + $0x364] sm:$0xf]
    %v2251 = vld [vmem:[%s3 + $0x368] sm:$0xf]
    %v2252 = vld [vmem:[%s3 + $0x36c] sm:$0xf]
    %v2253 = vld [vmem:[%s3 + $0x370] sm:$0xf]
    %v2254 = vld [vmem:[%s3 + $0x374] sm:$0xf]
    %v2255 = vld [vmem:[%s3 + $0x378] sm:$0xf]
    %v2256 = vld [vmem:[%s3 + $0x37c] sm:$0xf]
    %v2257 = vld [vmem:[%s9] sm:$0x1]
    %v2259 = vlaneseq
    %v2260 = vshrl.u32 %v2259, 7
    %v2261 = vsub.s32 0, %v2260
    %v2262 = vrot.slane %v2257, %v2261
    %v2271 = vunpack.c.l.b16 %v2026
    %v2272 = vunpack.c.h.b16 %v2026
    %v2273 = vunpack.c.l.b16 %v2027
    %v2274 = vunpack.c.h.b16 %v2027
    %v2275 = vunpack.c.l.b16 %v2028
    %v2276 = vunpack.c.h.b16 %v2028
    %v2277 = vunpack.c.l.b16 %v2029
    %v2278 = vunpack.c.h.b16 %v2029
    %v2279 = vunpack.c.l.b16 %v2030
    %v2280 = vunpack.c.h.b16 %v2030
    %v2281 = vunpack.c.l.b16 %v2031
    %v2282 = vunpack.c.h.b16 %v2031
    %v2283 = vunpack.c.l.b16 %v2032
    %v2284 = vunpack.c.h.b16 %v2032
    %v2285 = vpack.c.b16 %v2271, %v2271
    %v2286 = vpack.c.b16 %v2272, %v2272
    %v2287 = vpack.c.b16 %v2273, %v2273
    %v2288 = vpack.c.b16 %v2274, %v2274
    %v2289 = vpack.c.b16 %v2275, %v2275
    %v2290 = vpack.c.b16 %v2276, %v2276
    %v2291 = vpack.c.b16 %v2277, %v2277
    %v2292 = vpack.c.b16 %v2278, %v2278
    %v2293 = vpack.c.b16 %v2279, %v2279
    %v2294 = vpack.c.b16 %v2280, %v2280
    %v2295 = vpack.c.b16 %v2281, %v2281
    %v2296 = vpack.c.b16 %v2282, %v2282
    %v2297 = vpack.c.b16 %v2283, %v2283
    %v2298 = vpack.c.b16 %v2284, %v2284
    %v2537 = vunpack.c.l.b16 %v2033
    %v2538 = vunpack.c.l.b16 %v2034
    %v2539 = vunpack.c.l.b16 %v2035
    %v2540 = vunpack.c.l.b16 %v2036
    %v2541 = vunpack.c.l.b16 %v2037
    %v2542 = vunpack.c.l.b16 %v2038
    %v2543 = vunpack.c.l.b16 %v2039
    %v2544 = vunpack.c.l.b16 %v2040
    %v2545 = vunpack.c.l.b16 %v2041
    %v2546 = vunpack.c.l.b16 %v2042
    %v2547 = vunpack.c.l.b16 %v2043
    %v2548 = vunpack.c.l.b16 %v2044
    %v2549 = vunpack.c.l.b16 %v2045
    %v2550 = vunpack.c.l.b16 %v2046
    %v2551 = vunpack.c.l.b16 %v2047
    %v2552 = vunpack.c.l.b16 %v2048
    %v2553 = vunpack.c.l.b16 %v2049
    %v2554 = vunpack.c.l.b16 %v2050
    %v2555 = vunpack.c.l.b16 %v2051
    %v2556 = vunpack.c.l.b16 %v2052
    %v2557 = vunpack.c.l.b16 %v2053
    %v2558 = vunpack.c.l.b16 %v2054
    %v2559 = vunpack.c.l.b16 %v2055
    %v2560 = vunpack.c.l.b16 %v2056
    %v2561 = vunpack.c.l.b16 %v2057
    %v2562 = vunpack.c.l.b16 %v2058
    %v2563 = vunpack.c.l.b16 %v2059
    %v2564 = vunpack.c.l.b16 %v2060
    %v2565 = vunpack.c.l.b16 %v2061
    %v2566 = vunpack.c.l.b16 %v2062
    %v2567 = vunpack.c.l.b16 %v2063
    %v2568 = vunpack.c.l.b16 %v2064
    %v2569 = vunpack.c.l.b16 %v2065
    %v2570 = vunpack.c.l.b16 %v2066
    %v2571 = vunpack.c.l.b16 %v2067
    %v2572 = vunpack.c.l.b16 %v2068
    %v2573 = vunpack.c.l.b16 %v2069
    %v2574 = vunpack.c.l.b16 %v2070
    %v2575 = vunpack.c.l.b16 %v2071
    %v2576 = vunpack.c.l.b16 %v2072
    %v2577 = vunpack.c.l.b16 %v2073
    %v2578 = vunpack.c.l.b16 %v2074
    %v2579 = vunpack.c.l.b16 %v2075
    %v2580 = vunpack.c.l.b16 %v2076
    %v2581 = vunpack.c.l.b16 %v2077
    %v2582 = vunpack.c.l.b16 %v2078
    %v2583 = vunpack.c.l.b16 %v2079
    %v2584 = vunpack.c.l.b16 %v2080
    %v2585 = vunpack.c.l.b16 %v2081
    %v2586 = vunpack.c.l.b16 %v2082
    %v2587 = vunpack.c.l.b16 %v2083
    %v2588 = vunpack.c.l.b16 %v2084
    %v2589 = vunpack.c.l.b16 %v2085
    %v2590 = vunpack.c.l.b16 %v2086
    %v2591 = vunpack.c.l.b16 %v2087
    %v2592 = vunpack.c.l.b16 %v2088
    %v2593 = vunpack.c.l.b16 %v2089
    %v2594 = vunpack.c.l.b16 %v2090
    %v2595 = vunpack.c.l.b16 %v2091
    %v2596 = vunpack.c.l.b16 %v2092
    %v2597 = vunpack.c.l.b16 %v2093
    %v2598 = vunpack.c.l.b16 %v2094
    %v2599 = vunpack.c.l.b16 %v2095
    %v2600 = vunpack.c.l.b16 %v2096
    %v2601 = vunpack.c.l.b16 %v2097
    %v2602 = vunpack.c.l.b16 %v2098
    %v2603 = vunpack.c.l.b16 %v2099
    %v2604 = vunpack.c.l.b16 %v2100
    %v2605 = vunpack.c.l.b16 %v2101
    %v2606 = vunpack.c.l.b16 %v2102
    %v2607 = vunpack.c.l.b16 %v2103
    %v2608 = vunpack.c.l.b16 %v2104
    %v2609 = vunpack.c.l.b16 %v2105
    %v2610 = vunpack.c.l.b16 %v2106
    %v2611 = vunpack.c.l.b16 %v2107
    %v2612 = vunpack.c.l.b16 %v2108
    %v2613 = vunpack.c.l.b16 %v2109
    %v2614 = vunpack.c.l.b16 %v2110
    %v2615 = vunpack.c.l.b16 %v2111
    %v2616 = vunpack.c.l.b16 %v2112
    %v2617 = vunpack.c.l.b16 %v2113
    %v2618 = vunpack.c.l.b16 %v2114
    %v2619 = vunpack.c.l.b16 %v2115
    %v2620 = vunpack.c.l.b16 %v2116
    %v2621 = vunpack.c.l.b16 %v2117
    %v2622 = vunpack.c.l.b16 %v2118
    %v2623 = vunpack.c.l.b16 %v2119
    %v2624 = vunpack.c.l.b16 %v2120
    %v2625 = vunpack.c.l.b16 %v2121
    %v2626 = vunpack.c.l.b16 %v2122
    %v2627 = vunpack.c.l.b16 %v2123
    %v2628 = vunpack.c.l.b16 %v2124
    %v2629 = vunpack.c.l.b16 %v2125
    %v2630 = vunpack.c.l.b16 %v2126
    %v2631 = vunpack.c.l.b16 %v2127
    %v2632 = vunpack.c.l.b16 %v2128
    %v2633 = vunpack.c.l.b16 %v2129
    %v2634 = vunpack.c.l.b16 %v2130
    %v2635 = vunpack.c.l.b16 %v2131
    %v2636 = vunpack.c.l.b16 %v2132
    %v2637 = vunpack.c.l.b16 %v2133
    %v2638 = vunpack.c.l.b16 %v2134
    %v2639 = vunpack.c.l.b16 %v2135
    %v2640 = vunpack.c.l.b16 %v2136
    %v2641 = vunpack.c.l.b16 %v2137
    %v2642 = vunpack.c.l.b16 %v2138
    %v2643 = vunpack.c.l.b16 %v2139
    %v2644 = vunpack.c.l.b16 %v2140
    %v2645 = vunpack.c.l.b16 %v2141
    %v2646 = vunpack.c.l.b16 %v2142
    %v2647 = vunpack.c.l.b16 %v2143
    %v2648 = vunpack.c.l.b16 %v2144
    %v2649 = vunpack.c.l.b16 %v2145
    %v2650 = vunpack.c.l.b16 %v2146
    %v2651 = vunpack.c.l.b16 %v2147
    %v2652 = vunpack.c.l.b16 %v2148
    %v2653 = vunpack.c.l.b16 %v2149
    %v2654 = vunpack.c.l.b16 %v2150
    %v2655 = vunpack.c.l.b16 %v2151
    %v2656 = vunpack.c.l.b16 %v2152
    %v2657 = vunpack.c.l.b16 %v2153
    %v2658 = vunpack.c.l.b16 %v2154
    %v2659 = vunpack.c.l.b16 %v2155
    %v2660 = vunpack.c.l.b16 %v2156
    %v2661 = vunpack.c.l.b16 %v2157
    %v2662 = vunpack.c.l.b16 %v2158
    %v2663 = vunpack.c.l.b16 %v2159
    %v2664 = vunpack.c.l.b16 %v2160
    %v2665 = vunpack.c.l.b16 %v2161
    %v2666 = vunpack.c.l.b16 %v2162
    %v2667 = vunpack.c.l.b16 %v2163
    %v2668 = vunpack.c.l.b16 %v2164
    %v2669 = vunpack.c.l.b16 %v2165
    %v2670 = vunpack.c.l.b16 %v2166
    %v2671 = vunpack.c.l.b16 %v2167
    %v2672 = vunpack.c.l.b16 %v2168
    %v2673 = vunpack.c.l.b16 %v2169
    %v2674 = vunpack.c.l.b16 %v2170
    %v2675 = vunpack.c.l.b16 %v2171
    %v2676 = vunpack.c.l.b16 %v2172
    %v2677 = vunpack.c.l.b16 %v2173
    %v2678 = vunpack.c.l.b16 %v2174
    %v2679 = vunpack.c.l.b16 %v2175
    %v2680 = vunpack.c.l.b16 %v2176
    %v2681 = vunpack.c.l.b16 %v2177
    %v2682 = vunpack.c.l.b16 %v2178
    %v2683 = vunpack.c.l.b16 %v2179
    %v2684 = vunpack.c.l.b16 %v2180
    %v2685 = vunpack.c.l.b16 %v2181
    %v2686 = vunpack.c.l.b16 %v2182
    %v2687 = vunpack.c.l.b16 %v2183
    %v2688 = vunpack.c.l.b16 %v2184
    %v2689 = vunpack.c.l.b16 %v2185
    %v2690 = vunpack.c.l.b16 %v2186
    %v2691 = vunpack.c.l.b16 %v2187
    %v2692 = vunpack.c.l.b16 %v2188
    %v2693 = vunpack.c.l.b16 %v2189
    %v2694 = vunpack.c.l.b16 %v2190
    %v2695 = vunpack.c.l.b16 %v2191
    %v2696 = vunpack.c.l.b16 %v2192
    %v2697 = vunpack.c.l.b16 %v2193
    %v2698 = vunpack.c.l.b16 %v2194
    %v2699 = vunpack.c.l.b16 %v2195
    %v2700 = vunpack.c.l.b16 %v2196
    %v2701 = vunpack.c.l.b16 %v2197
    %v2702 = vunpack.c.l.b16 %v2198
    %v2703 = vunpack.c.l.b16 %v2199
    %v2704 = vunpack.c.l.b16 %v2200
    %v2705 = vunpack.c.l.b16 %v2201
    %v2706 = vunpack.c.l.b16 %v2202
    %v2707 = vunpack.c.l.b16 %v2203
    %v2708 = vunpack.c.l.b16 %v2204
    %v2709 = vunpack.c.l.b16 %v2205
    %v2710 = vunpack.c.l.b16 %v2206
    %v2711 = vunpack.c.l.b16 %v2207
    %v2712 = vunpack.c.l.b16 %v2208
    %v2713 = vunpack.c.l.b16 %v2209
    %v2714 = vunpack.c.l.b16 %v2210
    %v2715 = vunpack.c.l.b16 %v2211
    %v2716 = vunpack.c.l.b16 %v2212
    %v2717 = vunpack.c.l.b16 %v2213
    %v2718 = vunpack.c.l.b16 %v2214
    %v2719 = vunpack.c.l.b16 %v2215
    %v2720 = vunpack.c.l.b16 %v2216
    %v2721 = vunpack.c.l.b16 %v2217
    %v2722 = vunpack.c.l.b16 %v2218
    %v2723 = vunpack.c.l.b16 %v2219
    %v2724 = vunpack.c.l.b16 %v2220
    %v2725 = vunpack.c.l.b16 %v2221
    %v2726 = vunpack.c.l.b16 %v2222
    %v2727 = vunpack.c.l.b16 %v2223
    %v2728 = vunpack.c.l.b16 %v2224
    %v2729 = vunpack.c.l.b16 %v2225
    %v2730 = vunpack.c.l.b16 %v2226
    %v2731 = vunpack.c.l.b16 %v2227
    %v2732 = vunpack.c.l.b16 %v2228
    %v2733 = vunpack.c.l.b16 %v2229
    %v2734 = vunpack.c.l.b16 %v2230
    %v2735 = vunpack.c.l.b16 %v2231
    %v2736 = vunpack.c.l.b16 %v2232
    %v2737 = vunpack.c.l.b16 %v2233
    %v2738 = vunpack.c.l.b16 %v2234
    %v2739 = vunpack.c.l.b16 %v2235
    %v2740 = vunpack.c.l.b16 %v2236
    %v2741 = vunpack.c.l.b16 %v2237
    %v2742 = vunpack.c.l.b16 %v2238
    %v2743 = vunpack.c.l.b16 %v2239
    %v2744 = vunpack.c.l.b16 %v2240
    %v2745 = vunpack.c.l.b16 %v2241
    %v2746 = vunpack.c.l.b16 %v2242
    %v2747 = vunpack.c.l.b16 %v2243
    %v2748 = vunpack.c.l.b16 %v2244
    %v2749 = vunpack.c.l.b16 %v2245
    %v2750 = vunpack.c.l.b16 %v2246
    %v2751 = vunpack.c.l.b16 %v2247
    %v2752 = vunpack.c.l.b16 %v2248
    %v2753 = vunpack.c.l.b16 %v2249
    %v2754 = vunpack.c.l.b16 %v2250
    %v2755 = vunpack.c.l.b16 %v2251
    %v2756 = vunpack.c.l.b16 %v2252
    %v2757 = vunpack.c.l.b16 %v2253
    %v2758 = vunpack.c.l.b16 %v2254
    %v2759 = vunpack.c.l.b16 %v2255
    %v2760 = vunpack.c.l.b16 %v2256
    %v2761 = vpack.c.b16 %v2538, %v2537
    %v2762 = vpack.c.b16 %v2540, %v2539
    %v2763 = vpack.c.b16 %v2542, %v2541
    %v2764 = vpack.c.b16 %v2544, %v2543
    %v2765 = vpack.c.b16 %v2546, %v2545
    %v2766 = vpack.c.b16 %v2548, %v2547
    %v2767 = vpack.c.b16 %v2550, %v2549
    %v2768 = vpack.c.b16 %v2552, %v2551
    %v2769 = vpack.c.b16 %v2554, %v2553
    %v2770 = vpack.c.b16 %v2556, %v2555
    %v2771 = vpack.c.b16 %v2558, %v2557
    %v2772 = vpack.c.b16 %v2560, %v2559
    %v2773 = vpack.c.b16 %v2562, %v2561
    %v2774 = vpack.c.b16 %v2564, %v2563
    %v2775 = vpack.c.b16 %v2566, %v2565
    %v2776 = vpack.c.b16 %v2568, %v2567
    %v2777 = vpack.c.b16 %v2570, %v2569
    %v2778 = vpack.c.b16 %v2572, %v2571
    %v2779 = vpack.c.b16 %v2574, %v2573
    %v2780 = vpack.c.b16 %v2576, %v2575
    %v2781 = vpack.c.b16 %v2578, %v2577
    %v2782 = vpack.c.b16 %v2580, %v2579
    %v2783 = vpack.c.b16 %v2582, %v2581
    %v2784 = vpack.c.b16 %v2584, %v2583
    %v2785 = vpack.c.b16 %v2586, %v2585
    %v2786 = vpack.c.b16 %v2588, %v2587
    %v2787 = vpack.c.b16 %v2590, %v2589
    %v2788 = vpack.c.b16 %v2592, %v2591
    %v2789 = vpack.c.b16 %v2594, %v2593
    %v2790 = vpack.c.b16 %v2596, %v2595
    %v2791 = vpack.c.b16 %v2598, %v2597
    %v2792 = vpack.c.b16 %v2600, %v2599
    %v2793 = vpack.c.b16 %v2602, %v2601
    %v2794 = vpack.c.b16 %v2604, %v2603
    %v2795 = vpack.c.b16 %v2606, %v2605
    %v2796 = vpack.c.b16 %v2608, %v2607
    %v2797 = vpack.c.b16 %v2610, %v2609
    %v2798 = vpack.c.b16 %v2612, %v2611
    %v2799 = vpack.c.b16 %v2614, %v2613
    %v2800 = vpack.c.b16 %v2616, %v2615
    %v2801 = vpack.c.b16 %v2618, %v2617
    %v2802 = vpack.c.b16 %v2620, %v2619
    %v2803 = vpack.c.b16 %v2622, %v2621
    %v2804 = vpack.c.b16 %v2624, %v2623
    %v2805 = vpack.c.b16 %v2626, %v2625
    %v2806 = vpack.c.b16 %v2628, %v2627
    %v2807 = vpack.c.b16 %v2630, %v2629
    %v2808 = vpack.c.b16 %v2632, %v2631
    %v2809 = vpack.c.b16 %v2634, %v2633
    %v2810 = vpack.c.b16 %v2636, %v2635
    %v2811 = vpack.c.b16 %v2638, %v2637
    %v2812 = vpack.c.b16 %v2640, %v2639
    %v2813 = vpack.c.b16 %v2642, %v2641
    %v2814 = vpack.c.b16 %v2644, %v2643
    %v2815 = vpack.c.b16 %v2646, %v2645
    %v2816 = vpack.c.b16 %v2648, %v2647
    %v2817 = vpack.c.b16 %v2650, %v2649
    %v2818 = vpack.c.b16 %v2652, %v2651
    %v2819 = vpack.c.b16 %v2654, %v2653
    %v2820 = vpack.c.b16 %v2656, %v2655
    %v2821 = vpack.c.b16 %v2658, %v2657
    %v2822 = vpack.c.b16 %v2660, %v2659
    %v2823 = vpack.c.b16 %v2662, %v2661
    %v2824 = vpack.c.b16 %v2664, %v2663
    %v2825 = vpack.c.b16 %v2666, %v2665
    %v2826 = vpack.c.b16 %v2668, %v2667
    %v2827 = vpack.c.b16 %v2670, %v2669
    %v2828 = vpack.c.b16 %v2672, %v2671
    %v2829 = vpack.c.b16 %v2674, %v2673
    %v2830 = vpack.c.b16 %v2676, %v2675
    %v2831 = vpack.c.b16 %v2678, %v2677
    %v2832 = vpack.c.b16 %v2680, %v2679
    %v2833 = vpack.c.b16 %v2682, %v2681
    %v2834 = vpack.c.b16 %v2684, %v2683
    %v2835 = vpack.c.b16 %v2686, %v2685
    %v2836 = vpack.c.b16 %v2688, %v2687
    %v2837 = vpack.c.b16 %v2690, %v2689
    %v2838 = vpack.c.b16 %v2692, %v2691
    %v2839 = vpack.c.b16 %v2694, %v2693
    %v2840 = vpack.c.b16 %v2696, %v2695
    %v2841 = vpack.c.b16 %v2698, %v2697
    %v2842 = vpack.c.b16 %v2700, %v2699
    %v2843 = vpack.c.b16 %v2702, %v2701
    %v2844 = vpack.c.b16 %v2704, %v2703
    %v2845 = vpack.c.b16 %v2706, %v2705
    %v2846 = vpack.c.b16 %v2708, %v2707
    %v2847 = vpack.c.b16 %v2710, %v2709
    %v2848 = vpack.c.b16 %v2712, %v2711
    %v2849 = vpack.c.b16 %v2714, %v2713
    %v2850 = vpack.c.b16 %v2716, %v2715
    %v2851 = vpack.c.b16 %v2718, %v2717
    %v2852 = vpack.c.b16 %v2720, %v2719
    %v2853 = vpack.c.b16 %v2722, %v2721
    %v2854 = vpack.c.b16 %v2724, %v2723
    %v2855 = vpack.c.b16 %v2726, %v2725
    %v2856 = vpack.c.b16 %v2728, %v2727
    %v2857 = vpack.c.b16 %v2730, %v2729
    %v2858 = vpack.c.b16 %v2732, %v2731
    %v2859 = vpack.c.b16 %v2734, %v2733
    %v2860 = vpack.c.b16 %v2736, %v2735
    %v2861 = vpack.c.b16 %v2738, %v2737
    %v2862 = vpack.c.b16 %v2740, %v2739
    %v2863 = vpack.c.b16 %v2742, %v2741
    %v2864 = vpack.c.b16 %v2744, %v2743
    %v2865 = vpack.c.b16 %v2746, %v2745
    %v2866 = vpack.c.b16 %v2748, %v2747
    %v2867 = vpack.c.b16 %v2750, %v2749
    %v2868 = vpack.c.b16 %v2752, %v2751
    %v2869 = vpack.c.b16 %v2754, %v2753
    %v2870 = vpack.c.b16 %v2756, %v2755
    %v2871 = vpack.c.b16 %v2758, %v2757
    %v2872 = vpack.c.b16 %v2760, %v2759
    %2985 = vmatprep.subr.bf16.mxu0 0
    %2986 = vmatpush1.bf16.msra.mxu0 %v2761
    %2987 = vmatprep.subr.bf16.mxu0 0
    %2988 = vmatpush1.bf16.msra.mxu0 %v2762
    %2989 = vmatprep.subr.bf16.mxu0 0
    %2990 = vmatpush1.bf16.msra.mxu0 %v2763
    %2991 = vmatprep.subr.bf16.mxu0 0
    %2992 = vmatpush1.bf16.msra.mxu0 %v2764
    %2993 = vmatprep.subr.bf16.mxu0 0
    %2994 = vmatpush1.bf16.msra.mxu0 %v2765
    %2995 = vmatprep.subr.bf16.mxu0 0
    %2996 = vmatpush1.bf16.msra.mxu0 %v2766
    %2997 = vmatprep.subr.bf16.mxu0 0
    %2998 = vmatpush1.bf16.msra.mxu0 %v2767
    %2999 = vmatprep.subr.bf16.mxu0 0
    %3000 = vmatpush1.bf16.msra.mxu0 %v2768
    %3001 = vmatprep.subr.bf16.mxu0 0
    %3002 = vmatpush1.bf16.msra.mxu0 %v2769
    %3003 = vmatprep.subr.bf16.mxu0 0
    %3004 = vmatpush1.bf16.msra.mxu0 %v2770
    %3005 = vmatprep.subr.bf16.mxu0 0
    %3006 = vmatpush1.bf16.msra.mxu0 %v2771
    %3007 = vmatprep.subr.bf16.mxu0 0
    %3008 = vmatpush1.bf16.msra.mxu0 %v2772
    %3009 = vmatprep.subr.bf16.mxu0 0
    %3010 = vmatpush1.bf16.msra.mxu0 %v2773
    %3011 = vmatprep.subr.bf16.mxu0 0
    %3012 = vmatpush1.bf16.msra.mxu0 %v2774
    %3013 = vmatprep.subr.bf16.mxu0 0
    %3014 = vmatpush1.bf16.msra.mxu0 %v2775
    %3015 = vmatprep.subr.bf16.mxu0 0
    %3016 = vmatpush1.bf16.msra.mxu0 %v2776
    %3017 = vmatprep.mubr.bf16.mxu0 %v2286
    %3018 = vmatmul.mubr.bf16.gmra.mrb[0].mxu0 %v2285
    %v3019 = vpop.f32.mrb[0].mxu0
    %v3020 = vadd.f32 %v2262, %v3019
    %v3021 = vpop.f32.mrb[0].mxu0
    %v3022 = vpop.f32.mrb[0].mxu0
    %v3023 = vpop.f32.mrb[0].mxu0
    %3024 = vdwg.mxu0
    %3025 = vmatprep.subr.bf16.mxu0 0
    %3026 = vmatpush1.bf16.msra.mxu0 %v2777
    %3027 = vmatprep.subr.bf16.mxu0 0
    %3028 = vmatpush1.bf16.msra.mxu0 %v2778
    %3029 = vmatprep.subr.bf16.mxu0 0
    %3030 = vmatpush1.bf16.msra.mxu0 %v2779
    %3031 = vmatprep.subr.bf16.mxu0 0
    %3032 = vmatpush1.bf16.msra.mxu0 %v2780
    %3033 = vmatprep.subr.bf16.mxu0 0
    %3034 = vmatpush1.bf16.msra.mxu0 %v2781
    %3035 = vmatprep.subr.bf16.mxu0 0
    %3036 = vmatpush1.bf16.msra.mxu0 %v2782
    %3037 = vmatprep.subr.bf16.mxu0 0
    %3038 = vmatpush1.bf16.msra.mxu0 %v2783
    %3039 = vmatprep.subr.bf16.mxu0 0
    %3040 = vmatpush1.bf16.msra.mxu0 %v2784
    %3041 = vmatprep.subr.bf16.mxu0 0
    %3042 = vmatpush1.bf16.msra.mxu0 %v2785
    %3043 = vmatprep.subr.bf16.mxu0 0
    %3044 = vmatpush1.bf16.msra.mxu0 %v2786
    %3045 = vmatprep.subr.bf16.mxu0 0
    %3046 = vmatpush1.bf16.msra.mxu0 %v2787
    %3047 = vmatprep.subr.bf16.mxu0 0
    %3048 = vmatpush1.bf16.msra.mxu0 %v2788
    %3049 = vmatprep.subr.bf16.mxu0 0
    %3050 = vmatpush1.bf16.msra.mxu0 %v2789
    %3051 = vmatprep.subr.bf16.mxu0 0
    %3052 = vmatpush1.bf16.msra.mxu0 %v2790
    %3053 = vmatprep.subr.bf16.mxu0 0
    %3054 = vmatpush1.bf16.msra.mxu0 %v2791
    %3055 = vmatprep.subr.bf16.mxu0 0
    %3056 = vmatpush1.bf16.msra.mxu0 %v2792
    %3057 = vmatprep.mubr.bf16.mxu0 %v2288
    %3058 = vmatmul.mubr.bf16.gmra.mrb[0].mxu0 %v2287
    %v3059 = vpop.f32.mrb[0].mxu0
    %v3060 = vadd.f32 %v3020, %v3059
    %v3061 = vpop.f32.mrb[0].mxu0
    %v3062 = vpop.f32.mrb[0].mxu0
    %v3063 = vpop.f32.mrb[0].mxu0
    %3064 = vdwg.mxu0
    %3065 = vmatprep.subr.bf16.mxu0 0
    %3066 = vmatpush1.bf16.msra.mxu0 %v2793
    %3067 = vmatprep.subr.bf16.mxu0 0
    %3068 = vmatpush1.bf16.msra.mxu0 %v2794
    %3069 = vmatprep.subr.bf16.mxu0 0
    %3070 = vmatpush1.bf16.msra.mxu0 %v2795
    %3071 = vmatprep.subr.bf16.mxu0 0
    %3072 = vmatpush1.bf16.msra.mxu0 %v2796
    %3073 = vmatprep.subr.bf16.mxu0 0
    %3074 = vmatpush1.bf16.msra.mxu0 %v2797
    %3075 = vmatprep.subr.bf16.mxu0 0
    %3076 = vmatpush1.bf16.msra.mxu0 %v2798
    %3077 = vmatprep.subr.bf16.mxu0 0
    %3078 = vmatpush1.bf16.msra.mxu0 %v2799
    %3079 = vmatprep.subr.bf16.mxu0 0
    %3080 = vmatpush1.bf16.msra.mxu0 %v2800
    %3081 = vmatprep.subr.bf16.mxu0 0
    %3082 = vmatpush1.bf16.msra.mxu0 %v2801
    %3083 = vmatprep.subr.bf16.mxu0 0
    %3084 = vmatpush1.bf16.msra.mxu0 %v2802
    %3085 = vmatprep.subr.bf16.mxu0 0
    %3086 = vmatpush1.bf16.msra.mxu0 %v2803
    %3087 = vmatprep.subr.bf16.mxu0 0
    %3088 = vmatpush1.bf16.msra.mxu0 %v2804
    %3089 = vmatprep.subr.bf16.mxu0 0
    %3090 = vmatpush1.bf16.msra.mxu0 %v2805
    %3091 = vmatprep.subr.bf16.mxu0 0
    %3092 = vmatpush1.bf16.msra.mxu0 %v2806
    %3093 = vmatprep.subr.bf16.mxu0 0
    %3094 = vmatpush1.bf16.msra.mxu0 %v2807
    %3095 = vmatprep.subr.bf16.mxu0 0
    %3096 = vmatpush1.bf16.msra.mxu0 %v2808
    %3097 = vmatprep.mubr.bf16.mxu0 %v2290
    %3098 = vmatmul.mubr.bf16.gmra.mrb[0].mxu0 %v2289
    %v3099 = vpop.f32.mrb[0].mxu0
    %v3100 = vadd.f32 %v3060, %v3099
    %v3101 = vpop.f32.mrb[0].mxu0
    %v3102 = vpop.f32.mrb[0].mxu0
    %v3103 = vpop.f32.mrb[0].mxu0
    %3104 = vdwg.mxu0
    %3105 = vmatprep.subr.bf16.mxu0 0
    %3106 = vmatpush1.bf16.msra.mxu0 %v2809
    %3107 = vmatprep.subr.bf16.mxu0 0
    %3108 = vmatpush1.bf16.msra.mxu0 %v2810
    %3109 = vmatprep.subr.bf16.mxu0 0
    %3110 = vmatpush1.bf16.msra.mxu0 %v2811
    %3111 = vmatprep.subr.bf16.mxu0 0
    %3112 = vmatpush1.bf16.msra.mxu0 %v2812
    %3113 = vmatprep.subr.bf16.mxu0 0
    %3114 = vmatpush1.bf16.msra.mxu0 %v2813
    %3115 = vmatprep.subr.bf16.mxu0 0
    %3116 = vmatpush1.bf16.msra.mxu0 %v2814
    %3117 = vmatprep.subr.bf16.mxu0 0
    %3118 = vmatpush1.bf16.msra.mxu0 %v2815
    %3119 = vmatprep.subr.bf16.mxu0 0
    %3120 = vmatpush1.bf16.msra.mxu0 %v2816
    %3121 = vmatprep.subr.bf16.mxu0 0
    %3122 = vmatpush1.bf16.msra.mxu0 %v2817
    %3123 = vmatprep.subr.bf16.mxu0 0
    %3124 = vmatpush1.bf16.msra.mxu0 %v2818
    %3125 = vmatprep.subr.bf16.mxu0 0
    %3126 = vmatpush1.bf16.msra.mxu0 %v2819
    %3127 = vmatprep.subr.bf16.mxu0 0
    %3128 = vmatpush1.bf16.msra.mxu0 %v2820
    %3129 = vmatprep.subr.bf16.mxu0 0
    %3130 = vmatpush1.bf16.msra.mxu0 %v2821
    %3131 = vmatprep.subr.bf16.mxu0 0
    %3132 = vmatpush1.bf16.msra.mxu0 %v2822
    %3133 = vmatprep.subr.bf16.mxu0 0
    %3134 = vmatpush1.bf16.msra.mxu0 %v2823
    %3135 = vmatprep.subr.bf16.mxu0 0
    %3136 = vmatpush1.bf16.msra.mxu0 %v2824
    %3137 = vmatprep.mubr.bf16.mxu0 %v2292
    %3138 = vmatmul.mubr.bf16.gmra.mrb[0].mxu0 %v2291
    %v3139 = vpop.f32.mrb[0].mxu0
    %v3140 = vadd.f32 %v3100, %v3139
    %v3141 = vpop.f32.mrb[0].mxu0
    %v3142 = vpop.f32.mrb[0].mxu0
    %v3143 = vpop.f32.mrb[0].mxu0
    %3144 = vdwg.mxu0
    %3145 = vmatprep.subr.bf16.mxu0 0
    %3146 = vmatpush1.bf16.msra.mxu0 %v2825
    %3147 = vmatprep.subr.bf16.mxu0 0
    %3148 = vmatpush1.bf16.msra.mxu0 %v2826
    %3149 = vmatprep.subr.bf16.mxu0 0
    %3150 = vmatpush1.bf16.msra.mxu0 %v2827
    %3151 = vmatprep.subr.bf16.mxu0 0
    %3152 = vmatpush1.bf16.msra.mxu0 %v2828
    %3153 = vmatprep.subr.bf16.mxu0 0
    %3154 = vmatpush1.bf16.msra.mxu0 %v2829
    %3155 = vmatprep.subr.bf16.mxu0 0
    %3156 = vmatpush1.bf16.msra.mxu0 %v2830
    %3157 = vmatprep.subr.bf16.mxu0 0
    %3158 = vmatpush1.bf16.msra.mxu0 %v2831
    %3159 = vmatprep.subr.bf16.mxu0 0
    %3160 = vmatpush1.bf16.msra.mxu0 %v2832
    %3161 = vmatprep.subr.bf16.mxu0 0
    %3162 = vmatpush1.bf16.msra.mxu0 %v2833
    %3163 = vmatprep.subr.bf16.mxu0 0
    %3164 = vmatpush1.bf16.msra.mxu0 %v2834
    %3165 = vmatprep.subr.bf16.mxu0 0
    %3166 = vmatpush1.bf16.msra.mxu0 %v2835
    %3167 = vmatprep.subr.bf16.mxu0 0
    %3168 = vmatpush1.bf16.msra.mxu0 %v2836
    %3169 = vmatprep.subr.bf16.mxu0 0
    %3170 = vmatpush1.bf16.msra.mxu0 %v2837
    %3171 = vmatprep.subr.bf16.mxu0 0
    %3172 = vmatpush1.bf16.msra.mxu0 %v2838
    %3173 = vmatprep.subr.bf16.mxu0 0
    %3174 = vmatpush1.bf16.msra.mxu0 %v2839
    %3175 = vmatprep.subr.bf16.mxu0 0
    %3176 = vmatpush1.bf16.msra.mxu0 %v2840
    %3177 = vmatprep.mubr.bf16.mxu0 %v2294
    %3178 = vmatmul.mubr.bf16.gmra.mrb[0].mxu0 %v2293
    %v3179 = vpop.f32.mrb[0].mxu0
    %v3180 = vadd.f32 %v3140, %v3179
    %v3181 = vpop.f32.mrb[0].mxu0
    %v3182 = vpop.f32.mrb[0].mxu0
    %v3183 = vpop.f32.mrb[0].mxu0
    %3184 = vdwg.mxu0
    %3185 = vmatprep.subr.bf16.mxu0 0
    %3186 = vmatpush1.bf16.msra.mxu0 %v2841
    %3187 = vmatprep.subr.bf16.mxu0 0
    %3188 = vmatpush1.bf16.msra.mxu0 %v2842
    %3189 = vmatprep.subr.bf16.mxu0 0
    %3190 = vmatpush1.bf16.msra.mxu0 %v2843
    %3191 = vmatprep.subr.bf16.mxu0 0
    %3192 = vmatpush1.bf16.msra.mxu0 %v2844
    %3193 = vmatprep.subr.bf16.mxu0 0
    %3194 = vmatpush1.bf16.msra.mxu0 %v2845
    %3195 = vmatprep.subr.bf16.mxu0 0
    %3196 = vmatpush1.bf16.msra.mxu0 %v2846
    %3197 = vmatprep.subr.bf16.mxu0 0
    %3198 = vmatpush1.bf16.msra.mxu0 %v2847
    %3199 = vmatprep.subr.bf16.mxu0 0
    %3200 = vmatpush1.bf16.msra.mxu0 %v2848
    %3201 = vmatprep.subr.bf16.mxu0 0
    %3202 = vmatpush1.bf16.msra.mxu0 %v2849
    %3203 = vmatprep.subr.bf16.mxu0 0
    %3204 = vmatpush1.bf16.msra.mxu0 %v2850
    %3205 = vmatprep.subr.bf16.mxu0 0
    %3206 = vmatpush1.bf16.msra.mxu0 %v2851
    %3207 = vmatprep.subr.bf16.mxu0 0
    %3208 = vmatpush1.bf16.msra.mxu0 %v2852
    %3209 = vmatprep.subr.bf16.mxu0 0
    %3210 = vmatpush1.bf16.msra.mxu0 %v2853
    %3211 = vmatprep.subr.bf16.mxu0 0
    %3212 = vmatpush1.bf16.msra.mxu0 %v2854
    %3213 = vmatprep.subr.bf16.mxu0 0
    %3214 = vmatpush1.bf16.msra.mxu0 %v2855
    %3215 = vmatprep.subr.bf16.mxu0 0
    %3216 = vmatpush1.bf16.msra.mxu0 %v2856
    %3217 = vmatprep.mubr.bf16.mxu0 %v2296
    %3218 = vmatmul.mubr.bf16.gmra.mrb[0].mxu0 %v2295
    %v3219 = vpop.f32.mrb[0].mxu0
    %v3220 = vadd.f32 %v3180, %v3219
    %v3221 = vpop.f32.mrb[0].mxu0
    %v3222 = vpop.f32.mrb[0].mxu0
    %v3223 = vpop.f32.mrb[0].mxu0
    %3224 = vdwg.mxu0
    %3225 = vmatprep.subr.bf16.mxu0 0
    %3226 = vmatpush1.bf16.msra.mxu0 %v2857
    %3227 = vmatprep.subr.bf16.mxu0 0
    %3228 = vmatpush1.bf16.msra.mxu0 %v2858
    %3229 = vmatprep.subr.bf16.mxu0 0
    %3230 = vmatpush1.bf16.msra.mxu0 %v2859
    %3231 = vmatprep.subr.bf16.mxu0 0
    %3232 = vmatpush1.bf16.msra.mxu0 %v2860
    %3233 = vmatprep.subr.bf16.mxu0 0
    %3234 = vmatpush1.bf16.msra.mxu0 %v2861
    %3235 = vmatprep.subr.bf16.mxu0 0
    %3236 = vmatpush1.bf16.msra.mxu0 %v2862
    %3237 = vmatprep.subr.bf16.mxu0 0
    %3238 = vmatpush1.bf16.msra.mxu0 %v2863
    %3239 = vmatprep.subr.bf16.mxu0 0
    %3240 = vmatpush1.bf16.msra.mxu0 %v2864
    %3241 = vmatprep.subr.bf16.mxu0 0
    %3242 = vmatpush1.bf16.msra.mxu0 %v2865
    %3243 = vmatprep.subr.bf16.mxu0 0
    %3244 = vmatpush1.bf16.msra.mxu0 %v2866
    %3245 = vmatprep.subr.bf16.mxu0 0
    %3246 = vmatpush1.bf16.msra.mxu0 %v2867
    %3247 = vmatprep.subr.bf16.mxu0 0
    %3248 = vmatpush1.bf16.msra.mxu0 %v2868
    %3249 = vmatprep.subr.bf16.mxu0 0
    %3250 = vmatpush1.bf16.msra.mxu0 %v2869
    %3251 = vmatprep.subr.bf16.mxu0 0
    %3252 = vmatpush1.bf16.msra.mxu0 %v2870
    %3253 = vmatprep.subr.bf16.mxu0 0
    %3254 = vmatpush1.bf16.msra.mxu0 %v2871
    %3255 = vmatprep.subr.bf16.mxu0 0
    %3256 = vmatpush1.bf16.msra.mxu0 %v2872
    %3257 = vmatprep.mubr.bf16.mxu0 %v2298
    %3258 = vmatmul.mubr.bf16.gmra.mrb[0].mxu0 %v2297
    %v3259 = vpop.f32.mrb[0].mxu0
    %v3260 = vadd.f32 %v3220, %v3259
    %v3261 = vpop.f32.mrb[0].mxu0
    %v3262 = vpop.f32.mrb[0].mxu0
    %v3263 = vpop.f32.mrb[0].mxu0
    %3264 = vdwg.mxu0
    %v3265 = vpack.c.bf16 %v3260, %v3260
    %v3266 = vld [vmem:[%s4] sm:$0xff]
    %v3267 = vld [vmem:[%s4 + $0x8] sm:$0xff]
    %v3268 = vld [vmem:[%s4 + $0x10] sm:$0xff]
    %v3269 = vld [vmem:[%s4 + $0x18] sm:$0xff]
    %v3270 = vld [vmem:[%s4 + $0x20] sm:$0xff]
    %v3271 = vld [vmem:[%s4 + $0x28] sm:$0xff]
    %v3272 = vld [vmem:[%s4 + $0x30] sm:$0xff]
    %v3273 = vld [vmem:[%s4 + $0x38] sm:$0xff]
    %v3274 = vld [vmem:[%s4 + $0x40] sm:$0xff]
    %v3275 = vld [vmem:[%s4 + $0x48] sm:$0xff]
    %v3276 = vld [vmem:[%s4 + $0x50] sm:$0xff]
    %v3277 = vld [vmem:[%s4 + $0x58] sm:$0xff]
    %v3278 = vld [vmem:[%s4 + $0x60] sm:$0xff]
    %v3279 = vld [vmem:[%s4 + $0x68] sm:$0xff]
    %v3280 = vld [vmem:[%s4 + $0x70] sm:$0xff]
    %v3281 = vld [vmem:[%s4 + $0x78] sm:$0xff]
    %v3282 = vld [vmem:[%s4 + $0x80] sm:$0xff]
    %v3283 = vld [vmem:[%s4 + $0x88] sm:$0xff]
    %v3284 = vld [vmem:[%s4 + $0x90] sm:$0xff]
    %v3285 = vld [vmem:[%s4 + $0x98] sm:$0xff]
    %v3286 = vld [vmem:[%s4 + $0xa0] sm:$0xff]
    %v3287 = vld [vmem:[%s4 + $0xa8] sm:$0xff]
    %v3288 = vld [vmem:[%s4 + $0xb0] sm:$0xff]
    %v3289 = vld [vmem:[%s4 + $0xb8] sm:$0xff]
    %v3290 = vld [vmem:[%s4 + $0xc0] sm:$0xff]
    %v3291 = vld [vmem:[%s4 + $0xc8] sm:$0xff]
    %v3292 = vld [vmem:[%s4 + $0xd0] sm:$0xff]
    %v3293 = vld [vmem:[%s4 + $0xd8] sm:$0xff]
    %v3294 = vld [vmem:[%s4 + $0xe0] sm:$0xff]
    %v3295 = vld [vmem:[%s4 + $0xe8] sm:$0xff]
    %v3296 = vld [vmem:[%s4 + $0xf0] sm:$0xff]
    %v3297 = vld [vmem:[%s4 + $0xf8] sm:$0xff]
    %v3298 = vld [vmem:[%s4 + $0x100] sm:$0xff]
    %v3299 = vld [vmem:[%s4 + $0x108] sm:$0xff]
    %v3300 = vld [vmem:[%s4 + $0x110] sm:$0xff]
    %v3301 = vld [vmem:[%s4 + $0x118] sm:$0xff]
    %v3302 = vld [vmem:[%s4 + $0x120] sm:$0xff]
    %v3303 = vld [vmem:[%s4 + $0x128] sm:$0xff]
    %v3304 = vld [vmem:[%s4 + $0x130] sm:$0xff]
    %v3305 = vld [vmem:[%s4 + $0x138] sm:$0xff]
    %v3306 = vld [vmem:[%s4 + $0x140] sm:$0xff]
    %v3307 = vld [vmem:[%s4 + $0x148] sm:$0xff]
    %v3308 = vld [vmem:[%s4 + $0x150] sm:$0xff]
    %v3309 = vld [vmem:[%s4 + $0x158] sm:$0xff]
    %v3310 = vld [vmem:[%s4 + $0x160] sm:$0xff]
    %v3311 = vld [vmem:[%s4 + $0x168] sm:$0xff]
    %v3312 = vld [vmem:[%s4 + $0x170] sm:$0xff]
    %v3313 = vld [vmem:[%s4 + $0x178] sm:$0xff]
    %v3314 = vld [vmem:[%s4 + $0x180] sm:$0xff]
    %v3315 = vld [vmem:[%s4 + $0x188] sm:$0xff]
    %v3316 = vld [vmem:[%s4 + $0x190] sm:$0xff]
    %v3317 = vld [vmem:[%s4 + $0x198] sm:$0xff]
    %v3318 = vld [vmem:[%s4 + $0x1a0] sm:$0xff]
    %v3319 = vld [vmem:[%s4 + $0x1a8] sm:$0xff]
    %v3320 = vld [vmem:[%s4 + $0x1b0] sm:$0xff]
    %v3321 = vld [vmem:[%s4 + $0x1b8] sm:$0xff]
    %v3322 = vld [vmem:[%s10] sm:$0xff]
    %v3323 = vld [vmem:[%s10 + $0x8] sm:$0x3f]
    %v3326 = vlaneseq
    %v3327 = vshrl.u32 %v3326, 7
    %v3328 = vsub.s32 0, %v3327
    %v3329 = vrot.slane %v3322, %v3328
    %v3330 = vlaneseq
    %v3331 = vshrl.u32 %v3330, 7
    %v3332 = vsub.s32 1, %v3331
    %v3333 = vrot.slane %v3322, %v3332
    %v3334 = vlaneseq
    %v3335 = vshrl.u32 %v3334, 7
    %v3336 = vsub.s32 2, %v3335
    %v3337 = vrot.slane %v3322, %v3336
    %v3338 = vlaneseq
    %v3339 = vshrl.u32 %v3338, 7
    %v3340 = vsub.s32 3, %v3339
    %v3341 = vrot.slane %v3322, %v3340
    %v3342 = vlaneseq
    %v3343 = vshrl.u32 %v3342, 7
    %v3344 = vsub.s32 4, %v3343
    %v3345 = vrot.slane %v3322, %v3344
    %v3346 = vlaneseq
    %v3347 = vshrl.u32 %v3346, 7
    %v3348 = vsub.s32 5, %v3347
    %v3349 = vrot.slane %v3322, %v3348
    %v3350 = vlaneseq
    %v3351 = vshrl.u32 %v3350, 7
    %v3352 = vsub.s32 6, %v3351
    %v3353 = vrot.slane %v3322, %v3352
    %v3354 = vlaneseq
    %v3355 = vshrl.u32 %v3354, 7
    %v3356 = vsub.s32 7, %v3355
    %v3357 = vrot.slane %v3322, %v3356
    %v3358 = vlaneseq
    %v3359 = vshrl.u32 %v3358, 7
    %v3360 = vsub.s32 0, %v3359
    %v3361 = vrot.slane %v3323, %v3360
    %v3362 = vlaneseq
    %v3363 = vshrl.u32 %v3362, 7
    %v3364 = vsub.s32 1, %v3363
    %v3365 = vrot.slane %v3323, %v3364
    %v3366 = vlaneseq
    %v3367 = vshrl.u32 %v3366, 7
    %v3368 = vsub.s32 2, %v3367
    %v3369 = vrot.slane %v3323, %v3368
    %v3370 = vlaneseq
    %v3371 = vshrl.u32 %v3370, 7
    %v3372 = vsub.s32 3, %v3371
    %v3373 = vrot.slane %v3323, %v3372
    %v3374 = vlaneseq
    %v3375 = vshrl.u32 %v3374, 7
    %v3376 = vsub.s32 4, %v3375
    %v3377 = vrot.slane %v3323, %v3376
    %v3378 = vlaneseq
    %v3379 = vshrl.u32 %v3378, 7
    %v3380 = vsub.s32 5, %v3379
    %v3381 = vrot.slane %v3323, %v3380
    %v3452 = vunpack.c.l.b16 %v3266
    %v3453 = vunpack.c.h.b16 %v3266
    %v3454 = vunpack.c.l.b16 %v3267
    %v3455 = vunpack.c.h.b16 %v3267
    %v3456 = vunpack.c.l.b16 %v3268
    %v3457 = vunpack.c.h.b16 %v3268
    %v3458 = vunpack.c.l.b16 %v3269
    %v3459 = vunpack.c.h.b16 %v3269
    %v3460 = vunpack.c.l.b16 %v3270
    %v3461 = vunpack.c.h.b16 %v3270
    %v3462 = vunpack.c.l.b16 %v3271
    %v3463 = vunpack.c.h.b16 %v3271
    %v3464 = vunpack.c.l.b16 %v3272
    %v3465 = vunpack.c.h.b16 %v3272
    %v3466 = vunpack.c.l.b16 %v3273
    %v3467 = vunpack.c.h.b16 %v3273
    %v3468 = vunpack.c.l.b16 %v3274
    %v3469 = vunpack.c.h.b16 %v3274
    %v3470 = vunpack.c.l.b16 %v3275
    %v3471 = vunpack.c.h.b16 %v3275
    %v3472 = vunpack.c.l.b16 %v3276
    %v3473 = vunpack.c.h.b16 %v3276
    %v3474 = vunpack.c.l.b16 %v3277
    %v3475 = vunpack.c.h.b16 %v3277
    %v3476 = vunpack.c.l.b16 %v3278
    %v3477 = vunpack.c.h.b16 %v3278
    %v3478 = vunpack.c.l.b16 %v3279
    %v3479 = vunpack.c.h.b16 %v3279
    %v3480 = vunpack.c.l.b16 %v3280
    %v3481 = vunpack.c.h.b16 %v3280
    %v3482 = vunpack.c.l.b16 %v3281
    %v3483 = vunpack.c.h.b16 %v3281
    %v3484 = vunpack.c.l.b16 %v3282
    %v3485 = vunpack.c.h.b16 %v3282
    %v3486 = vunpack.c.l.b16 %v3283
    %v3487 = vunpack.c.h.b16 %v3283
    %v3488 = vunpack.c.l.b16 %v3284
    %v3489 = vunpack.c.h.b16 %v3284
    %v3490 = vunpack.c.l.b16 %v3285
    %v3491 = vunpack.c.h.b16 %v3285
    %v3492 = vunpack.c.l.b16 %v3286
    %v3493 = vunpack.c.h.b16 %v3286
    %v3494 = vunpack.c.l.b16 %v3287
    %v3495 = vunpack.c.h.b16 %v3287
    %v3496 = vunpack.c.l.b16 %v3288
    %v3497 = vunpack.c.h.b16 %v3288
    %v3498 = vunpack.c.l.b16 %v3289
    %v3499 = vunpack.c.h.b16 %v3289
    %v3500 = vunpack.c.l.b16 %v3290
    %v3501 = vunpack.c.h.b16 %v3290
    %v3502 = vunpack.c.l.b16 %v3291
    %v3503 = vunpack.c.h.b16 %v3291
    %v3504 = vunpack.c.l.b16 %v3292
    %v3505 = vunpack.c.h.b16 %v3292
    %v3506 = vunpack.c.l.b16 %v3293
    %v3507 = vunpack.c.h.b16 %v3293
    %v3508 = vunpack.c.l.b16 %v3294
    %v3509 = vunpack.c.h.b16 %v3294
    %v3510 = vunpack.c.l.b16 %v3295
    %v3511 = vunpack.c.h.b16 %v3295
    %v3512 = vunpack.c.l.b16 %v3296
    %v3513 = vunpack.c.h.b16 %v3296
    %v3514 = vunpack.c.l.b16 %v3297
    %v3515 = vunpack.c.h.b16 %v3297
    %v3516 = vunpack.c.l.b16 %v3298
    %v3517 = vunpack.c.h.b16 %v3298
    %v3518 = vunpack.c.l.b16 %v3299
    %v3519 = vunpack.c.h.b16 %v3299
    %v3520 = vunpack.c.l.b16 %v3300
    %v3521 = vunpack.c.h.b16 %v3300
    %v3522 = vunpack.c.l.b16 %v3301
    %v3523 = vunpack.c.h.b16 %v3301
    %v3524 = vunpack.c.l.b16 %v3302
    %v3525 = vunpack.c.h.b16 %v3302
    %v3526 = vunpack.c.l.b16 %v3303
    %v3527 = vunpack.c.h.b16 %v3303
    %v3528 = vunpack.c.l.b16 %v3304
    %v3529 = vunpack.c.h.b16 %v3304
    %v3530 = vunpack.c.l.b16 %v3305
    %v3531 = vunpack.c.h.b16 %v3305
    %v3532 = vunpack.c.l.b16 %v3306
    %v3533 = vunpack.c.h.b16 %v3306
    %v3534 = vunpack.c.l.b16 %v3307
    %v3535 = vunpack.c.h.b16 %v3307
    %v3536 = vunpack.c.l.b16 %v3308
    %v3537 = vunpack.c.h.b16 %v3308
    %v3538 = vunpack.c.l.b16 %v3309
    %v3539 = vunpack.c.h.b16 %v3309
    %v3540 = vunpack.c.l.b16 %v3310
    %v3541 = vunpack.c.h.b16 %v3310
    %v3542 = vunpack.c.l.b16 %v3311
    %v3543 = vunpack.c.h.b16 %v3311
    %v3544 = vunpack.c.l.b16 %v3312
    %v3545 = vunpack.c.h.b16 %v3312
    %v3546 = vunpack.c.l.b16 %v3313
    %v3547 = vunpack.c.h.b16 %v3313
    %v3548 = vunpack.c.l.b16 %v3314
    %v3549 = vunpack.c.h.b16 %v3314
    %v3550 = vunpack.c.l.b16 %v3315
    %v3551 = vunpack.c.h.b16 %v3315
    %v3552 = vunpack.c.l.b16 %v3316
    %v3553 = vunpack.c.h.b16 %v3316
    %v3554 = vunpack.c.l.b16 %v3317
    %v3555 = vunpack.c.h.b16 %v3317
    %v3556 = vunpack.c.l.b16 %v3318
    %v3557 = vunpack.c.h.b16 %v3318
    %v3558 = vunpack.c.l.b16 %v3319
    %v3559 = vunpack.c.h.b16 %v3319
    %v3560 = vunpack.c.l.b16 %v3320
    %v3561 = vunpack.c.h.b16 %v3320
    %v3562 = vunpack.c.l.b16 %v3321
    %v3563 = vunpack.c.h.b16 %v3321
    %v3564 = vpack.c.b16 %v3466, %v3452
    %v3565 = vpack.c.b16 %v3467, %v3453
    %v3566 = vpack.c.b16 %v3468, %v3454
    %v3567 = vpack.c.b16 %v3469, %v3455
    %v3568 = vpack.c.b16 %v3470, %v3456
    %v3569 = vpack.c.b16 %v3471, %v3457
    %v3570 = vpack.c.b16 %v3472, %v3458
    %v3571 = vpack.c.b16 %v3473, %v3459
    %v3572 = vpack.c.b16 %v3474, %v3460
    %v3573 = vpack.c.b16 %v3475, %v3461
    %v3574 = vpack.c.b16 %v3476, %v3462
    %v3575 = vpack.c.b16 %v3477, %v3463
    %v3576 = vpack.c.b16 %v3478, %v3464
    %v3577 = vpack.c.b16 %v3479, %v3465
    %v3578 = vpack.c.b16 %v3494, %v3480
    %v3579 = vpack.c.b16 %v3495, %v3481
    %v3580 = vpack.c.b16 %v3496, %v3482
    %v3581 = vpack.c.b16 %v3497, %v3483
    %v3582 = vpack.c.b16 %v3498, %v3484
    %v3583 = vpack.c.b16 %v3499, %v3485
    %v3584 = vpack.c.b16 %v3500, %v3486
    %v3585 = vpack.c.b16 %v3501, %v3487
    %v3586 = vpack.c.b16 %v3502, %v3488
    %v3587 = vpack.c.b16 %v3503, %v3489
    %v3588 = vpack.c.b16 %v3504, %v3490
    %v3589 = vpack.c.b16 %v3505, %v3491
    %v3590 = vpack.c.b16 %v3506, %v3492
    %v3591 = vpack.c.b16 %v3507, %v3493
    %v3592 = vpack.c.b16 %v3522, %v3508
    %v3593 = vpack.c.b16 %v3523, %v3509
    %v3594 = vpack.c.b16 %v3524, %v3510
    %v3595 = vpack.c.b16 %v3525, %v3511
    %v3596 = vpack.c.b16 %v3526, %v3512
    %v3597 = vpack.c.b16 %v3527, %v3513
    %v3598 = vpack.c.b16 %v3528, %v3514
    %v3599 = vpack.c.b16 %v3529, %v3515
    %v3600 = vpack.c.b16 %v3530, %v3516
    %v3601 = vpack.c.b16 %v3531, %v3517
    %v3602 = vpack.c.b16 %v3532, %v3518
    %v3603 = vpack.c.b16 %v3533, %v3519
    %v3604 = vpack.c.b16 %v3534, %v3520
    %v3605 = vpack.c.b16 %v3535, %v3521
    %v3606 = vpack.c.b16 %v3550, %v3536
    %v3607 = vpack.c.b16 %v3551, %v3537
    %v3608 = vpack.c.b16 %v3552, %v3538
    %v3609 = vpack.c.b16 %v3553, %v3539
    %v3610 = vpack.c.b16 %v3554, %v3540
    %v3611 = vpack.c.b16 %v3555, %v3541
    %v3612 = vpack.c.b16 %v3556, %v3542
    %v3613 = vpack.c.b16 %v3557, %v3543
    %v3614 = vpack.c.b16 %v3558, %v3544
    %v3615 = vpack.c.b16 %v3559, %v3545
    %v3616 = vpack.c.b16 %v3560, %v3546
    %v3617 = vpack.c.b16 %v3561, %v3547
    %v3618 = vpack.c.b16 %v3562, %v3548
    %v3619 = vpack.c.b16 %v3563, %v3549
    %vm3676 = vcmask 523264
    %v3678 = vsel %vm3676, %v3265, 0
    %3680 = vmatprep.subr.bf16.mxu0 %v3565
    %3681 = vmatpush1.bf16.msra.mxu0 %v3564
    %3682 = vmatprep.subr.bf16.mxu0 %v3579
    %3683 = vmatpush1.bf16.msra.mxu0 %v3578
    %3684 = vmatprep.subr.bf16.mxu0 %v3593
    %3685 = vmatpush1.bf16.msra.mxu0 %v3592
    %3686 = vmatprep.subr.bf16.mxu0 %v3607
    %3687 = vmatpush1.bf16.msra.mxu0 %v3606
    %3688 = vmatprep.subr.bf16.mxu0 0
    %3689 = vmatpush1.bf16.msra.mxu0 0
    %3690 = vmatprep.subr.bf16.mxu0 0
    %3691 = vmatpush1.bf16.msra.mxu0 0
    %3692 = vmatprep.subr.bf16.mxu0 0
    %3693 = vmatpush1.bf16.msra.mxu0 0
    %3694 = vmatprep.subr.bf16.mxu0 0
    %3695 = vmatpush1.bf16.msra.mxu0 0
    %3696 = vmatprep.subr.bf16.mxu0 0
    %3697 = vmatpush1.bf16.msra.mxu0 0
    %3698 = vmatprep.subr.bf16.mxu0 0
    %3699 = vmatpush1.bf16.msra.mxu0 0
    %3700 = vmatprep.subr.bf16.mxu0 0
    %3701 = vmatpush1.bf16.msra.mxu0 0
    %3702 = vmatprep.subr.bf16.mxu0 0
    %3703 = vmatpush1.bf16.msra.mxu0 0
    %3704 = vmatprep.subr.bf16.mxu0 0
    %3705 = vmatpush1.bf16.msra.mxu0 0
    %3706 = vmatprep.subr.bf16.mxu0 0
    %3707 = vmatpush1.bf16.msra.mxu0 0
    %3708 = vmatprep.subr.bf16.mxu0 0
    %3709 = vmatpush1.bf16.msra.mxu0 0
    %3710 = vmatprep.subr.bf16.mxu0 0
    %3711 = vmatpush1.bf16.msra.mxu0 0
    %3712 = vmatprep.mubr.bf16.mxu0 0
    %3713 = vmatmul.mubr.bf16.gmra.mrb[0].mxu0 %v3678
    %v3714 = vpop.f32.mrb[0].mxu0
    %v3715 = vadd.f32 %v3329, %v3714
    %v3716 = vpop.f32.mrb[0].mxu0
    %v3717 = vadd.f32 %v3333, %v3716
    %v3718 = vpop.f32.mrb[0].mxu0
    %v3719 = vpop.f32.mrb[0].mxu0
    %3720 = vdwg.mxu0
    %3721 = vmatprep.subr.bf16.mxu0 %v3567
    %3722 = vmatpush1.bf16.msra.mxu0 %v3566
    %3723 = vmatprep.subr.bf16.mxu0 %v3581
    %3724 = vmatpush1.bf16.msra.mxu0 %v3580
    %3725 = vmatprep.subr.bf16.mxu0 %v3595
    %3726 = vmatpush1.bf16.msra.mxu0 %v3594
    %3727 = vmatprep.subr.bf16.mxu0 %v3609
    %3728 = vmatpush1.bf16.msra.mxu0 %v3608
    %3729 = vmatprep.subr.bf16.mxu0 0
    %3730 = vmatpush1.bf16.msra.mxu0 0
    %3731 = vmatprep.subr.bf16.mxu0 0
    %3732 = vmatpush1.bf16.msra.mxu0 0
    %3733 = vmatprep.subr.bf16.mxu0 0
    %3734 = vmatpush1.bf16.msra.mxu0 0
    %3735 = vmatprep.subr.bf16.mxu0 0
    %3736 = vmatpush1.bf16.msra.mxu0 0
    %3737 = vmatprep.subr.bf16.mxu0 0
    %3738 = vmatpush1.bf16.msra.mxu0 0
    %3739 = vmatprep.subr.bf16.mxu0 0
    %3740 = vmatpush1.bf16.msra.mxu0 0
    %3741 = vmatprep.subr.bf16.mxu0 0
    %3742 = vmatpush1.bf16.msra.mxu0 0
    %3743 = vmatprep.subr.bf16.mxu0 0
    %3744 = vmatpush1.bf16.msra.mxu0 0
    %3745 = vmatprep.subr.bf16.mxu0 0
    %3746 = vmatpush1.bf16.msra.mxu0 0
    %3747 = vmatprep.subr.bf16.mxu0 0
    %3748 = vmatpush1.bf16.msra.mxu0 0
    %3749 = vmatprep.subr.bf16.mxu0 0
    %3750 = vmatpush1.bf16.msra.mxu0 0
    %3751 = vmatprep.subr.bf16.mxu0 0
    %3752 = vmatpush1.bf16.msra.mxu0 0
    %3753 = vmatprep.mubr.bf16.mxu0 0
    %3754 = vmatmul.mubr.bf16.gmra.mrb[0].mxu0 %v3678
    %v3755 = vpop.f32.mrb[0].mxu0
    %v3756 = vadd.f32 %v3337, %v3755
    %v3757 = vpop.f32.mrb[0].mxu0
    %v3758 = vadd.f32 %v3341, %v3757
    %v3759 = vpop.f32.mrb[0].mxu0
    %v3760 = vpop.f32.mrb[0].mxu0
    %3761 = vdwg.mxu0
    %3762 = vmatprep.subr.bf16.mxu0 %v3569
    %3763 = vmatpush1.bf16.msra.mxu0 %v3568
    %3764 = vmatprep.subr.bf16.mxu0 %v3583
    %3765 = vmatpush1.bf16.msra.mxu0 %v3582
    %3766 = vmatprep.subr.bf16.mxu0 %v3597
    %3767 = vmatpush1.bf16.msra.mxu0 %v3596
    %3768 = vmatprep.subr.bf16.mxu0 %v3611
    %3769 = vmatpush1.bf16.msra.mxu0 %v3610
    %3770 = vmatprep.subr.bf16.mxu0 0
    %3771 = vmatpush1.bf16.msra.mxu0 0
    %3772 = vmatprep.subr.bf16.mxu0 0
    %3773 = vmatpush1.bf16.msra.mxu0 0
    %3774 = vmatprep.subr.bf16.mxu0 0
    %3775 = vmatpush1.bf16.msra.mxu0 0
    %3776 = vmatprep.subr.bf16.mxu0 0
    %3777 = vmatpush1.bf16.msra.mxu0 0
    %3778 = vmatprep.subr.bf16.mxu0 0
    %3779 = vmatpush1.bf16.msra.mxu0 0
    %3780 = vmatprep.subr.bf16.mxu0 0
    %3781 = vmatpush1.bf16.msra.mxu0 0
    %3782 = vmatprep.subr.bf16.mxu0 0
    %3783 = vmatpush1.bf16.msra.mxu0 0
    %3784 = vmatprep.subr.bf16.mxu0 0
    %3785 = vmatpush1.bf16.msra.mxu0 0
    %3786 = vmatprep.subr.bf16.mxu0 0
    %3787 = vmatpush1.bf16.msra.mxu0 0
    %3788 = vmatprep.subr.bf16.mxu0 0
    %3789 = vmatpush1.bf16.msra.mxu0 0
    %3790 = vmatprep.subr.bf16.mxu0 0
    %3791 = vmatpush1.bf16.msra.mxu0 0
    %3792 = vmatprep.subr.bf16.mxu0 0
    %3793 = vmatpush1.bf16.msra.mxu0 0
    %3794 = vmatprep.mubr.bf16.mxu0 0
    %3795 = vmatmul.mubr.bf16.gmra.mrb[0].mxu0 %v3678
    %v3796 = vpop.f32.mrb[0].mxu0
    %v3797 = vadd.f32 %v3345, %v3796
    %v3798 = vpop.f32.mrb[0].mxu0
    %v3799 = vadd.f32 %v3349, %v3798
    %v3800 = vpop.f32.mrb[0].mxu0
    %v3801 = vpop.f32.mrb[0].mxu0
    %3802 = vdwg.mxu0
    %3803 = vmatprep.subr.bf16.mxu0 %v3571
    %3804 = vmatpush1.bf16.msra.mxu0 %v3570
    %3805 = vmatprep.subr.bf16.mxu0 %v3585
    %3806 = vmatpush1.bf16.msra.mxu0 %v3584
    %3807 = vmatprep.subr.bf16.mxu0 %v3599
    %3808 = vmatpush1.bf16.msra.mxu0 %v3598
    %3809 = vmatprep.subr.bf16.mxu0 %v3613
    %3810 = vmatpush1.bf16.msra.mxu0 %v3612
    %3811 = vmatprep.subr.bf16.mxu0 0
    %3812 = vmatpush1.bf16.msra.mxu0 0
    %3813 = vmatprep.subr.bf16.mxu0 0
    %3814 = vmatpush1.bf16.msra.mxu0 0
    %3815 = vmatprep.subr.bf16.mxu0 0
    %3816 = vmatpush1.bf16.msra.mxu0 0
    %3817 = vmatprep.subr.bf16.mxu0 0
    %3818 = vmatpush1.bf16.msra.mxu0 0
    %3819 = vmatprep.subr.bf16.mxu0 0
    %3820 = vmatpush1.bf16.msra.mxu0 0
    %3821 = vmatprep.subr.bf16.mxu0 0
    %3822 = vmatpush1.bf16.msra.mxu0 0
    %3823 = vmatprep.subr.bf16.mxu0 0
    %3824 = vmatpush1.bf16.msra.mxu0 0
    %3825 = vmatprep.subr.bf16.mxu0 0
    %3826 = vmatpush1.bf16.msra.mxu0 0
    %3827 = vmatprep.subr.bf16.mxu0 0
    %3828 = vmatpush1.bf16.msra.mxu0 0
    %3829 = vmatprep.subr.bf16.mxu0 0
    %3830 = vmatpush1.bf16.msra.mxu0 0
    %3831 = vmatprep.subr.bf16.mxu0 0
    %3832 = vmatpush1.bf16.msra.mxu0 0
    %3833 = vmatprep.subr.bf16.mxu0 0
    %3834 = vmatpush1.bf16.msra.mxu0 0
    %3835 = vmatprep.mubr.bf16.mxu0 0
    %3836 = vmatmul.mubr.bf16.gmra.mrb[0].mxu0 %v3678
    %v3837 = vpop.f32.mrb[0].mxu0
    %v3838 = vadd.f32 %v3353, %v3837
    %v3839 = vpop.f32.mrb[0].mxu0
    %v3840 = vadd.f32 %v3357, %v3839
    %v3841 = vpop.f32.mrb[0].mxu0
    %v3842 = vpop.f32.mrb[0].mxu0
    %3843 = vdwg.mxu0
    %3844 = vmatprep.subr.bf16.mxu0 %v3573
    %3845 = vmatpush1.bf16.msra.mxu0 %v3572
    %3846 = vmatprep.subr.bf16.mxu0 %v3587
    %3847 = vmatpush1.bf16.msra.mxu0 %v3586
    %3848 = vmatprep.subr.bf16.mxu0 %v3601
    %3849 = vmatpush1.bf16.msra.mxu0 %v3600
    %3850 = vmatprep.subr.bf16.mxu0 %v3615
    %3851 = vmatpush1.bf16.msra.mxu0 %v3614
    %3852 = vmatprep.subr.bf16.mxu0 0
    %3853 = vmatpush1.bf16.msra.mxu0 0
    %3854 = vmatprep.subr.bf16.mxu0 0
    %3855 = vmatpush1.bf16.msra.mxu0 0
    %3856 = vmatprep.subr.bf16.mxu0 0
    %3857 = vmatpush1.bf16.msra.mxu0 0
    %3858 = vmatprep.subr.bf16.mxu0 0
    %3859 = vmatpush1.bf16.msra.mxu0 0
    %3860 = vmatprep.subr.bf16.mxu0 0
    %3861 = vmatpush1.bf16.msra.mxu0 0
    %3862 = vmatprep.subr.bf16.mxu0 0
    %3863 = vmatpush1.bf16.msra.mxu0 0
    %3864 = vmatprep.subr.bf16.mxu0 0
    %3865 = vmatpush1.bf16.msra.mxu0 0
    %3866 = vmatprep.subr.bf16.mxu0 0
    %3867 = vmatpush1.bf16.msra.mxu0 0
    %3868 = vmatprep.subr.bf16.mxu0 0
    %3869 = vmatpush1.bf16.msra.mxu0 0
    %3870 = vmatprep.subr.bf16.mxu0 0
    %3871 = vmatpush1.bf16.msra.mxu0 0
    %3872 = vmatprep.subr.bf16.mxu0 0
    %3873 = vmatpush1.bf16.msra.mxu0 0
    %3874 = vmatprep.subr.bf16.mxu0 0
    %3875 = vmatpush1.bf16.msra.mxu0 0
    %3876 = vmatprep.mubr.bf16.mxu0 0
    %3877 = vmatmul.mubr.bf16.gmra.mrb[0].mxu0 %v3678
    %v3878 = vpop.f32.mrb[0].mxu0
    %v3879 = vadd.f32 %v3361, %v3878
    %v3880 = vpop.f32.mrb[0].mxu0
    %v3881 = vadd.f32 %v3365, %v3880
    %v3882 = vpop.f32.mrb[0].mxu0
    %v3883 = vpop.f32.mrb[0].mxu0
    %3884 = vdwg.mxu0
    %3885 = vmatprep.subr.bf16.mxu0 %v3575
    %3886 = vmatpush1.bf16.msra.mxu0 %v3574
    %3887 = vmatprep.subr.bf16.mxu0 %v3589
    %3888 = vmatpush1.bf16.msra.mxu0 %v3588
    %3889 = vmatprep.subr.bf16.mxu0 %v3603
    %3890 = vmatpush1.bf16.msra.mxu0 %v3602
    %3891 = vmatprep.subr.bf16.mxu0 %v3617
    %3892 = vmatpush1.bf16.msra.mxu0 %v3616
    %3893 = vmatprep.subr.bf16.mxu0 0
    %3894 = vmatpush1.bf16.msra.mxu0 0
    %3895 = vmatprep.subr.bf16.mxu0 0
    %3896 = vmatpush1.bf16.msra.mxu0 0
    %3897 = vmatprep.subr.bf16.mxu0 0
    %3898 = vmatpush1.bf16.msra.mxu0 0
    %3899 = vmatprep.subr.bf16.mxu0 0
    %3900 = vmatpush1.bf16.msra.mxu0 0
    %3901 = vmatprep.subr.bf16.mxu0 0
    %3902 = vmatpush1.bf16.msra.mxu0 0
    %3903 = vmatprep.subr.bf16.mxu0 0
    %3904 = vmatpush1.bf16.msra.mxu0 0
    %3905 = vmatprep.subr.bf16.mxu0 0
    %3906 = vmatpush1.bf16.msra.mxu0 0
    %3907 = vmatprep.subr.bf16.mxu0 0
    %3908 = vmatpush1.bf16.msra.mxu0 0
    %3909 = vmatprep.subr.bf16.mxu0 0
    %3910 = vmatpush1.bf16.msra.mxu0 0
    %3911 = vmatprep.subr.bf16.mxu0 0
    %3912 = vmatpush1.bf16.msra.mxu0 0
    %3913 = vmatprep.subr.bf16.mxu0 0
    %3914 = vmatpush1.bf16.msra.mxu0 0
    %3915 = vmatprep.subr.bf16.mxu0 0
    %3916 = vmatpush1.bf16.msra.mxu0 0
    %3917 = vmatprep.mubr.bf16.mxu0 0
    %3918 = vmatmul.mubr.bf16.gmra.mrb[0].mxu0 %v3678
    %v3919 = vpop.f32.mrb[0].mxu0
    %v3920 = vadd.f32 %v3369, %v3919
    %v3921 = vpop.f32.mrb[0].mxu0
    %v3922 = vadd.f32 %v3373, %v3921
    %v3923 = vpop.f32.mrb[0].mxu0
    %v3924 = vpop.f32.mrb[0].mxu0
    %3925 = vdwg.mxu0
    %3926 = vmatprep.subr.bf16.mxu0 %v3577
    %3927 = vmatpush1.bf16.msra.mxu0 %v3576
    %3928 = vmatprep.subr.bf16.mxu0 %v3591
    %3929 = vmatpush1.bf16.msra.mxu0 %v3590
    %3930 = vmatprep.subr.bf16.mxu0 %v3605
    %3931 = vmatpush1.bf16.msra.mxu0 %v3604
    %3932 = vmatprep.subr.bf16.mxu0 %v3619
    %3933 = vmatpush1.bf16.msra.mxu0 %v3618
    %3934 = vmatprep.subr.bf16.mxu0 0
    %3935 = vmatpush1.bf16.msra.mxu0 0
    %3936 = vmatprep.subr.bf16.mxu0 0
    %3937 = vmatpush1.bf16.msra.mxu0 0
    %3938 = vmatprep.subr.bf16.mxu0 0
    %3939 = vmatpush1.bf16.msra.mxu0 0
    %3940 = vmatprep.subr.bf16.mxu0 0
    %3941 = vmatpush1.bf16.msra.mxu0 0
    %3942 = vmatprep.subr.bf16.mxu0 0
    %3943 = vmatpush1.bf16.msra.mxu0 0
    %3944 = vmatprep.subr.bf16.mxu0 0
    %3945 = vmatpush1.bf16.msra.mxu0 0
    %3946 = vmatprep.subr.bf16.mxu0 0
    %3947 = vmatpush1.bf16.msra.mxu0 0
    %3948 = vmatprep.subr.bf16.mxu0 0
    %3949 = vmatpush1.bf16.msra.mxu0 0
    %3950 = vmatprep.subr.bf16.mxu0 0
    %3951 = vmatpush1.bf16.msra.mxu0 0
    %3952 = vmatprep.subr.bf16.mxu0 0
    %3953 = vmatpush1.bf16.msra.mxu0 0
    %3954 = vmatprep.subr.bf16.mxu0 0
    %3955 = vmatpush1.bf16.msra.mxu0 0
    %3956 = vmatprep.subr.bf16.mxu0 0
    %3957 = vmatpush1.bf16.msra.mxu0 0
    %3958 = vmatprep.mubr.bf16.mxu0 0
    %3959 = vmatmul.mubr.bf16.gmra.mrb[0].mxu0 %v3678
    %v3960 = vpop.f32.mrb[0].mxu0
    %v3961 = vadd.f32 %v3377, %v3960
    %v3962 = vpop.f32.mrb[0].mxu0
    %v3963 = vadd.f32 %v3381, %v3962
    %v3964 = vpop.f32.mrb[0].mxu0
    %v3965 = vpop.f32.mrb[0].mxu0
    %3966 = vdwg.mxu0
    %v3967 = vmax.f32 %v3715, 0.0
    %v3968 = vmax.f32 %v3717, 0.0
    %v3969 = vmax.f32 %v3756, 0.0
    %v3970 = vmax.f32 %v3758, 0.0
    %v3971 = vmax.f32 %v3797, 0.0
    %v3972 = vmax.f32 %v3799, 0.0
    %v3973 = vmax.f32 %v3838, 0.0
    %v3974 = vmax.f32 %v3840, 0.0
    %v3975 = vmax.f32 %v3879, 0.0
    %v3976 = vmax.f32 %v3881, 0.0
    %v3977 = vmax.f32 %v3920, 0.0
    %v3978 = vmax.f32 %v3922, 0.0
    %v3979 = vmax.f32 %v3961, 0.0
    %v3980 = vmax.f32 %v3963, 0.0
    %v3981 = vpack.c.bf16 %v3967, %v3967
    %v3982 = vpack.c.bf16 %v3968, %v3968
    %3983 = vst [vmem:[#allocation3] sm:$0xf] %v3981
    %3984 = vst [vmem:[#allocation3 + $0x8] sm:$0xf] %v3982
    %v3985 = vpack.c.bf16 %v3969, %v3969
    %v3986 = vpack.c.bf16 %v3970, %v3970
    %v3989 = vrot.slane %v3985, 4
    %v3990 = vrot.slane %v3986, 4
    %3993 = vst [vmem:[#allocation3] sm:$0xf0] %v3989
    %3994 = vst [vmem:[#allocation3 + $0x8] sm:$0xf0] %v3990
    %v3995 = vpack.c.bf16 %v3971, %v3971
    %v3996 = vpack.c.bf16 %v3972, %v3972
    %3997 = vst [vmem:[#allocation3 + $0x10] sm:$0xf] %v3995
    %3998 = vst [vmem:[#allocation3 + $0x18] sm:$0xf] %v3996
    %v3999 = vpack.c.bf16 %v3973, %v3973
    %v4000 = vpack.c.bf16 %v3974, %v3974
    %v4003 = vrot.slane %v3999, 4
    %v4004 = vrot.slane %v4000, 4
    %4007 = vst [vmem:[#allocation3 + $0x10] sm:$0xf0] %v4003
    %4008 = vst [vmem:[#allocation3 + $0x18] sm:$0xf0] %v4004
    %v4009 = vpack.c.bf16 %v3975, %v3975
    %v4010 = vpack.c.bf16 %v3976, %v3976
    %4011 = vst [vmem:[#allocation3 + $0x20] sm:$0xf] %v4009
    %4012 = vst [vmem:[#allocation3 + $0x28] sm:$0xf] %v4010
    %v4013 = vpack.c.bf16 %v3977, %v3977
    %v4014 = vpack.c.bf16 %v3978, %v3978
    %v4017 = vrot.slane %v4013, 4
    %v4018 = vrot.slane %v4014, 4
    %4021 = vst [vmem:[#allocation3 + $0x20] sm:$0xf0] %v4017
    %4022 = vst [vmem:[#allocation3 + $0x28] sm:$0xf0] %v4018
    %v4023 = vpack.c.bf16 %v3979, %v3979
    %v4024 = vpack.c.bf16 %v3980, %v3980
    %4025 = vst [vmem:[#allocation3 + $0x30] sm:$0xf] %v4023
    %4026 = vst [vmem:[#allocation3 + $0x38] sm:$0xf] %v4024
    %v4027 = vld [vmem:[#allocation3] sm:$0xff]
    %v4028 = vld [vmem:[#allocation3 + $0x8] sm:$0xff]
    %v4029 = vld [vmem:[#allocation3 + $0x10] sm:$0xff]
    %v4030 = vld [vmem:[#allocation3 + $0x18] sm:$0xff]
    %v4031 = vld [vmem:[#allocation3 + $0x20] sm:$0xff]
    %v4032 = vld [vmem:[#allocation3 + $0x28] sm:$0xff]
    %v4033 = vld [vmem:[#allocation3 + $0x30] sm:$0xf]
    %v4034 = vld [vmem:[#allocation3 + $0x38] sm:$0xf]
    %v4035 = vld [vmem:[#allocation3] sm:$0xf0]
    %v4036 = vld [vmem:[#allocation3 + $0x8] sm:$0xf0]
    %v4037 = vld [vmem:[#allocation3 + $0x30] sm:$0xff]
    %v4038 = vld [vmem:[#allocation3 + $0x38] sm:$0xff]
    %v4039 = vld [vmem:[%s11] sm:$0x3]
    %s4040 = scalar_lea.vmem %s5, 256
    %v4041 = vld [vmem:[%s4040] sm:$0xff]
    %v4042 = vld [vmem:[%s4040 + $0x8] sm:$0xff]
    %v4043 = vld [vmem:[%s4040 + $0x10] sm:$0xff]
    %v4044 = vld [vmem:[%s4040 + $0x18] sm:$0xff]
    %v4045 = vld [vmem:[%s4040 + $0x20] sm:$0xff]
    %v4046 = vld [vmem:[%s4040 + $0x28] sm:$0xff]
    %v4047 = vld [vmem:[%s4040 + $0x30] sm:$0xff]
    %v4048 = vld [vmem:[%s4040 + $0x38] sm:$0xff]
    %v4049 = vld [vmem:[%s4040 + $0x40] sm:$0xff]
    %v4050 = vld [vmem:[%s4040 + $0x48] sm:$0xff]
    %v4051 = vld [vmem:[%s4040 + $0x50] sm:$0xff]
    %v4052 = vld [vmem:[%s4040 + $0x58] sm:$0xff]
    %v4053 = vld [vmem:[%s4040 + $0x60] sm:$0xff]
    %v4054 = vld [vmem:[%s4040 + $0x68] sm:$0xff]
    %v4055 = vld [vmem:[%s4040 + $0x70] sm:$0xff]
    %v4056 = vld [vmem:[%s4040 + $0x78] sm:$0xff]
    %v4057 = vld [vmem:[%s4040 + $0x80] sm:$0xff]
    %v4058 = vld [vmem:[%s4040 + $0x88] sm:$0xff]
    %v4059 = vld [vmem:[%s4040 + $0x90] sm:$0xff]
    %v4060 = vld [vmem:[%s4040 + $0x98] sm:$0xff]
    %v4061 = vld [vmem:[%s4040 + $0xa0] sm:$0xff]
    %v4062 = vld [vmem:[%s4040 + $0xa8] sm:$0xff]
    %v4063 = vld [vmem:[%s4040 + $0xb0] sm:$0xff]
    %v4064 = vld [vmem:[%s4040 + $0xb8] sm:$0xff]
    %v4065 = vld [vmem:[%s4040 + $0xc0] sm:$0xff]
    %v4066 = vld [vmem:[%s4040 + $0xc8] sm:$0xff]
    %v4067 = vld [vmem:[%s4040 + $0xd0] sm:$0xff]
    %v4068 = vld [vmem:[%s4040 + $0xd8] sm:$0xff]
    %v4069 = vld [vmem:[%s4040 + $0xe0] sm:$0xff]
    %v4070 = vld [vmem:[%s4040 + $0xe8] sm:$0xff]
    %v4071 = vld [vmem:[%s4040 + $0xf0] sm:$0xff]
    %v4072 = vld [vmem:[%s4040 + $0xf8] sm:$0xff]
    %v4074 = vlaneseq
    %v4075 = vshrl.u32 %v4074, 7
    %v4076 = vsub.s32 0, %v4075
    %v4077 = vrot.slane %v4039, %v4076
    %v4078 = vlaneseq
    %v4079 = vshrl.u32 %v4078, 7
    %v4080 = vsub.s32 1, %v4079
    %v4081 = vrot.slane %v4039, %v4080
    %v4116 = vunpack.c.l.b16 %v4041
    %v4117 = vunpack.c.h.b16 %v4041
    %v4118 = vunpack.c.l.b16 %v4042
    %v4119 = vunpack.c.h.b16 %v4042
    %v4120 = vunpack.c.l.b16 %v4043
    %v4121 = vunpack.c.h.b16 %v4043
    %v4122 = vunpack.c.l.b16 %v4044
    %v4123 = vunpack.c.h.b16 %v4044
    %v4124 = vunpack.c.l.b16 %v4045
    %v4125 = vunpack.c.h.b16 %v4045
    %v4126 = vunpack.c.l.b16 %v4046
    %v4127 = vunpack.c.h.b16 %v4046
    %v4128 = vunpack.c.l.b16 %v4047
    %v4129 = vunpack.c.h.b16 %v4047
    %v4130 = vunpack.c.l.b16 %v4048
    %v4131 = vunpack.c.h.b16 %v4048
    %v4132 = vunpack.c.l.b16 %v4049
    %v4133 = vunpack.c.h.b16 %v4049
    %v4134 = vunpack.c.l.b16 %v4050
    %v4135 = vunpack.c.h.b16 %v4050
    %v4136 = vunpack.c.l.b16 %v4051
    %v4137 = vunpack.c.h.b16 %v4051
    %v4138 = vunpack.c.l.b16 %v4052
    %v4139 = vunpack.c.h.b16 %v4052
    %v4140 = vunpack.c.l.b16 %v4053
    %v4141 = vunpack.c.h.b16 %v4053
    %v4142 = vunpack.c.l.b16 %v4054
    %v4143 = vunpack.c.h.b16 %v4054
    %v4144 = vunpack.c.l.b16 %v4055
    %v4145 = vunpack.c.h.b16 %v4055
    %v4146 = vunpack.c.l.b16 %v4056
    %v4147 = vunpack.c.h.b16 %v4056
    %v4148 = vunpack.c.l.b16 %v4057
    %v4149 = vunpack.c.h.b16 %v4057
    %v4150 = vunpack.c.l.b16 %v4058
    %v4151 = vunpack.c.h.b16 %v4058
    %v4152 = vunpack.c.l.b16 %v4059
    %v4153 = vunpack.c.h.b16 %v4059
    %v4154 = vunpack.c.l.b16 %v4060
    %v4155 = vunpack.c.h.b16 %v4060
    %v4156 = vunpack.c.l.b16 %v4061
    %v4157 = vunpack.c.h.b16 %v4061
    %v4158 = vunpack.c.l.b16 %v4062
    %v4159 = vunpack.c.h.b16 %v4062
    %v4160 = vunpack.c.l.b16 %v4063
    %v4161 = vunpack.c.h.b16 %v4063
    %v4162 = vunpack.c.l.b16 %v4064
    %v4163 = vunpack.c.h.b16 %v4064
    %v4164 = vunpack.c.l.b16 %v4065
    %v4165 = vunpack.c.h.b16 %v4065
    %v4166 = vunpack.c.l.b16 %v4066
    %v4167 = vunpack.c.h.b16 %v4066
    %v4168 = vunpack.c.l.b16 %v4067
    %v4169 = vunpack.c.h.b16 %v4067
    %v4170 = vunpack.c.l.b16 %v4068
    %v4171 = vunpack.c.h.b16 %v4068
    %v4172 = vunpack.c.l.b16 %v4069
    %v4173 = vunpack.c.h.b16 %v4069
    %v4174 = vunpack.c.l.b16 %v4070
    %v4175 = vunpack.c.h.b16 %v4070
    %v4176 = vunpack.c.l.b16 %v4071
    %v4177 = vunpack.c.h.b16 %v4071
    %v4178 = vunpack.c.l.b16 %v4072
    %v4179 = vunpack.c.h.b16 %v4072
    %v4180 = vpack.c.b16 %v4118, %v4116
    %v4181 = vpack.c.b16 %v4119, %v4117
    %v4182 = vpack.c.b16 %v4122, %v4120
    %v4183 = vpack.c.b16 %v4123, %v4121
    %v4184 = vpack.c.b16 %v4126, %v4124
    %v4185 = vpack.c.b16 %v4127, %v4125
    %v4186 = vpack.c.b16 %v4130, %v4128
    %v4187 = vpack.c.b16 %v4131, %v4129
    %v4188 = vpack.c.b16 %v4134, %v4132
    %v4189 = vpack.c.b16 %v4135, %v4133
    %v4190 = vpack.c.b16 %v4138, %v4136
    %v4191 = vpack.c.b16 %v4139, %v4137
    %v4192 = vpack.c.b16 %v4142, %v4140
    %v4193 = vpack.c.b16 %v4143, %v4141
    %v4194 = vpack.c.b16 %v4146, %v4144
    %v4195 = vpack.c.b16 %v4147, %v4145
    %v4196 = vpack.c.b16 %v4150, %v4148
    %v4197 = vpack.c.b16 %v4151, %v4149
    %v4198 = vpack.c.b16 %v4154, %v4152
    %v4199 = vpack.c.b16 %v4155, %v4153
    %v4200 = vpack.c.b16 %v4158, %v4156
    %v4201 = vpack.c.b16 %v4159, %v4157
    %v4202 = vpack.c.b16 %v4162, %v4160
    %v4203 = vpack.c.b16 %v4163, %v4161
    %v4204 = vpack.c.b16 %v4166, %v4164
    %v4205 = vpack.c.b16 %v4167, %v4165
    %v4206 = vpack.c.b16 %v4170, %v4168
    %v4207 = vpack.c.b16 %v4171, %v4169
    %v4208 = vpack.c.b16 %v4174, %v4172
    %v4209 = vpack.c.b16 %v4175, %v4173
    %v4210 = vpack.c.b16 %v4178, %v4176
    %v4211 = vpack.c.b16 %v4179, %v4177
    %4244 = vmatprep.subr.bf16.mxu0 %v4181
    %4245 = vmatpush1.bf16.msra.mxu0 %v4180
    %4246 = vmatprep.subr.bf16.mxu0 %v4183
    %4247 = vmatpush1.bf16.msra.mxu0 %v4182
    %4248 = vmatprep.subr.bf16.mxu0 %v4185
    %4249 = vmatpush1.bf16.msra.mxu0 %v4184
    %4250 = vmatprep.subr.bf16.mxu0 %v4187
    %4251 = vmatpush1.bf16.msra.mxu0 %v4186
    %4252 = vmatprep.subr.bf16.mxu0 %v4189
    %4253 = vmatpush1.bf16.msra.mxu0 %v4188
    %4254 = vmatprep.subr.bf16.mxu0 %v4191
    %4255 = vmatpush1.bf16.msra.mxu0 %v4190
    %4256 = vmatprep.subr.bf16.mxu0 %v4193
    %4257 = vmatpush1.bf16.msra.mxu0 %v4192
    %4258 = vmatprep.subr.bf16.mxu0 %v4195
    %4259 = vmatpush1.bf16.msra.mxu0 %v4194
    %4260 = vmatprep.subr.bf16.mxu0 %v4197
    %4261 = vmatpush1.bf16.msra.mxu0 %v4196
    %4262 = vmatprep.subr.bf16.mxu0 %v4199
    %4263 = vmatpush1.bf16.msra.mxu0 %v4198
    %4264 = vmatprep.subr.bf16.mxu0 %v4201
    %4265 = vmatpush1.bf16.msra.mxu0 %v4200
    %4266 = vmatprep.subr.bf16.mxu0 %v4203
    %4267 = vmatpush1.bf16.msra.mxu0 %v4202
    %4268 = vmatprep.subr.bf16.mxu0 %v4205
    %4269 = vmatpush1.bf16.msra.mxu0 %v4204
    %4270 = vmatprep.subr.bf16.mxu0 %v4207
    %4271 = vmatpush1.bf16.msra.mxu0 %v4206
    %4272 = vmatprep.subr.bf16.mxu0 %v4209
    %4273 = vmatpush1.bf16.msra.mxu0 %v4208
    %4274 = vmatprep.subr.bf16.mxu0 %v4211
    %4275 = vmatpush1.bf16.msra.mxu0 %v4210
    %4276 = vmatprep.mubr.bf16.mxu0 %v4028
    %4277 = vmatmul.mubr.bf16.gmra.mrb[0].mxu0 %v4027
    %v4278 = vpop.f32.mrb[0].mxu0
    %v4279 = vadd.f32 %v4077, %v4278
    %v4280 = vpop.f32.mrb[0].mxu0
    %v4281 = vadd.f32 %v4081, %v4280
    %v4282 = vpop.f32.mrb[0].mxu0
    %v4283 = vadd.f32 %v4077, %v4282
    %v4284 = vpop.f32.mrb[0].mxu0
    %v4285 = vadd.f32 %v4081, %v4284
    %4286 = vmatprep.mubr.bf16.mxu0 %v4030
    %4287 = vmatmul.mubr.bf16.gmra.mrb[0].mxu0 %v4029
    %v4288 = vpop.f32.mrb[0].mxu0
    %v4289 = vadd.f32 %v4077, %v4288
    %v4290 = vpop.f32.mrb[0].mxu0
    %v4291 = vadd.f32 %v4081, %v4290
    %v4292 = vpop.f32.mrb[0].mxu0
    %v4293 = vadd.f32 %v4077, %v4292
    %v4294 = vpop.f32.mrb[0].mxu0
    %v4295 = vadd.f32 %v4081, %v4294
    %4296 = vmatprep.mubr.bf16.mxu0 %v4032
    %4297 = vmatmul.mubr.bf16.gmra.mrb[0].mxu0 %v4031
    %v4298 = vpop.f32.mrb[0].mxu0
    %v4299 = vadd.f32 %v4077, %v4298
    %v4300 = vpop.f32.mrb[0].mxu0
    %v4301 = vadd.f32 %v4081, %v4300
    %v4302 = vpop.f32.mrb[0].mxu0
    %v4303 = vadd.f32 %v4077, %v4302
    %v4304 = vpop.f32.mrb[0].mxu0
    %v4305 = vadd.f32 %v4081, %v4304
    %4306 = vmatprep.mubr.bf16.mxu0 %v4034
    %4307 = vmatmul.mubr.bf16.gmra.mrb[0].mxu0 %v4033
    %v4308 = vpop.f32.mrb[0].mxu0
    %v4309 = vadd.f32 %v4077, %v4308
    %v4310 = vpop.f32.mrb[0].mxu0
    %v4311 = vadd.f32 %v4081, %v4310
    %v4312 = vpop.f32.mrb[0].mxu0
    %v4313 = vpop.f32.mrb[0].mxu0
    %4314 = vdwg.mxu0
    %v4315 = vmax.f32 %v4279, 0.0
    %v4316 = vmax.f32 %v4281, 0.0
    %v4317 = vmax.f32 %v4283, 0.0
    %v4318 = vmax.f32 %v4285, 0.0
    %v4319 = vmax.f32 %v4289, 0.0
    %v4320 = vmax.f32 %v4291, 0.0
    %v4321 = vmax.f32 %v4293, 0.0
    %v4322 = vmax.f32 %v4295, 0.0
    %v4323 = vmax.f32 %v4299, 0.0
    %v4324 = vmax.f32 %v4301, 0.0
    %v4325 = vmax.f32 %v4303, 0.0
    %v4326 = vmax.f32 %v4305, 0.0
    %v4327 = vmax.f32 %v4309, 0.0
    %v4328 = vmax.f32 %v4311, 0.0
    %s4329 = scalar_lea.vmem %s5, 512
    %v4330 = vld [vmem:[%s4329] sm:$0xff]
    %v4331 = vld [vmem:[%s4329 + $0x8] sm:$0xff]
    %v4332 = vld [vmem:[%s4329 + $0x10] sm:$0xff]
    %v4333 = vld [vmem:[%s4329 + $0x18] sm:$0xff]
    %v4334 = vld [vmem:[%s4329 + $0x20] sm:$0xff]
    %v4335 = vld [vmem:[%s4329 + $0x28] sm:$0xff]
    %v4336 = vld [vmem:[%s4329 + $0x30] sm:$0xff]
    %v4337 = vld [vmem:[%s4329 + $0x38] sm:$0xff]
    %v4338 = vld [vmem:[%s4329 + $0x40] sm:$0xff]
    %v4339 = vld [vmem:[%s4329 + $0x48] sm:$0xff]
    %v4340 = vld [vmem:[%s4329 + $0x50] sm:$0xff]
    %v4341 = vld [vmem:[%s4329 + $0x58] sm:$0xff]
    %v4342 = vld [vmem:[%s4329 + $0x60] sm:$0xff]
    %v4343 = vld [vmem:[%s4329 + $0x68] sm:$0xff]
    %v4344 = vld [vmem:[%s4329 + $0x70] sm:$0xff]
    %v4345 = vld [vmem:[%s4329 + $0x78] sm:$0xff]
    %v4346 = vld [vmem:[%s4329 + $0x80] sm:$0xff]
    %v4347 = vld [vmem:[%s4329 + $0x88] sm:$0xff]
    %v4348 = vld [vmem:[%s4329 + $0x90] sm:$0xff]
    %v4349 = vld [vmem:[%s4329 + $0x98] sm:$0xff]
    %v4350 = vld [vmem:[%s4329 + $0xa0] sm:$0xff]
    %v4351 = vld [vmem:[%s4329 + $0xa8] sm:$0xff]
    %v4352 = vld [vmem:[%s4329 + $0xb0] sm:$0xff]
    %v4353 = vld [vmem:[%s4329 + $0xb8] sm:$0xff]
    %v4354 = vld [vmem:[%s4329 + $0xc0] sm:$0xff]
    %v4355 = vld [vmem:[%s4329 + $0xc8] sm:$0xff]
    %v4356 = vld [vmem:[%s4329 + $0xd0] sm:$0xff]
    %v4357 = vld [vmem:[%s4329 + $0xd8] sm:$0xff]
    %v4358 = vld [vmem:[%s4329 + $0xe0] sm:$0xff]
    %v4359 = vld [vmem:[%s4329 + $0xe8] sm:$0xff]
    %v4360 = vld [vmem:[%s4329 + $0xf0] sm:$0xff]
    %v4361 = vld [vmem:[%s4329 + $0xf8] sm:$0xff]
    %v4362 = vld [vmem:[%s5] sm:$0xff]
    %v4363 = vld [vmem:[%s5 + $0x8] sm:$0xff]
    %v4364 = vld [vmem:[%s5 + $0x10] sm:$0xff]
    %v4365 = vld [vmem:[%s5 + $0x18] sm:$0xff]
    %v4366 = vld [vmem:[%s5 + $0x20] sm:$0xff]
    %v4367 = vld [vmem:[%s5 + $0x28] sm:$0xff]
    %v4368 = vld [vmem:[%s5 + $0x30] sm:$0xff]
    %v4369 = vld [vmem:[%s5 + $0x38] sm:$0xff]
    %v4370 = vld [vmem:[%s5 + $0x40] sm:$0xff]
    %v4371 = vld [vmem:[%s5 + $0x48] sm:$0xff]
    %v4372 = vld [vmem:[%s5 + $0x50] sm:$0xff]
    %v4373 = vld [vmem:[%s5 + $0x58] sm:$0xff]
    %v4374 = vld [vmem:[%s5 + $0x60] sm:$0xff]
    %v4375 = vld [vmem:[%s5 + $0x68] sm:$0xff]
    %v4376 = vld [vmem:[%s5 + $0x70] sm:$0xff]
    %v4377 = vld [vmem:[%s5 + $0x78] sm:$0xff]
    %v4378 = vld [vmem:[%s5 + $0x80] sm:$0xff]
    %v4379 = vld [vmem:[%s5 + $0x88] sm:$0xff]
    %v4380 = vld [vmem:[%s5 + $0x90] sm:$0xff]
    %v4381 = vld [vmem:[%s5 + $0x98] sm:$0xff]
    %v4382 = vld [vmem:[%s5 + $0xa0] sm:$0xff]
    %v4383 = vld [vmem:[%s5 + $0xa8] sm:$0xff]
    %v4384 = vld [vmem:[%s5 + $0xb0] sm:$0xff]
    %v4385 = vld [vmem:[%s5 + $0xb8] sm:$0xff]
    %v4386 = vld [vmem:[%s5 + $0xc0] sm:$0xff]
    %v4387 = vld [vmem:[%s5 + $0xc8] sm:$0xff]
    %v4388 = vld [vmem:[%s5 + $0xd0] sm:$0xff]
    %v4389 = vld [vmem:[%s5 + $0xd8] sm:$0xff]
    %v4390 = vld [vmem:[%s5 + $0xe0] sm:$0xff]
    %v4391 = vld [vmem:[%s5 + $0xe8] sm:$0xff]
    %v4392 = vld [vmem:[%s5 + $0xf0] sm:$0xff]
    %v4393 = vld [vmem:[%s5 + $0xf8] sm:$0xff]
    %v4402 = vrot.slane %v4035, 4
    %v4403 = vrot.slane %v4029, 4
    %v4404 = vsel %vm1037, %v4402, %v4403
    %v4405 = vrot.slane %v4036, 4
    %v4406 = vrot.slane %v4030, 4
    %v4407 = vsel %vm1037, %v4405, %v4406
    %v4408 = vrot.slane %v4031, 4
    %v4409 = vsel %vm1037, %v4403, %v4408
    %v4410 = vrot.slane %v4032, 4
    %v4411 = vsel %vm1037, %v4406, %v4410
    %v4412 = vrot.slane %v4037, 4
    %v4413 = vsel %vm1037, %v4408, %v4412
    %v4414 = vrot.slane %v4038, 4
    %v4415 = vsel %vm1037, %v4410, %v4414
    %v4456 = vunpack.c.l.b16 %v4362
    %v4457 = vunpack.c.h.b16 %v4362
    %v4458 = vunpack.c.l.b16 %v4363
    %v4459 = vunpack.c.h.b16 %v4363
    %v4460 = vunpack.c.l.b16 %v4364
    %v4461 = vunpack.c.h.b16 %v4364
    %v4462 = vunpack.c.l.b16 %v4365
    %v4463 = vunpack.c.h.b16 %v4365
    %v4464 = vunpack.c.l.b16 %v4366
    %v4465 = vunpack.c.h.b16 %v4366
    %v4466 = vunpack.c.l.b16 %v4367
    %v4467 = vunpack.c.h.b16 %v4367
    %v4468 = vunpack.c.l.b16 %v4368
    %v4469 = vunpack.c.h.b16 %v4368
    %v4470 = vunpack.c.l.b16 %v4369
    %v4471 = vunpack.c.h.b16 %v4369
    %v4472 = vunpack.c.l.b16 %v4370
    %v4473 = vunpack.c.h.b16 %v4370
    %v4474 = vunpack.c.l.b16 %v4371
    %v4475 = vunpack.c.h.b16 %v4371
    %v4476 = vunpack.c.l.b16 %v4372
    %v4477 = vunpack.c.h.b16 %v4372
    %v4478 = vunpack.c.l.b16 %v4373
    %v4479 = vunpack.c.h.b16 %v4373
    %v4480 = vunpack.c.l.b16 %v4374
    %v4481 = vunpack.c.h.b16 %v4374
    %v4482 = vunpack.c.l.b16 %v4375
    %v4483 = vunpack.c.h.b16 %v4375
    %v4484 = vunpack.c.l.b16 %v4376
    %v4485 = vunpack.c.h.b16 %v4376
    %v4486 = vunpack.c.l.b16 %v4377
    %v4487 = vunpack.c.h.b16 %v4377
    %v4488 = vunpack.c.l.b16 %v4378
    %v4489 = vunpack.c.h.b16 %v4378
    %v4490 = vunpack.c.l.b16 %v4379
    %v4491 = vunpack.c.h.b16 %v4379
    %v4492 = vunpack.c.l.b16 %v4380
    %v4493 = vunpack.c.h.b16 %v4380
    %v4494 = vunpack.c.l.b16 %v4381
    %v4495 = vunpack.c.h.b16 %v4381
    %v4496 = vunpack.c.l.b16 %v4382
    %v4497 = vunpack.c.h.b16 %v4382
    %v4498 = vunpack.c.l.b16 %v4383
    %v4499 = vunpack.c.h.b16 %v4383
    %v4500 = vunpack.c.l.b16 %v4384
    %v4501 = vunpack.c.h.b16 %v4384
    %v4502 = vunpack.c.l.b16 %v4385
    %v4503 = vunpack.c.h.b16 %v4385
    %v4504 = vunpack.c.l.b16 %v4386
    %v4505 = vunpack.c.h.b16 %v4386
    %v4506 = vunpack.c.l.b16 %v4387
    %v4507 = vunpack.c.h.b16 %v4387
    %v4508 = vunpack.c.l.b16 %v4388
    %v4509 = vunpack.c.h.b16 %v4388
    %v4510 = vunpack.c.l.b16 %v4389
    %v4511 = vunpack.c.h.b16 %v4389
    %v4512 = vunpack.c.l.b16 %v4390
    %v4513 = vunpack.c.h.b16 %v4390
    %v4514 = vunpack.c.l.b16 %v4391
    %v4515 = vunpack.c.h.b16 %v4391
    %v4516 = vunpack.c.l.b16 %v4392
    %v4517 = vunpack.c.h.b16 %v4392
    %v4518 = vunpack.c.l.b16 %v4393
    %v4519 = vunpack.c.h.b16 %v4393
    %v4520 = vpack.c.b16 %v4458, %v4456
    %v4521 = vpack.c.b16 %v4459, %v4457
    %v4522 = vpack.c.b16 %v4462, %v4460
    %v4523 = vpack.c.b16 %v4463, %v4461
    %v4524 = vpack.c.b16 %v4466, %v4464
    %v4525 = vpack.c.b16 %v4467, %v4465
    %v4526 = vpack.c.b16 %v4470, %v4468
    %v4527 = vpack.c.b16 %v4471, %v4469
    %v4528 = vpack.c.b16 %v4474, %v4472
    %v4529 = vpack.c.b16 %v4475, %v4473
    %v4530 = vpack.c.b16 %v4478, %v4476
    %v4531 = vpack.c.b16 %v4479, %v4477
    %v4532 = vpack.c.b16 %v4482, %v4480
    %v4533 = vpack.c.b16 %v4483, %v4481
    %v4534 = vpack.c.b16 %v4486, %v4484
    %v4535 = vpack.c.b16 %v4487, %v4485
    %v4536 = vpack.c.b16 %v4490, %v4488
    %v4537 = vpack.c.b16 %v4491, %v4489
    %v4538 = vpack.c.b16 %v4494, %v4492
    %v4539 = vpack.c.b16 %v4495, %v4493
    %v4540 = vpack.c.b16 %v4498, %v4496
    %v4541 = vpack.c.b16 %v4499, %v4497
    %v4542 = vpack.c.b16 %v4502, %v4500
    %v4543 = vpack.c.b16 %v4503, %v4501
    %v4544 = vpack.c.b16 %v4506, %v4504
    %v4545 = vpack.c.b16 %v4507, %v4505
    %v4546 = vpack.c.b16 %v4510, %v4508
    %v4547 = vpack.c.b16 %v4511, %v4509
    %v4548 = vpack.c.b16 %v4514, %v4512
    %v4549 = vpack.c.b16 %v4515, %v4513
    %v4550 = vpack.c.b16 %v4518, %v4516
    %v4551 = vpack.c.b16 %v4519, %v4517
    %4584 = vmatprep.subr.bf16.mxu0 %v4521
    %4585 = vmatpush1.bf16.msra.mxu0 %v4520
    %4586 = vmatprep.subr.bf16.mxu0 %v4523
    %4587 = vmatpush1.bf16.msra.mxu0 %v4522
    %4588 = vmatprep.subr.bf16.mxu0 %v4525
    %4589 = vmatpush1.bf16.msra.mxu0 %v4524
    %4590 = vmatprep.subr.bf16.mxu0 %v4527
    %4591 = vmatpush1.bf16.msra.mxu0 %v4526
    %4592 = vmatprep.subr.bf16.mxu0 %v4529
    %4593 = vmatpush1.bf16.msra.mxu0 %v4528
    %4594 = vmatprep.subr.bf16.mxu0 %v4531
    %4595 = vmatpush1.bf16.msra.mxu0 %v4530
    %4596 = vmatprep.subr.bf16.mxu0 %v4533
    %4597 = vmatpush1.bf16.msra.mxu0 %v4532
    %4598 = vmatprep.subr.bf16.mxu0 %v4535
    %4599 = vmatpush1.bf16.msra.mxu0 %v4534
    %4600 = vmatprep.subr.bf16.mxu0 %v4537
    %4601 = vmatpush1.bf16.msra.mxu0 %v4536
    %4602 = vmatprep.subr.bf16.mxu0 %v4539
    %4603 = vmatpush1.bf16.msra.mxu0 %v4538
    %4604 = vmatprep.subr.bf16.mxu0 %v4541
    %4605 = vmatpush1.bf16.msra.mxu0 %v4540
    %4606 = vmatprep.subr.bf16.mxu0 %v4543
    %4607 = vmatpush1.bf16.msra.mxu0 %v4542
    %4608 = vmatprep.subr.bf16.mxu0 %v4545
    %4609 = vmatpush1.bf16.msra.mxu0 %v4544
    %4610 = vmatprep.subr.bf16.mxu0 %v4547
    %4611 = vmatpush1.bf16.msra.mxu0 %v4546
    %4612 = vmatprep.subr.bf16.mxu0 %v4549
    %4613 = vmatpush1.bf16.msra.mxu0 %v4548
    %4614 = vmatprep.subr.bf16.mxu0 %v4551
    %4615 = vmatpush1.bf16.msra.mxu0 %v4550
    %4616 = vmatprep.mubr.bf16.mxu0 %v4407
    %4617 = vmatmul.mubr.bf16.gmra.mrb[0].mxu0 %v4404
    %v4618 = vpop.f32.mrb[0].mxu0
    %v4619 = vadd.f32 0.0, %v4618
    %v4620 = vpop.f32.mrb[0].mxu0
    %v4621 = vadd.f32 0.0, %v4620
    %v4622 = vpop.f32.mrb[0].mxu0
    %v4623 = vadd.f32 0.0, %v4622
    %v4624 = vpop.f32.mrb[0].mxu0
    %v4625 = vadd.f32 0.0, %v4624
    %4626 = vmatprep.mubr.bf16.mxu0 %v4411
    %4627 = vmatmul.mubr.bf16.gmra.mrb[0].mxu0 %v4409
    %v4628 = vpop.f32.mrb[0].mxu0
    %v4629 = vadd.f32 0.0, %v4628
    %v4630 = vpop.f32.mrb[0].mxu0
    %v4631 = vadd.f32 0.0, %v4630
    %v4632 = vpop.f32.mrb[0].mxu0
    %v4633 = vadd.f32 0.0, %v4632
    %v4634 = vpop.f32.mrb[0].mxu0
    %v4635 = vadd.f32 0.0, %v4634
    %4636 = vmatprep.mubr.bf16.mxu0 %v4415
    %4637 = vmatmul.mubr.bf16.gmra.mrb[0].mxu0 %v4413
    %v4638 = vpop.f32.mrb[0].mxu0
    %v4639 = vadd.f32 0.0, %v4638
    %v4640 = vpop.f32.mrb[0].mxu0
    %v4641 = vadd.f32 0.0, %v4640
    %v4642 = vpop.f32.mrb[0].mxu0
    %v4643 = vadd.f32 0.0, %v4642
    %v4644 = vpop.f32.mrb[0].mxu0
    %v4645 = vadd.f32 0.0, %v4644
    %4646 = vmatprep.mubr.bf16.mxu0 %v4414
    %4647 = vmatmul.mubr.bf16.gmra.mrb[0].mxu0 %v4412
    %v4648 = vpop.f32.mrb[0].mxu0
    %v4649 = vadd.f32 0.0, %v4648
    %v4650 = vpop.f32.mrb[0].mxu0
    %v4651 = vadd.f32 0.0, %v4650
    %v4652 = vpop.f32.mrb[0].mxu0
    %v4653 = vpop.f32.mrb[0].mxu0
    %4654 = vdwg.mxu0
    %v4687 = vunpack.c.l.b16 %v4330
    %v4688 = vunpack.c.h.b16 %v4330
    %v4689 = vunpack.c.l.b16 %v4331
    %v4690 = vunpack.c.h.b16 %v4331
    %v4691 = vunpack.c.l.b16 %v4332
    %v4692 = vunpack.c.h.b16 %v4332
    %v4693 = vunpack.c.l.b16 %v4333
    %v4694 = vunpack.c.h.b16 %v4333
    %v4695 = vunpack.c.l.b16 %v4334
    %v4696 = vunpack.c.h.b16 %v4334
    %v4697 = vunpack.c.l.b16 %v4335
    %v4698 = vunpack.c.h.b16 %v4335
    %v4699 = vunpack.c.l.b16 %v4336
    %v4700 = vunpack.c.h.b16 %v4336
    %v4701 = vunpack.c.l.b16 %v4337
    %v4702 = vunpack.c.h.b16 %v4337
    %v4703 = vunpack.c.l.b16 %v4338
    %v4704 = vunpack.c.h.b16 %v4338
    %v4705 = vunpack.c.l.b16 %v4339
    %v4706 = vunpack.c.h.b16 %v4339
    %v4707 = vunpack.c.l.b16 %v4340
    %v4708 = vunpack.c.h.b16 %v4340
    %v4709 = vunpack.c.l.b16 %v4341
    %v4710 = vunpack.c.h.b16 %v4341
    %v4711 = vunpack.c.l.b16 %v4342
    %v4712 = vunpack.c.h.b16 %v4342
    %v4713 = vunpack.c.l.b16 %v4343
    %v4714 = vunpack.c.h.b16 %v4343
    %v4715 = vunpack.c.l.b16 %v4344
    %v4716 = vunpack.c.h.b16 %v4344
    %v4717 = vunpack.c.l.b16 %v4345
    %v4718 = vunpack.c.h.b16 %v4345
    %v4719 = vunpack.c.l.b16 %v4346
    %v4720 = vunpack.c.h.b16 %v4346
    %v4721 = vunpack.c.l.b16 %v4347
    %v4722 = vunpack.c.h.b16 %v4347
    %v4723 = vunpack.c.l.b16 %v4348
    %v4724 = vunpack.c.h.b16 %v4348
    %v4725 = vunpack.c.l.b16 %v4349
    %v4726 = vunpack.c.h.b16 %v4349
    %v4727 = vunpack.c.l.b16 %v4350
    %v4728 = vunpack.c.h.b16 %v4350
    %v4729 = vunpack.c.l.b16 %v4351
    %v4730 = vunpack.c.h.b16 %v4351
    %v4731 = vunpack.c.l.b16 %v4352
    %v4732 = vunpack.c.h.b16 %v4352
    %v4733 = vunpack.c.l.b16 %v4353
    %v4734 = vunpack.c.h.b16 %v4353
    %v4735 = vunpack.c.l.b16 %v4354
    %v4736 = vunpack.c.h.b16 %v4354
    %v4737 = vunpack.c.l.b16 %v4355
    %v4738 = vunpack.c.h.b16 %v4355
    %v4739 = vunpack.c.l.b16 %v4356
    %v4740 = vunpack.c.h.b16 %v4356
    %v4741 = vunpack.c.l.b16 %v4357
    %v4742 = vunpack.c.h.b16 %v4357
    %v4743 = vunpack.c.l.b16 %v4358
    %v4744 = vunpack.c.h.b16 %v4358
    %v4745 = vunpack.c.l.b16 %v4359
    %v4746 = vunpack.c.h.b16 %v4359
    %v4747 = vunpack.c.l.b16 %v4360
    %v4748 = vunpack.c.h.b16 %v4360
    %v4749 = vunpack.c.l.b16 %v4361
    %v4750 = vunpack.c.h.b16 %v4361
    %v4751 = vpack.c.b16 %v4689, %v4687
    %v4752 = vpack.c.b16 %v4690, %v4688
    %v4753 = vpack.c.b16 %v4693, %v4691
    %v4754 = vpack.c.b16 %v4694, %v4692
    %v4755 = vpack.c.b16 %v4697, %v4695
    %v4756 = vpack.c.b16 %v4698, %v4696
    %v4757 = vpack.c.b16 %v4701, %v4699
    %v4758 = vpack.c.b16 %v4702, %v4700
    %v4759 = vpack.c.b16 %v4705, %v4703
    %v4760 = vpack.c.b16 %v4706, %v4704
    %v4761 = vpack.c.b16 %v4709, %v4707
    %v4762 = vpack.c.b16 %v4710, %v4708
    %v4763 = vpack.c.b16 %v4713, %v4711
    %v4764 = vpack.c.b16 %v4714, %v4712
    %v4765 = vpack.c.b16 %v4717, %v4715
    %v4766 = vpack.c.b16 %v4718, %v4716
    %v4767 = vpack.c.b16 %v4721, %v4719
    %v4768 = vpack.c.b16 %v4722, %v4720
    %v4769 = vpack.c.b16 %v4725, %v4723
    %v4770 = vpack.c.b16 %v4726, %v4724
    %v4771 = vpack.c.b16 %v4729, %v4727
    %v4772 = vpack.c.b16 %v4730, %v4728
    %v4773 = vpack.c.b16 %v4733, %v4731
    %v4774 = vpack.c.b16 %v4734, %v4732
    %v4775 = vpack.c.b16 %v4737, %v4735
    %v4776 = vpack.c.b16 %v4738, %v4736
    %v4777 = vpack.c.b16 %v4741, %v4739
    %v4778 = vpack.c.b16 %v4742, %v4740
    %v4779 = vpack.c.b16 %v4745, %v4743
    %v4780 = vpack.c.b16 %v4746, %v4744
    %v4781 = vpack.c.b16 %v4749, %v4747
    %v4782 = vpack.c.b16 %v4750, %v4748
    %4815 = vmatprep.subr.bf16.mxu0 %v4752
    %4816 = vmatpush1.bf16.msra.mxu0 %v4751
    %4817 = vmatprep.subr.bf16.mxu0 %v4754
    %4818 = vmatpush1.bf16.msra.mxu0 %v4753
    %4819 = vmatprep.subr.bf16.mxu0 %v4756
    %4820 = vmatpush1.bf16.msra.mxu0 %v4755
    %4821 = vmatprep.subr.bf16.mxu0 %v4758
    %4822 = vmatpush1.bf16.msra.mxu0 %v4757
    %4823 = vmatprep.subr.bf16.mxu0 %v4760
    %4824 = vmatpush1.bf16.msra.mxu0 %v4759
    %4825 = vmatprep.subr.bf16.mxu0 %v4762
    %4826 = vmatpush1.bf16.msra.mxu0 %v4761
    %4827 = vmatprep.subr.bf16.mxu0 %v4764
    %4828 = vmatpush1.bf16.msra.mxu0 %v4763
    %4829 = vmatprep.subr.bf16.mxu0 %v4766
    %4830 = vmatpush1.bf16.msra.mxu0 %v4765
    %4831 = vmatprep.subr.bf16.mxu0 %v4768
    %4832 = vmatpush1.bf16.msra.mxu0 %v4767
    %4833 = vmatprep.subr.bf16.mxu0 %v4770
    %4834 = vmatpush1.bf16.msra.mxu0 %v4769
    %4835 = vmatprep.subr.bf16.mxu0 %v4772
    %4836 = vmatpush1.bf16.msra.mxu0 %v4771
    %4837 = vmatprep.subr.bf16.mxu0 %v4774
    %4838 = vmatpush1.bf16.msra.mxu0 %v4773
    %4839 = vmatprep.subr.bf16.mxu0 %v4776
    %4840 = vmatpush1.bf16.msra.mxu0 %v4775
    %4841 = vmatprep.subr.bf16.mxu0 %v4778
    %4842 = vmatpush1.bf16.msra.mxu0 %v4777
    %4843 = vmatprep.subr.bf16.mxu0 %v4780
    %4844 = vmatpush1.bf16.msra.mxu0 %v4779
    %4845 = vmatprep.subr.bf16.mxu0 %v4782
    %4846 = vmatpush1.bf16.msra.mxu0 %v4781
    %4847 = vmatprep.mubr.bf16.mxu0 %v4028
    %4848 = vmatmul.mubr.bf16.gmra.mrb[0].mxu0 %v4027
    %v4849 = vpop.f32.mrb[0].mxu0
    %v4850 = vadd.f32 %v4619, %v4849
    %v4851 = vpop.f32.mrb[0].mxu0
    %v4852 = vadd.f32 %v4621, %v4851
    %v4853 = vpop.f32.mrb[0].mxu0
    %v4854 = vadd.f32 %v4623, %v4853
    %v4855 = vpop.f32.mrb[0].mxu0
    %v4856 = vadd.f32 %v4625, %v4855
    %4857 = vmatprep.mubr.bf16.mxu0 %v4030
    %4858 = vmatmul.mubr.bf16.gmra.mrb[0].mxu0 %v4029
    %v4859 = vpop.f32.mrb[0].mxu0
    %v4860 = vadd.f32 %v4629, %v4859
    %v4861 = vpop.f32.mrb[0].mxu0
    %v4862 = vadd.f32 %v4631, %v4861
    %v4863 = vpop.f32.mrb[0].mxu0
    %v4864 = vadd.f32 %v4633, %v4863
    %v4865 = vpop.f32.mrb[0].mxu0
    %v4866 = vadd.f32 %v4635, %v4865
    %4867 = vmatprep.mubr.bf16.mxu0 %v4032
    %4868 = vmatmul.mubr.bf16.gmra.mrb[0].mxu0 %v4031
    %v4869 = vpop.f32.mrb[0].mxu0
    %v4870 = vadd.f32 %v4639, %v4869
    %v4871 = vpop.f32.mrb[0].mxu0
    %v4872 = vadd.f32 %v4641, %v4871
    %v4873 = vpop.f32.mrb[0].mxu0
    %v4874 = vadd.f32 %v4643, %v4873
    %v4875 = vpop.f32.mrb[0].mxu0
    %v4876 = vadd.f32 %v4645, %v4875
    %4877 = vmatprep.mubr.bf16.mxu0 %v4034
    %4878 = vmatmul.mubr.bf16.gmra.mrb[0].mxu0 %v4033
    %v4879 = vpop.f32.mrb[0].mxu0
    %v4880 = vadd.f32 %v4649, %v4879
    %v4881 = vpop.f32.mrb[0].mxu0
    %v4882 = vadd.f32 %v4651, %v4881
    %v4883 = vpop.f32.mrb[0].mxu0
    %v4884 = vpop.f32.mrb[0].mxu0
    %4885 = vdwg.mxu0
    %v4886 = vadd.f32 %v4850, %v4077
    %v4887 = vadd.f32 %v4852, %v4081
    %v4888 = vadd.f32 %v4854, %v4077
    %v4889 = vadd.f32 %v4856, %v4081
    %v4890 = vadd.f32 %v4860, %v4077
    %v4891 = vadd.f32 %v4862, %v4081
    %v4892 = vadd.f32 %v4864, %v4077
    %v4893 = vadd.f32 %v4866, %v4081
    %v4894 = vadd.f32 %v4870, %v4077
    %v4895 = vadd.f32 %v4872, %v4081
    %v4896 = vadd.f32 %v4874, %v4077
    %v4897 = vadd.f32 %v4876, %v4081
    %v4898 = vadd.f32 %v4880, %v4077
    %v4899 = vadd.f32 %v4882, %v4081
    %v4900 = vmax.f32 %v4886, 0.0
    %v4901 = vmax.f32 %v4887, 0.0
    %v4902 = vmax.f32 %v4888, 0.0
    %v4903 = vmax.f32 %v4889, 0.0
    %v4904 = vmax.f32 %v4890, 0.0
    %v4905 = vmax.f32 %v4891, 0.0
    %v4906 = vmax.f32 %v4892, 0.0
    %v4907 = vmax.f32 %v4893, 0.0
    %v4908 = vmax.f32 %v4894, 0.0
    %v4909 = vmax.f32 %v4895, 0.0
    %v4910 = vmax.f32 %v4896, 0.0
    %v4911 = vmax.f32 %v4897, 0.0
    %v4912 = vmax.f32 %v4898, 0.0
    %v4913 = vmax.f32 %v4899, 0.0
    %v4914 = vpack.c.bf16 %v4317, %v4315
    %v4915 = vpack.c.bf16 %v4318, %v4316
    %v4916 = vpack.c.bf16 %v4321, %v4319
    %v4917 = vpack.c.bf16 %v4322, %v4320
    %v4918 = vpack.c.bf16 %v4325, %v4323
    %v4919 = vpack.c.bf16 %v4326, %v4324
    %v4920 = vpack.c.bf16 %v4327, %v4327
    %v4921 = vpack.c.bf16 %v4328, %v4328
    %4922 = vst [vmem:[#allocation4] sm:$0xff] %v4914
    %4923 = vst [vmem:[#allocation4 + $0x8] sm:$0xff] %v4915
    %4924 = vst [vmem:[#allocation4 + $0x10] sm:$0xff] %v4916
    %4925 = vst [vmem:[#allocation4 + $0x18] sm:$0xff] %v4917
    %4926 = vst [vmem:[#allocation4 + $0x20] sm:$0xff] %v4918
    %4927 = vst [vmem:[#allocation4 + $0x28] sm:$0xff] %v4919
    %4928 = vst [vmem:[#allocation4 + $0x30] sm:$0xf] %v4920
    %4929 = vst [vmem:[#allocation4 + $0x38] sm:$0xf] %v4921
    %v4930 = vld [vmem:[#allocation4] sm:$0xf0]
    %v4931 = vld [vmem:[#allocation4 + $0x8] sm:$0xf0]
    %v4932 = vld [vmem:[#allocation4 + $0x10] sm:$0xff]
    %v4933 = vld [vmem:[#allocation4 + $0x18] sm:$0xff]
    %v4934 = vld [vmem:[#allocation4 + $0x20] sm:$0xff]
    %v4935 = vld [vmem:[#allocation4 + $0x28] sm:$0xff]
    %v4936 = vld [vmem:[#allocation4 + $0x30] sm:$0xff]
    %v4937 = vld [vmem:[#allocation4 + $0x38] sm:$0xff]
    %v4938 = vpack.c.bf16 %v4902, %v4900
    %v4939 = vpack.c.bf16 %v4903, %v4901
    %v4940 = vpack.c.bf16 %v4906, %v4904
    %v4941 = vpack.c.bf16 %v4907, %v4905
    %v4942 = vpack.c.bf16 %v4910, %v4908
    %v4943 = vpack.c.bf16 %v4911, %v4909
    %v4944 = vpack.c.bf16 %v4912, %v4912
    %v4945 = vpack.c.bf16 %v4913, %v4913
    %v4946 = vld [vmem:[%s12] sm:$0x1]
    %s4947 = scalar_lea.vmem [#allocation8], 128
    %v4948 = vld [vmem:[%s4947] sm:$0xf]
    %v4949 = vld [vmem:[%s4947 + $0x4] sm:$0xf]
    %v4950 = vld [vmem:[%s4947 + $0x8] sm:$0xf]
    %v4951 = vld [vmem:[%s4947 + $0xc] sm:$0xf]
    %v4952 = vld [vmem:[%s4947 + $0x10] sm:$0xf]
    %v4953 = vld [vmem:[%s4947 + $0x14] sm:$0xf]
    %v4954 = vld [vmem:[%s4947 + $0x18] sm:$0xf]
    %v4955 = vld [vmem:[%s4947 + $0x1c] sm:$0xf]
    %v4956 = vld [vmem:[%s4947 + $0x20] sm:$0xf]
    %v4957 = vld [vmem:[%s4947 + $0x24] sm:$0xf]
    %v4958 = vld [vmem:[%s4947 + $0x28] sm:$0xf]
    %v4959 = vld [vmem:[%s4947 + $0x2c] sm:$0xf]
    %v4960 = vld [vmem:[%s4947 + $0x30] sm:$0xf]
    %v4961 = vld [vmem:[%s4947 + $0x34] sm:$0xf]
    %v4962 = vld [vmem:[%s4947 + $0x38] sm:$0xf]
    %v4963 = vld [vmem:[%s4947 + $0x3c] sm:$0xf]
    %v4964 = vld [vmem:[%s4947 + $0x40] sm:$0xf]
    %v4965 = vld [vmem:[%s4947 + $0x44] sm:$0xf]
    %v4966 = vld [vmem:[%s4947 + $0x48] sm:$0xf]
    %v4967 = vld [vmem:[%s4947 + $0x4c] sm:$0xf]
    %v4968 = vld [vmem:[%s4947 + $0x50] sm:$0xf]
    %v4969 = vld [vmem:[%s4947 + $0x54] sm:$0xf]
    %v4970 = vld [vmem:[%s4947 + $0x58] sm:$0xf]
    %v4971 = vld [vmem:[%s4947 + $0x5c] sm:$0xf]
    %v4972 = vld [vmem:[%s4947 + $0x60] sm:$0xf]
    %v4973 = vld [vmem:[%s4947 + $0x64] sm:$0xf]
    %v4974 = vld [vmem:[%s4947 + $0x68] sm:$0xf]
    %v4975 = vld [vmem:[%s4947 + $0x6c] sm:$0xf]
    %v4976 = vld [vmem:[%s4947 + $0x70] sm:$0xf]
    %v4977 = vld [vmem:[%s4947 + $0x74] sm:$0xf]
    %v4978 = vld [vmem:[%s4947 + $0x78] sm:$0xf]
    %v4979 = vld [vmem:[%s4947 + $0x7c] sm:$0xf]
    %v4981 = vlaneseq
    %v4982 = vshrl.u32 %v4981, 7
    %v4983 = vsub.s32 0, %v4982
    %v4984 = vrot.slane %v4946, %v4983
    %v5018 = vunpack.c.l.b16 %v4948
    %v5019 = vunpack.c.l.b16 %v4949
    %v5020 = vunpack.c.l.b16 %v4950
    %v5021 = vunpack.c.l.b16 %v4951
    %v5022 = vunpack.c.l.b16 %v4952
    %v5023 = vunpack.c.l.b16 %v4953
    %v5024 = vunpack.c.l.b16 %v4954
    %v5025 = vunpack.c.l.b16 %v4955
    %v5026 = vunpack.c.l.b16 %v4956
    %v5027 = vunpack.c.l.b16 %v4957
    %v5028 = vunpack.c.l.b16 %v4958
    %v5029 = vunpack.c.l.b16 %v4959
    %v5030 = vunpack.c.l.b16 %v4960
    %v5031 = vunpack.c.l.b16 %v4961
    %v5032 = vunpack.c.l.b16 %v4962
    %v5033 = vunpack.c.l.b16 %v4963
    %v5034 = vunpack.c.l.b16 %v4964
    %v5035 = vunpack.c.l.b16 %v4965
    %v5036 = vunpack.c.l.b16 %v4966
    %v5037 = vunpack.c.l.b16 %v4967
    %v5038 = vunpack.c.l.b16 %v4968
    %v5039 = vunpack.c.l.b16 %v4969
    %v5040 = vunpack.c.l.b16 %v4970
    %v5041 = vunpack.c.l.b16 %v4971
    %v5042 = vunpack.c.l.b16 %v4972
    %v5043 = vunpack.c.l.b16 %v4973
    %v5044 = vunpack.c.l.b16 %v4974
    %v5045 = vunpack.c.l.b16 %v4975
    %v5046 = vunpack.c.l.b16 %v4976
    %v5047 = vunpack.c.l.b16 %v4977
    %v5048 = vunpack.c.l.b16 %v4978
    %v5049 = vunpack.c.l.b16 %v4979
    %v5050 = vpack.c.b16 %v5019, %v5018
    %v5051 = vpack.c.b16 %v5021, %v5020
    %v5052 = vpack.c.b16 %v5023, %v5022
    %v5053 = vpack.c.b16 %v5025, %v5024
    %v5054 = vpack.c.b16 %v5027, %v5026
    %v5055 = vpack.c.b16 %v5029, %v5028
    %v5056 = vpack.c.b16 %v5031, %v5030
    %v5057 = vpack.c.b16 %v5033, %v5032
    %v5058 = vpack.c.b16 %v5035, %v5034
    %v5059 = vpack.c.b16 %v5037, %v5036
    %v5060 = vpack.c.b16 %v5039, %v5038
    %v5061 = vpack.c.b16 %v5041, %v5040
    %v5062 = vpack.c.b16 %v5043, %v5042
    %v5063 = vpack.c.b16 %v5045, %v5044
    %v5064 = vpack.c.b16 %v5047, %v5046
    %v5065 = vpack.c.b16 %v5049, %v5048
    %5082 = vmatprep.subr.bf16.mxu0 0
    %5083 = vmatpush1.bf16.msra.mxu0 %v5050
    %5084 = vmatprep.subr.bf16.mxu0 0
    %5085 = vmatpush1.bf16.msra.mxu0 %v5051
    %5086 = vmatprep.subr.bf16.mxu0 0
    %5087 = vmatpush1.bf16.msra.mxu0 %v5052
    %5088 = vmatprep.subr.bf16.mxu0 0
    %5089 = vmatpush1.bf16.msra.mxu0 %v5053
    %5090 = vmatprep.subr.bf16.mxu0 0
    %5091 = vmatpush1.bf16.msra.mxu0 %v5054
    %5092 = vmatprep.subr.bf16.mxu0 0
    %5093 = vmatpush1.bf16.msra.mxu0 %v5055
    %5094 = vmatprep.subr.bf16.mxu0 0
    %5095 = vmatpush1.bf16.msra.mxu0 %v5056
    %5096 = vmatprep.subr.bf16.mxu0 0
    %5097 = vmatpush1.bf16.msra.mxu0 %v5057
    %5098 = vmatprep.subr.bf16.mxu0 0
    %5099 = vmatpush1.bf16.msra.mxu0 %v5058
    %5100 = vmatprep.subr.bf16.mxu0 0
    %5101 = vmatpush1.bf16.msra.mxu0 %v5059
    %5102 = vmatprep.subr.bf16.mxu0 0
    %5103 = vmatpush1.bf16.msra.mxu0 %v5060
    %5104 = vmatprep.subr.bf16.mxu0 0
    %5105 = vmatpush1.bf16.msra.mxu0 %v5061
    %5106 = vmatprep.subr.bf16.mxu0 0
    %5107 = vmatpush1.bf16.msra.mxu0 %v5062
    %5108 = vmatprep.subr.bf16.mxu0 0
    %5109 = vmatpush1.bf16.msra.mxu0 %v5063
    %5110 = vmatprep.subr.bf16.mxu0 0
    %5111 = vmatpush1.bf16.msra.mxu0 %v5064
    %5112 = vmatprep.subr.bf16.mxu0 0
    %5113 = vmatpush1.bf16.msra.mxu0 %v5065
    %5114 = vmatprep.mubr.bf16.mxu0 %v4915
    %5115 = vmatmul.mubr.bf16.gmra.mrb[0].mxu0 %v4914
    %v5116 = vpop.f32.mrb[0].mxu0
    %v5117 = vadd.f32 %v4984, %v5116
    %v5118 = vpop.f32.mrb[0].mxu0
    %v5119 = vpop.f32.mrb[0].mxu0
    %v5120 = vadd.f32 %v4984, %v5119
    %v5121 = vpop.f32.mrb[0].mxu0
    %5122 = vmatprep.mubr.bf16.mxu0 %v4917
    %5123 = vmatmul.mubr.bf16.gmra.mrb[0].mxu0 %v4916
    %v5124 = vpop.f32.mrb[0].mxu0
    %v5125 = vadd.f32 %v4984, %v5124
    %v5126 = vpop.f32.mrb[0].mxu0
    %v5127 = vpop.f32.mrb[0].mxu0
    %v5128 = vadd.f32 %v4984, %v5127
    %v5129 = vpop.f32.mrb[0].mxu0
    %5130 = vmatprep.mubr.bf16.mxu0 %v4919
    %5131 = vmatmul.mubr.bf16.gmra.mrb[0].mxu0 %v4918
    %v5132 = vpop.f32.mrb[0].mxu0
    %v5133 = vadd.f32 %v4984, %v5132
    %v5134 = vpop.f32.mrb[0].mxu0
    %v5135 = vpop.f32.mrb[0].mxu0
    %v5136 = vadd.f32 %v4984, %v5135
    %v5137 = vpop.f32.mrb[0].mxu0
    %5138 = vmatprep.mubr.bf16.mxu0 %v4921
    %5139 = vmatmul.mubr.bf16.gmra.mrb[0].mxu0 %v4920
    %v5140 = vpop.f32.mrb[0].mxu0
    %v5141 = vadd.f32 %v4984, %v5140
    %v5142 = vpop.f32.mrb[0].mxu0
    %v5143 = vpop.f32.mrb[0].mxu0
    %v5144 = vpop.f32.mrb[0].mxu0
    %5145 = vdwg.mxu0
    %v5146 = vmul.f32 %v5117, 0.5
    %v5147 = vmul.f32 %v5120, 0.5
    %v5148 = vmul.f32 %v5125, 0.5
    %v5149 = vmul.f32 %v5128, 0.5
    %v5150 = vmul.f32 %v5133, 0.5
    %v5151 = vmul.f32 %v5136, 0.5
    %v5152 = vmul.f32 %v5141, 0.5
    %v5153 = vtanh.pop %v5146
    %v5154 = vtanh.pop %v5147
    %v5155 = vtanh.pop %v5148
    %v5156 = vtanh.pop %v5149
    %v5157 = vtanh.pop %v5150
    %v5158 = vtanh.pop %v5151
    %v5159 = vtanh.pop %v5152
    %v5160 = vmul.f32 %v5153, 0.5
    %v5161 = vmul.f32 %v5154, 0.5
    %v5162 = vmul.f32 %v5155, 0.5
    %v5163 = vmul.f32 %v5156, 0.5
    %v5164 = vmul.f32 %v5157, 0.5
    %v5165 = vmul.f32 %v5158, 0.5
    %v5166 = vmul.f32 %v5159, 0.5
    %v5167 = vadd.f32 %v5160, 0.5
    %v5168 = vadd.f32 %v5161, 0.5
    %v5169 = vadd.f32 %v5162, 0.5
    %v5170 = vadd.f32 %v5163, 0.5
    %v5171 = vadd.f32 %v5164, 0.5
    %v5172 = vadd.f32 %v5165, 0.5
    %v5173 = vadd.f32 %v5166, 0.5
    %v5174 = vpack.c.bf16 %v5168, %v5167
    %v5175 = vpack.c.bf16 %v5170, %v5169
    %v5176 = vpack.c.bf16 %v5172, %v5171
    %v5177 = vpack.c.bf16 %v5173, %v5173
    %v5182 = vunpack.c.l.b16 %v5174
    %v5183 = vunpack.c.h.b16 %v5174
    %v5184 = vunpack.c.l.b16 %v5175
    %v5185 = vunpack.c.h.b16 %v5175
    %v5186 = vunpack.c.l.b16 %v5176
    %v5187 = vunpack.c.h.b16 %v5176
    %v5188 = vunpack.c.l.b16 %v5177
    %v5189 = vpack.c.b16 %v5182, %v5182
    %v5190 = vpack.c.b16 %v5183, %v5183
    %v5191 = vpack.c.b16 %v5184, %v5184
    %v5192 = vpack.c.b16 %v5185, %v5185
    %v5193 = vpack.c.b16 %v5186, %v5186
    %v5194 = vpack.c.b16 %v5187, %v5187
    %v5195 = vpack.c.b16 %v5188, %v5188
    %5203 = vst [vmem:[%s13] sm:$0xf] %v5189
    %5204 = vst [vmem:[%s13 + $0x4] sm:$0xf] %v5190
    %5205 = vst [vmem:[%s13 + $0x8] sm:$0xf] %v5191
    %5206 = vst [vmem:[%s13 + $0xc] sm:$0xf] %v5192
    %5207 = vst [vmem:[%s13 + $0x10] sm:$0xf] %v5193
    %5208 = vst [vmem:[%s13 + $0x14] sm:$0xf] %v5194
    %5209 = vst [vmem:[%s13 + $0x18] sm:$0xf] %v5195
    %s5210 = scalar_lea.vmem [#allocation8], 256
    %v5211 = vld [vmem:[%s5210] sm:$0xf]
    %v5212 = vld [vmem:[%s5210 + $0x4] sm:$0xf]
    %v5213 = vld [vmem:[%s5210 + $0x8] sm:$0xf]
    %v5214 = vld [vmem:[%s5210 + $0xc] sm:$0xf]
    %v5215 = vld [vmem:[%s5210 + $0x10] sm:$0xf]
    %v5216 = vld [vmem:[%s5210 + $0x14] sm:$0xf]
    %v5217 = vld [vmem:[%s5210 + $0x18] sm:$0xf]
    %v5218 = vld [vmem:[%s5210 + $0x1c] sm:$0xf]
    %v5219 = vld [vmem:[%s5210 + $0x20] sm:$0xf]
    %v5220 = vld [vmem:[%s5210 + $0x24] sm:$0xf]
    %v5221 = vld [vmem:[%s5210 + $0x28] sm:$0xf]
    %v5222 = vld [vmem:[%s5210 + $0x2c] sm:$0xf]
    %v5223 = vld [vmem:[%s5210 + $0x30] sm:$0xf]
    %v5224 = vld [vmem:[%s5210 + $0x34] sm:$0xf]
    %v5225 = vld [vmem:[%s5210 + $0x38] sm:$0xf]
    %v5226 = vld [vmem:[%s5210 + $0x3c] sm:$0xf]
    %v5227 = vld [vmem:[%s5210 + $0x40] sm:$0xf]
    %v5228 = vld [vmem:[%s5210 + $0x44] sm:$0xf]
    %v5229 = vld [vmem:[%s5210 + $0x48] sm:$0xf]
    %v5230 = vld [vmem:[%s5210 + $0x4c] sm:$0xf]
    %v5231 = vld [vmem:[%s5210 + $0x50] sm:$0xf]
    %v5232 = vld [vmem:[%s5210 + $0x54] sm:$0xf]
    %v5233 = vld [vmem:[%s5210 + $0x58] sm:$0xf]
    %v5234 = vld [vmem:[%s5210 + $0x5c] sm:$0xf]
    %v5235 = vld [vmem:[%s5210 + $0x60] sm:$0xf]
    %v5236 = vld [vmem:[%s5210 + $0x64] sm:$0xf]
    %v5237 = vld [vmem:[%s5210 + $0x68] sm:$0xf]
    %v5238 = vld [vmem:[%s5210 + $0x6c] sm:$0xf]
    %v5239 = vld [vmem:[%s5210 + $0x70] sm:$0xf]
    %v5240 = vld [vmem:[%s5210 + $0x74] sm:$0xf]
    %v5241 = vld [vmem:[%s5210 + $0x78] sm:$0xf]
    %v5242 = vld [vmem:[%s5210 + $0x7c] sm:$0xf]
    %v5243 = vld [vmem:[#allocation8] sm:$0xf]
    %v5244 = vld [vmem:[#allocation8 + $0x4] sm:$0xf]
    %v5245 = vld [vmem:[#allocation8 + $0x8] sm:$0xf]
    %v5246 = vld [vmem:[#allocation8 + $0xc] sm:$0xf]
    %v5247 = vld [vmem:[#allocation8 + $0x10] sm:$0xf]
    %v5248 = vld [vmem:[#allocation8 + $0x14] sm:$0xf]
    %v5249 = vld [vmem:[#allocation8 + $0x18] sm:$0xf]
    %v5250 = vld [vmem:[#allocation8 + $0x1c] sm:$0xf]
    %v5251 = vld [vmem:[#allocation8 + $0x20] sm:$0xf]
    %v5252 = vld [vmem:[#allocation8 + $0x24] sm:$0xf]
    %v5253 = vld [vmem:[#allocation8 + $0x28] sm:$0xf]
    %v5254 = vld [vmem:[#allocation8 + $0x2c] sm:$0xf]
    %v5255 = vld [vmem:[#allocation8 + $0x30] sm:$0xf]
    %v5256 = vld [vmem:[#allocation8 + $0x34] sm:$0xf]
    %v5257 = vld [vmem:[#allocation8 + $0x38] sm:$0xf]
    %v5258 = vld [vmem:[#allocation8 + $0x3c] sm:$0xf]
    %v5259 = vld [vmem:[#allocation8 + $0x40] sm:$0xf]
    %v5260 = vld [vmem:[#allocation8 + $0x44] sm:$0xf]
    %v5261 = vld [vmem:[#allocation8 + $0x48] sm:$0xf]
    %v5262 = vld [vmem:[#allocation8 + $0x4c] sm:$0xf]
    %v5263 = vld [vmem:[#allocation8 + $0x50] sm:$0xf]
    %v5264 = vld [vmem:[#allocation8 + $0x54] sm:$0xf]
    %v5265 = vld [vmem:[#allocation8 + $0x58] sm:$0xf]
    %v5266 = vld [vmem:[#allocation8 + $0x5c] sm:$0xf]
    %v5267 = vld [vmem:[#allocation8 + $0x60] sm:$0xf]
    %v5268 = vld [vmem:[#allocation8 + $0x64] sm:$0xf]
    %v5269 = vld [vmem:[#allocation8 + $0x68] sm:$0xf]
    %v5270 = vld [vmem:[#allocation8 + $0x6c] sm:$0xf]
    %v5271 = vld [vmem:[#allocation8 + $0x70] sm:$0xf]
    %v5272 = vld [vmem:[#allocation8 + $0x74] sm:$0xf]
    %v5273 = vld [vmem:[#allocation8 + $0x78] sm:$0xf]
    %v5274 = vld [vmem:[#allocation8 + $0x7c] sm:$0xf]
    %v5307 = vunpack.c.l.b16 %v5243
    %v5308 = vunpack.c.l.b16 %v5244
    %v5309 = vunpack.c.l.b16 %v5245
    %v5310 = vunpack.c.l.b16 %v5246
    %v5311 = vunpack.c.l.b16 %v5247
    %v5312 = vunpack.c.l.b16 %v5248
    %v5313 = vunpack.c.l.b16 %v5249
    %v5314 = vunpack.c.l.b16 %v5250
    %v5315 = vunpack.c.l.b16 %v5251
    %v5316 = vunpack.c.l.b16 %v5252
    %v5317 = vunpack.c.l.b16 %v5253
    %v5318 = vunpack.c.l.b16 %v5254
    %v5319 = vunpack.c.l.b16 %v5255
    %v5320 = vunpack.c.l.b16 %v5256
    %v5321 = vunpack.c.l.b16 %v5257
    %v5322 = vunpack.c.l.b16 %v5258
    %v5323 = vunpack.c.l.b16 %v5259
    %v5324 = vunpack.c.l.b16 %v5260
    %v5325 = vunpack.c.l.b16 %v5261
    %v5326 = vunpack.c.l.b16 %v5262
    %v5327 = vunpack.c.l.b16 %v5263
    %v5328 = vunpack.c.l.b16 %v5264
    %v5329 = vunpack.c.l.b16 %v5265
    %v5330 = vunpack.c.l.b16 %v5266
    %v5331 = vunpack.c.l.b16 %v5267
    %v5332 = vunpack.c.l.b16 %v5268
    %v5333 = vunpack.c.l.b16 %v5269
    %v5334 = vunpack.c.l.b16 %v5270
    %v5335 = vunpack.c.l.b16 %v5271
    %v5336 = vunpack.c.l.b16 %v5272
    %v5337 = vunpack.c.l.b16 %v5273
    %v5338 = vunpack.c.l.b16 %v5274
    %v5339 = vpack.c.b16 %v5308, %v5307
    %v5340 = vpack.c.b16 %v5310, %v5309
    %v5341 = vpack.c.b16 %v5312, %v5311
    %v5342 = vpack.c.b16 %v5314, %v5313
    %v5343 = vpack.c.b16 %v5316, %v5315
    %v5344 = vpack.c.b16 %v5318, %v5317
    %v5345 = vpack.c.b16 %v5320, %v5319
    %v5346 = vpack.c.b16 %v5322, %v5321
    %v5347 = vpack.c.b16 %v5324, %v5323
    %v5348 = vpack.c.b16 %v5326, %v5325
    %v5349 = vpack.c.b16 %v5328, %v5327
    %v5350 = vpack.c.b16 %v5330, %v5329
    %v5351 = vpack.c.b16 %v5332, %v5331
    %v5352 = vpack.c.b16 %v5334, %v5333
    %v5353 = vpack.c.b16 %v5336, %v5335
    %v5354 = vpack.c.b16 %v5338, %v5337
    %5371 = vmatprep.subr.bf16.mxu0 0
    %5372 = vmatpush1.bf16.msra.mxu0 %v5339
    %5373 = vmatprep.subr.bf16.mxu0 0
    %5374 = vmatpush1.bf16.msra.mxu0 %v5340
    %5375 = vmatprep.subr.bf16.mxu0 0
    %5376 = vmatpush1.bf16.msra.mxu0 %v5341
    %5377 = vmatprep.subr.bf16.mxu0 0
    %5378 = vmatpush1.bf16.msra.mxu0 %v5342
    %5379 = vmatprep.subr.bf16.mxu0 0
    %5380 = vmatpush1.bf16.msra.mxu0 %v5343
    %5381 = vmatprep.subr.bf16.mxu0 0
    %5382 = vmatpush1.bf16.msra.mxu0 %v5344
    %5383 = vmatprep.subr.bf16.mxu0 0
    %5384 = vmatpush1.bf16.msra.mxu0 %v5345
    %5385 = vmatprep.subr.bf16.mxu0 0
    %5386 = vmatpush1.bf16.msra.mxu0 %v5346
    %5387 = vmatprep.subr.bf16.mxu0 0
    %5388 = vmatpush1.bf16.msra.mxu0 %v5347
    %5389 = vmatprep.subr.bf16.mxu0 0
    %5390 = vmatpush1.bf16.msra.mxu0 %v5348
    %5391 = vmatprep.subr.bf16.mxu0 0
    %5392 = vmatpush1.bf16.msra.mxu0 %v5349
    %5393 = vmatprep.subr.bf16.mxu0 0
    %5394 = vmatpush1.bf16.msra.mxu0 %v5350
    %5395 = vmatprep.subr.bf16.mxu0 0
    %5396 = vmatpush1.bf16.msra.mxu0 %v5351
    %5397 = vmatprep.subr.bf16.mxu0 0
    %5398 = vmatpush1.bf16.msra.mxu0 %v5352
    %5399 = vmatprep.subr.bf16.mxu0 0
    %5400 = vmatpush1.bf16.msra.mxu0 %v5353
    %5401 = vmatprep.subr.bf16.mxu0 0
    %5402 = vmatpush1.bf16.msra.mxu0 %v5354
    %5403 = vmatprep.mubr.bf16.mxu0 %v4939
    %5404 = vmatmul.mubr.bf16.gmra.mrb[0].mxu0 %v4938
    %v5405 = vpop.f32.mrb[0].mxu0
    %v5406 = vadd.f32 0.0, %v5405
    %v5407 = vpop.f32.mrb[0].mxu0
    %v5408 = vpop.f32.mrb[0].mxu0
    %v5409 = vadd.f32 0.0, %v5408
    %v5410 = vpop.f32.mrb[0].mxu0
    %5411 = vmatprep.mubr.bf16.mxu0 %v4941
    %5412 = vmatmul.mubr.bf16.gmra.mrb[0].mxu0 %v4940
    %v5413 = vpop.f32.mrb[0].mxu0
    %v5414 = vadd.f32 0.0, %v5413
    %v5415 = vpop.f32.mrb[0].mxu0
    %v5416 = vpop.f32.mrb[0].mxu0
    %v5417 = vadd.f32 0.0, %v5416
    %v5418 = vpop.f32.mrb[0].mxu0
    %5419 = vmatprep.mubr.bf16.mxu0 %v4943
    %5420 = vmatmul.mubr.bf16.gmra.mrb[0].mxu0 %v4942
    %v5421 = vpop.f32.mrb[0].mxu0
    %v5422 = vadd.f32 0.0, %v5421
    %v5423 = vpop.f32.mrb[0].mxu0
    %v5424 = vpop.f32.mrb[0].mxu0
    %v5425 = vadd.f32 0.0, %v5424
    %v5426 = vpop.f32.mrb[0].mxu0
    %5427 = vmatprep.mubr.bf16.mxu0 %v4945
    %5428 = vmatmul.mubr.bf16.gmra.mrb[0].mxu0 %v4944
    %v5429 = vpop.f32.mrb[0].mxu0
    %v5430 = vadd.f32 0.0, %v5429
    %v5431 = vpop.f32.mrb[0].mxu0
    %v5432 = vpop.f32.mrb[0].mxu0
    %v5433 = vpop.f32.mrb[0].mxu0
    %5434 = vdwg.mxu0
    %v5467 = vunpack.c.l.b16 %v5211
    %v5468 = vunpack.c.l.b16 %v5212
    %v5469 = vunpack.c.l.b16 %v5213
    %v5470 = vunpack.c.l.b16 %v5214
    %v5471 = vunpack.c.l.b16 %v5215
    %v5472 = vunpack.c.l.b16 %v5216
    %v5473 = vunpack.c.l.b16 %v5217
    %v5474 = vunpack.c.l.b16 %v5218
    %v5475 = vunpack.c.l.b16 %v5219
    %v5476 = vunpack.c.l.b16 %v5220
    %v5477 = vunpack.c.l.b16 %v5221
    %v5478 = vunpack.c.l.b16 %v5222
    %v5479 = vunpack.c.l.b16 %v5223
    %v5480 = vunpack.c.l.b16 %v5224
    %v5481 = vunpack.c.l.b16 %v5225
    %v5482 = vunpack.c.l.b16 %v5226
    %v5483 = vunpack.c.l.b16 %v5227
    %v5484 = vunpack.c.l.b16 %v5228
    %v5485 = vunpack.c.l.b16 %v5229
    %v5486 = vunpack.c.l.b16 %v5230
    %v5487 = vunpack.c.l.b16 %v5231
    %v5488 = vunpack.c.l.b16 %v5232
    %v5489 = vunpack.c.l.b16 %v5233
    %v5490 = vunpack.c.l.b16 %v5234
    %v5491 = vunpack.c.l.b16 %v5235
    %v5492 = vunpack.c.l.b16 %v5236
    %v5493 = vunpack.c.l.b16 %v5237
    %v5494 = vunpack.c.l.b16 %v5238
    %v5495 = vunpack.c.l.b16 %v5239
    %v5496 = vunpack.c.l.b16 %v5240
    %v5497 = vunpack.c.l.b16 %v5241
    %v5498 = vunpack.c.l.b16 %v5242
    %v5499 = vpack.c.b16 %v5468, %v5467
    %v5500 = vpack.c.b16 %v5470, %v5469
    %v5501 = vpack.c.b16 %v5472, %v5471
    %v5502 = vpack.c.b16 %v5474, %v5473
    %v5503 = vpack.c.b16 %v5476, %v5475
    %v5504 = vpack.c.b16 %v5478, %v5477
    %v5505 = vpack.c.b16 %v5480, %v5479
    %v5506 = vpack.c.b16 %v5482, %v5481
    %v5507 = vpack.c.b16 %v5484, %v5483
    %v5508 = vpack.c.b16 %v5486, %v5485
    %v5509 = vpack.c.b16 %v5488, %v5487
    %v5510 = vpack.c.b16 %v5490, %v5489
    %v5511 = vpack.c.b16 %v5492, %v5491
    %v5512 = vpack.c.b16 %v5494, %v5493
    %v5513 = vpack.c.b16 %v5496, %v5495
    %v5514 = vpack.c.b16 %v5498, %v5497
    %5531 = vmatprep.subr.bf16.mxu0 0
    %5532 = vmatpush1.bf16.msra.mxu0 %v5499
    %5533 = vmatprep.subr.bf16.mxu0 0
    %5534 = vmatpush1.bf16.msra.mxu0 %v5500
    %5535 = vmatprep.subr.bf16.mxu0 0
    %5536 = vmatpush1.bf16.msra.mxu0 %v5501
    %5537 = vmatprep.subr.bf16.mxu0 0
    %5538 = vmatpush1.bf16.msra.mxu0 %v5502
    %5539 = vmatprep.subr.bf16.mxu0 0
    %5540 = vmatpush1.bf16.msra.mxu0 %v5503
    %5541 = vmatprep.subr.bf16.mxu0 0
    %5542 = vmatpush1.bf16.msra.mxu0 %v5504
    %5543 = vmatprep.subr.bf16.mxu0 0
    %5544 = vmatpush1.bf16.msra.mxu0 %v5505
    %5545 = vmatprep.subr.bf16.mxu0 0
    %5546 = vmatpush1.bf16.msra.mxu0 %v5506
    %5547 = vmatprep.subr.bf16.mxu0 0
    %5548 = vmatpush1.bf16.msra.mxu0 %v5507
    %5549 = vmatprep.subr.bf16.mxu0 0
    %5550 = vmatpush1.bf16.msra.mxu0 %v5508
    %5551 = vmatprep.subr.bf16.mxu0 0
    %5552 = vmatpush1.bf16.msra.mxu0 %v5509
    %5553 = vmatprep.subr.bf16.mxu0 0
    %5554 = vmatpush1.bf16.msra.mxu0 %v5510
    %5555 = vmatprep.subr.bf16.mxu0 0
    %5556 = vmatpush1.bf16.msra.mxu0 %v5511
    %5557 = vmatprep.subr.bf16.mxu0 0
    %5558 = vmatpush1.bf16.msra.mxu0 %v5512
    %5559 = vmatprep.subr.bf16.mxu0 0
    %5560 = vmatpush1.bf16.msra.mxu0 %v5513
    %5561 = vmatprep.subr.bf16.mxu0 0
    %5562 = vmatpush1.bf16.msra.mxu0 %v5514
    %5563 = vmatprep.mubr.bf16.mxu0 %v4915
    %5564 = vmatmul.mubr.bf16.gmra.mrb[0].mxu0 %v4914
    %v5565 = vpop.f32.mrb[0].mxu0
    %v5566 = vadd.f32 %v5406, %v5565
    %v5567 = vpop.f32.mrb[0].mxu0
    %v5568 = vpop.f32.mrb[0].mxu0
    %v5569 = vadd.f32 %v5409, %v5568
    %v5570 = vpop.f32.mrb[0].mxu0
    %5571 = vmatprep.mubr.bf16.mxu0 %v4917
    %5572 = vmatmul.mubr.bf16.gmra.mrb[0].mxu0 %v4916
    %v5573 = vpop.f32.mrb[0].mxu0
    %v5574 = vadd.f32 %v5414, %v5573
    %v5575 = vpop.f32.mrb[0].mxu0
    %v5576 = vpop.f32.mrb[0].mxu0
    %v5577 = vadd.f32 %v5417, %v5576
    %v5578 = vpop.f32.mrb[0].mxu0
    %5579 = vmatprep.mubr.bf16.mxu0 %v4919
    %5580 = vmatmul.mubr.bf16.gmra.mrb[0].mxu0 %v4918
    %v5581 = vpop.f32.mrb[0].mxu0
    %v5582 = vadd.f32 %v5422, %v5581
    %v5583 = vpop.f32.mrb[0].mxu0
    %v5584 = vpop.f32.mrb[0].mxu0
    %v5585 = vadd.f32 %v5425, %v5584
    %v5586 = vpop.f32.mrb[0].mxu0
    %5587 = vmatprep.mubr.bf16.mxu0 %v4921
    %5588 = vmatmul.mubr.bf16.gmra.mrb[0].mxu0 %v4920
    %v5589 = vpop.f32.mrb[0].mxu0
    %v5590 = vadd.f32 %v5430, %v5589
    %v5591 = vpop.f32.mrb[0].mxu0
    %v5592 = vpop.f32.mrb[0].mxu0
    %v5593 = vpop.f32.mrb[0].mxu0
    %5594 = vdwg.mxu0
    %v5595 = vadd.f32 %v5566, %v4984
    %v5596 = vadd.f32 %v5569, %v4984
    %v5597 = vadd.f32 %v5574, %v4984
    %v5598 = vadd.f32 %v5577, %v4984
    %v5599 = vadd.f32 %v5582, %v4984
    %v5600 = vadd.f32 %v5585, %v4984
    %v5601 = vadd.f32 %v5590, %v4984
    %v5602 = vmul.f32 %v5595, 0.5
    %v5603 = vmul.f32 %v5596, 0.5
    %v5604 = vmul.f32 %v5597, 0.5
    %v5605 = vmul.f32 %v5598, 0.5
    %v5606 = vmul.f32 %v5599, 0.5
    %v5607 = vmul.f32 %v5600, 0.5
    %v5608 = vmul.f32 %v5601, 0.5
    %v5609 = vtanh.pop %v5602
    %v5610 = vtanh.pop %v5603
    %v5611 = vtanh.pop %v5604
    %v5612 = vtanh.pop %v5605
    %v5613 = vtanh.pop %v5606
    %v5614 = vtanh.pop %v5607
    %v5615 = vtanh.pop %v5608
    %v5616 = vmul.f32 %v5609, 0.5
    %v5617 = vmul.f32 %v5610, 0.5
    %v5618 = vmul.f32 %v5611, 0.5
    %v5619 = vmul.f32 %v5612, 0.5
    %v5620 = vmul.f32 %v5613, 0.5
    %v5621 = vmul.f32 %v5614, 0.5
    %v5622 = vmul.f32 %v5615, 0.5
    %v5623 = vadd.f32 %v5616, 0.5
    %v5624 = vadd.f32 %v5617, 0.5
    %v5625 = vadd.f32 %v5618, 0.5
    %v5626 = vadd.f32 %v5619, 0.5
    %v5627 = vadd.f32 %v5620, 0.5
    %v5628 = vadd.f32 %v5621, 0.5
    %v5629 = vadd.f32 %v5622, 0.5
    %v5630 = vpack.c.bf16 %v5624, %v5623
    %v5631 = vpack.c.bf16 %v5626, %v5625
    %v5632 = vpack.c.bf16 %v5628, %v5627
    %v5633 = vpack.c.bf16 %v5629, %v5629
    %v5638 = vunpack.c.l.b16 %v5630
    %v5639 = vunpack.c.h.b16 %v5630
    %v5640 = vunpack.c.l.b16 %v5631
    %v5641 = vunpack.c.h.b16 %v5631
    %v5642 = vunpack.c.l.b16 %v5632
    %v5643 = vunpack.c.h.b16 %v5632
    %v5644 = vunpack.c.l.b16 %v5633
    %v5645 = vpack.c.b16 %v5638, %v5638
    %v5646 = vpack.c.b16 %v5639, %v5639
    %v5647 = vpack.c.b16 %v5640, %v5640
    %v5648 = vpack.c.b16 %v5641, %v5641
    %v5649 = vpack.c.b16 %v5642, %v5642
    %v5650 = vpack.c.b16 %v5643, %v5643
    %v5651 = vpack.c.b16 %v5644, %v5644
    %s5659 = scalar_lea.vmem %s13, 28
    %5660 = vst [vmem:[%s5659] sm:$0xf] %v5645
    %5661 = vst [vmem:[%s5659 + $0x4] sm:$0xf] %v5646
    %5662 = vst [vmem:[%s5659 + $0x8] sm:$0xf] %v5647
    %5663 = vst [vmem:[%s5659 + $0xc] sm:$0xf] %v5648
    %5664 = vst [vmem:[%s5659 + $0x10] sm:$0xf] %v5649
    %5665 = vst [vmem:[%s5659 + $0x14] sm:$0xf] %v5650
    %5666 = vst [vmem:[%s5659 + $0x18] sm:$0xf] %v5651
    %v5667 = vld [vmem:[%s4947] sm:$0xf]
    %v5668 = vld [vmem:[%s4947 + $0x4] sm:$0xf]
    %v5669 = vld [vmem:[%s4947 + $0x8] sm:$0xf]
    %v5670 = vld [vmem:[%s4947 + $0xc] sm:$0xf]
    %v5671 = vld [vmem:[%s4947 + $0x10] sm:$0xf]
    %v5672 = vld [vmem:[%s4947 + $0x14] sm:$0xf]
    %v5673 = vld [vmem:[%s4947 + $0x18] sm:$0xf]
    %v5674 = vld [vmem:[%s4947 + $0x1c] sm:$0xf]
    %v5675 = vld [vmem:[%s4947 + $0x20] sm:$0xf]
    %v5676 = vld [vmem:[%s4947 + $0x24] sm:$0xf]
    %v5677 = vld [vmem:[%s4947 + $0x28] sm:$0xf]
    %v5678 = vld [vmem:[%s4947 + $0x2c] sm:$0xf]
    %v5679 = vld [vmem:[%s4947 + $0x30] sm:$0xf]
    %v5680 = vld [vmem:[%s4947 + $0x34] sm:$0xf]
    %v5681 = vld [vmem:[%s4947 + $0x38] sm:$0xf]
    %v5682 = vld [vmem:[%s4947 + $0x3c] sm:$0xf]
    %v5683 = vld [vmem:[%s4947 + $0x40] sm:$0xf]
    %v5684 = vld [vmem:[%s4947 + $0x44] sm:$0xf]
    %v5685 = vld [vmem:[%s4947 + $0x48] sm:$0xf]
    %v5686 = vld [vmem:[%s4947 + $0x4c] sm:$0xf]
    %v5687 = vld [vmem:[%s4947 + $0x50] sm:$0xf]
    %v5688 = vld [vmem:[%s4947 + $0x54] sm:$0xf]
    %v5689 = vld [vmem:[%s4947 + $0x58] sm:$0xf]
    %v5690 = vld [vmem:[%s4947 + $0x5c] sm:$0xf]
    %v5691 = vld [vmem:[%s4947 + $0x60] sm:$0xf]
    %v5692 = vld [vmem:[%s4947 + $0x64] sm:$0xf]
    %v5693 = vld [vmem:[%s4947 + $0x68] sm:$0xf]
    %v5694 = vld [vmem:[%s4947 + $0x6c] sm:$0xf]
    %v5695 = vld [vmem:[%s4947 + $0x70] sm:$0xf]
    %v5696 = vld [vmem:[%s4947 + $0x74] sm:$0xf]
    %v5697 = vld [vmem:[%s4947 + $0x78] sm:$0xf]
    %v5698 = vld [vmem:[%s4947 + $0x7c] sm:$0xf]
    %v5731 = vunpack.c.l.b16 %v5667
    %v5732 = vunpack.c.l.b16 %v5668
    %v5733 = vunpack.c.l.b16 %v5669
    %v5734 = vunpack.c.l.b16 %v5670
    %v5735 = vunpack.c.l.b16 %v5671
    %v5736 = vunpack.c.l.b16 %v5672
    %v5737 = vunpack.c.l.b16 %v5673
    %v5738 = vunpack.c.l.b16 %v5674
    %v5739 = vunpack.c.l.b16 %v5675
    %v5740 = vunpack.c.l.b16 %v5676
    %v5741 = vunpack.c.l.b16 %v5677
    %v5742 = vunpack.c.l.b16 %v5678
    %v5743 = vunpack.c.l.b16 %v5679
    %v5744 = vunpack.c.l.b16 %v5680
    %v5745 = vunpack.c.l.b16 %v5681
    %v5746 = vunpack.c.l.b16 %v5682
    %v5747 = vunpack.c.l.b16 %v5683
    %v5748 = vunpack.c.l.b16 %v5684
    %v5749 = vunpack.c.l.b16 %v5685
    %v5750 = vunpack.c.l.b16 %v5686
    %v5751 = vunpack.c.l.b16 %v5687
    %v5752 = vunpack.c.l.b16 %v5688
    %v5753 = vunpack.c.l.b16 %v5689
    %v5754 = vunpack.c.l.b16 %v5690
    %v5755 = vunpack.c.l.b16 %v5691
    %v5756 = vunpack.c.l.b16 %v5692
    %v5757 = vunpack.c.l.b16 %v5693
    %v5758 = vunpack.c.l.b16 %v5694
    %v5759 = vunpack.c.l.b16 %v5695
    %v5760 = vunpack.c.l.b16 %v5696
    %v5761 = vunpack.c.l.b16 %v5697
    %v5762 = vunpack.c.l.b16 %v5698
    %v5763 = vpack.c.b16 %v5732, %v5731
    %v5764 = vpack.c.b16 %v5734, %v5733
    %v5765 = vpack.c.b16 %v5736, %v5735
    %v5766 = vpack.c.b16 %v5738, %v5737
    %v5767 = vpack.c.b16 %v5740, %v5739
    %v5768 = vpack.c.b16 %v5742, %v5741
    %v5769 = vpack.c.b16 %v5744, %v5743
    %v5770 = vpack.c.b16 %v5746, %v5745
    %v5771 = vpack.c.b16 %v5748, %v5747
    %v5772 = vpack.c.b16 %v5750, %v5749
    %v5773 = vpack.c.b16 %v5752, %v5751
    %v5774 = vpack.c.b16 %v5754, %v5753
    %v5775 = vpack.c.b16 %v5756, %v5755
    %v5776 = vpack.c.b16 %v5758, %v5757
    %v5777 = vpack.c.b16 %v5760, %v5759
    %v5778 = vpack.c.b16 %v5762, %v5761
    %5795 = vmatprep.subr.bf16.mxu0 0
    %5796 = vmatpush1.bf16.msra.mxu0 %v5763
    %5797 = vmatprep.subr.bf16.mxu0 0
    %5798 = vmatpush1.bf16.msra.mxu0 %v5764
    %5799 = vmatprep.subr.bf16.mxu0 0
    %5800 = vmatpush1.bf16.msra.mxu0 %v5765
    %5801 = vmatprep.subr.bf16.mxu0 0
    %5802 = vmatpush1.bf16.msra.mxu0 %v5766
    %5803 = vmatprep.subr.bf16.mxu0 0
    %5804 = vmatpush1.bf16.msra.mxu0 %v5767
    %5805 = vmatprep.subr.bf16.mxu0 0
    %5806 = vmatpush1.bf16.msra.mxu0 %v5768
    %5807 = vmatprep.subr.bf16.mxu0 0
    %5808 = vmatpush1.bf16.msra.mxu0 %v5769
    %5809 = vmatprep.subr.bf16.mxu0 0
    %5810 = vmatpush1.bf16.msra.mxu0 %v5770
    %5811 = vmatprep.subr.bf16.mxu0 0
    %5812 = vmatpush1.bf16.msra.mxu0 %v5771
    %5813 = vmatprep.subr.bf16.mxu0 0
    %5814 = vmatpush1.bf16.msra.mxu0 %v5772
    %5815 = vmatprep.subr.bf16.mxu0 0
    %5816 = vmatpush1.bf16.msra.mxu0 %v5773
    %5817 = vmatprep.subr.bf16.mxu0 0
    %5818 = vmatpush1.bf16.msra.mxu0 %v5774
    %5819 = vmatprep.subr.bf16.mxu0 0
    %5820 = vmatpush1.bf16.msra.mxu0 %v5775
    %5821 = vmatprep.subr.bf16.mxu0 0
    %5822 = vmatpush1.bf16.msra.mxu0 %v5776
    %5823 = vmatprep.subr.bf16.mxu0 0
    %5824 = vmatpush1.bf16.msra.mxu0 %v5777
    %5825 = vmatprep.subr.bf16.mxu0 0
    %5826 = vmatpush1.bf16.msra.mxu0 %v5778
    %5827 = vmatprep.mubr.bf16.mxu0 %v4939
    %5828 = vmatmul.mubr.bf16.gmra.mrb[0].mxu0 %v4938
    %v5829 = vpop.f32.mrb[0].mxu0
    %v5830 = vadd.f32 %v4984, %v5829
    %v5831 = vpop.f32.mrb[0].mxu0
    %v5832 = vpop.f32.mrb[0].mxu0
    %v5833 = vadd.f32 %v4984, %v5832
    %v5834 = vpop.f32.mrb[0].mxu0
    %5835 = vmatprep.mubr.bf16.mxu0 %v4941
    %5836 = vmatmul.mubr.bf16.gmra.mrb[0].mxu0 %v4940
    %v5837 = vpop.f32.mrb[0].mxu0
    %v5838 = vadd.f32 %v4984, %v5837
    %v5839 = vpop.f32.mrb[0].mxu0
    %v5840 = vpop.f32.mrb[0].mxu0
    %v5841 = vadd.f32 %v4984, %v5840
    %v5842 = vpop.f32.mrb[0].mxu0
    %5843 = vmatprep.mubr.bf16.mxu0 %v4943
    %5844 = vmatmul.mubr.bf16.gmra.mrb[0].mxu0 %v4942
    %v5845 = vpop.f32.mrb[0].mxu0
    %v5846 = vadd.f32 %v4984, %v5845
    %v5847 = vpop.f32.mrb[0].mxu0
    %v5848 = vpop.f32.mrb[0].mxu0
    %v5849 = vadd.f32 %v4984, %v5848
    %v5850 = vpop.f32.mrb[0].mxu0
    %5851 = vmatprep.mubr.bf16.mxu0 %v4945
    %5852 = vmatmul.mubr.bf16.gmra.mrb[0].mxu0 %v4944
    %v5853 = vpop.f32.mrb[0].mxu0
    %v5854 = vadd.f32 %v4984, %v5853
    %v5855 = vpop.f32.mrb[0].mxu0
    %v5856 = vpop.f32.mrb[0].mxu0
    %v5857 = vpop.f32.mrb[0].mxu0
    %5858 = vdwg.mxu0
    %v5859 = vmul.f32 %v5830, 0.5
    %v5860 = vmul.f32 %v5833, 0.5
    %v5861 = vmul.f32 %v5838, 0.5
    %v5862 = vmul.f32 %v5841, 0.5
    %v5863 = vmul.f32 %v5846, 0.5
    %v5864 = vmul.f32 %v5849, 0.5
    %v5865 = vmul.f32 %v5854, 0.5
    %v5866 = vtanh.pop %v5859
    %v5867 = vtanh.pop %v5860
    %v5868 = vtanh.pop %v5861
    %v5869 = vtanh.pop %v5862
    %v5870 = vtanh.pop %v5863
    %v5871 = vtanh.pop %v5864
    %v5872 = vtanh.pop %v5865
    %v5873 = vmul.f32 %v5866, 0.5
    %v5874 = vmul.f32 %v5867, 0.5
    %v5875 = vmul.f32 %v5868, 0.5
    %v5876 = vmul.f32 %v5869, 0.5
    %v5877 = vmul.f32 %v5870, 0.5
    %v5878 = vmul.f32 %v5871, 0.5
    %v5879 = vmul.f32 %v5872, 0.5
    %v5880 = vadd.f32 %v5873, 0.5
    %v5881 = vadd.f32 %v5874, 0.5
    %v5882 = vadd.f32 %v5875, 0.5
    %v5883 = vadd.f32 %v5876, 0.5
    %v5884 = vadd.f32 %v5877, 0.5
    %v5885 = vadd.f32 %v5878, 0.5
    %v5886 = vadd.f32 %v5879, 0.5
    %v5887 = vpack.c.bf16 %v5881, %v5880
    %v5888 = vpack.c.bf16 %v5883, %v5882
    %v5889 = vpack.c.bf16 %v5885, %v5884
    %v5890 = vpack.c.bf16 %v5886, %v5886
    %v5895 = vunpack.c.l.b16 %v5887
    %v5896 = vunpack.c.h.b16 %v5887
    %v5897 = vunpack.c.l.b16 %v5888
    %v5898 = vunpack.c.h.b16 %v5888
    %v5899 = vunpack.c.l.b16 %v5889
    %v5900 = vunpack.c.h.b16 %v5889
    %v5901 = vunpack.c.l.b16 %v5890
    %v5902 = vpack.c.b16 %v5895, %v5895
    %v5903 = vpack.c.b16 %v5896, %v5896
    %v5904 = vpack.c.b16 %v5897, %v5897
    %v5905 = vpack.c.b16 %v5898, %v5898
    %v5906 = vpack.c.b16 %v5899, %v5899
    %v5907 = vpack.c.b16 %v5900, %v5900
    %v5908 = vpack.c.b16 %v5901, %v5901
    %s5916 = scalar_lea.vmem %s13, 56
    %5917 = vst [vmem:[%s5916] sm:$0xf] %v5902
    %5918 = vst [vmem:[%s5916 + $0x4] sm:$0xf] %v5903
    %5919 = vst [vmem:[%s5916 + $0x8] sm:$0xf] %v5904
    %5920 = vst [vmem:[%s5916 + $0xc] sm:$0xf] %v5905
    %5921 = vst [vmem:[%s5916 + $0x10] sm:$0xf] %v5906
    %5922 = vst [vmem:[%s5916 + $0x14] sm:$0xf] %v5907
    %5923 = vst [vmem:[%s5916 + $0x18] sm:$0xf] %v5908
    %v5924 = vld [vmem:[%s5210] sm:$0xf]
    %v5925 = vld [vmem:[%s5210 + $0x4] sm:$0xf]
    %v5926 = vld [vmem:[%s5210 + $0x8] sm:$0xf]
    %v5927 = vld [vmem:[%s5210 + $0xc] sm:$0xf]
    %v5928 = vld [vmem:[%s5210 + $0x10] sm:$0xf]
    %v5929 = vld [vmem:[%s5210 + $0x14] sm:$0xf]
    %v5930 = vld [vmem:[%s5210 + $0x18] sm:$0xf]
    %v5931 = vld [vmem:[%s5210 + $0x1c] sm:$0xf]
    %v5932 = vld [vmem:[%s5210 + $0x20] sm:$0xf]
    %v5933 = vld [vmem:[%s5210 + $0x24] sm:$0xf]
    %v5934 = vld [vmem:[%s5210 + $0x28] sm:$0xf]
    %v5935 = vld [vmem:[%s5210 + $0x2c] sm:$0xf]
    %v5936 = vld [vmem:[%s5210 + $0x30] sm:$0xf]
    %v5937 = vld [vmem:[%s5210 + $0x34] sm:$0xf]
    %v5938 = vld [vmem:[%s5210 + $0x38] sm:$0xf]
    %v5939 = vld [vmem:[%s5210 + $0x3c] sm:$0xf]
    %v5940 = vld [vmem:[%s5210 + $0x40] sm:$0xf]
    %v5941 = vld [vmem:[%s5210 + $0x44] sm:$0xf]
    %v5942 = vld [vmem:[%s5210 + $0x48] sm:$0xf]
    %v5943 = vld [vmem:[%s5210 + $0x4c] sm:$0xf]
    %v5944 = vld [vmem:[%s5210 + $0x50] sm:$0xf]
    %v5945 = vld [vmem:[%s5210 + $0x54] sm:$0xf]
    %v5946 = vld [vmem:[%s5210 + $0x58] sm:$0xf]
    %v5947 = vld [vmem:[%s5210 + $0x5c] sm:$0xf]
    %v5948 = vld [vmem:[%s5210 + $0x60] sm:$0xf]
    %v5949 = vld [vmem:[%s5210 + $0x64] sm:$0xf]
    %v5950 = vld [vmem:[%s5210 + $0x68] sm:$0xf]
    %v5951 = vld [vmem:[%s5210 + $0x6c] sm:$0xf]
    %v5952 = vld [vmem:[%s5210 + $0x70] sm:$0xf]
    %v5953 = vld [vmem:[%s5210 + $0x74] sm:$0xf]
    %v5954 = vld [vmem:[%s5210 + $0x78] sm:$0xf]
    %v5955 = vld [vmem:[%s5210 + $0x7c] sm:$0xf]
    %v5956 = vld [vmem:[#allocation8] sm:$0xf]
    %v5957 = vld [vmem:[#allocation8 + $0x4] sm:$0xf]
    %v5958 = vld [vmem:[#allocation8 + $0x8] sm:$0xf]
    %v5959 = vld [vmem:[#allocation8 + $0xc] sm:$0xf]
    %v5960 = vld [vmem:[#allocation8 + $0x10] sm:$0xf]
    %v5961 = vld [vmem:[#allocation8 + $0x14] sm:$0xf]
    %v5962 = vld [vmem:[#allocation8 + $0x18] sm:$0xf]
    %v5963 = vld [vmem:[#allocation8 + $0x1c] sm:$0xf]
    %v5964 = vld [vmem:[#allocation8 + $0x20] sm:$0xf]
    %v5965 = vld [vmem:[#allocation8 + $0x24] sm:$0xf]
    %v5966 = vld [vmem:[#allocation8 + $0x28] sm:$0xf]
    %v5967 = vld [vmem:[#allocation8 + $0x2c] sm:$0xf]
    %v5968 = vld [vmem:[#allocation8 + $0x30] sm:$0xf]
    %v5969 = vld [vmem:[#allocation8 + $0x34] sm:$0xf]
    %v5970 = vld [vmem:[#allocation8 + $0x38] sm:$0xf]
    %v5971 = vld [vmem:[#allocation8 + $0x3c] sm:$0xf]
    %v5972 = vld [vmem:[#allocation8 + $0x40] sm:$0xf]
    %v5973 = vld [vmem:[#allocation8 + $0x44] sm:$0xf]
    %v5974 = vld [vmem:[#allocation8 + $0x48] sm:$0xf]
    %v5975 = vld [vmem:[#allocation8 + $0x4c] sm:$0xf]
    %v5976 = vld [vmem:[#allocation8 + $0x50] sm:$0xf]
    %v5977 = vld [vmem:[#allocation8 + $0x54] sm:$0xf]
    %v5978 = vld [vmem:[#allocation8 + $0x58] sm:$0xf]
    %v5979 = vld [vmem:[#allocation8 + $0x5c] sm:$0xf]
    %v5980 = vld [vmem:[#allocation8 + $0x60] sm:$0xf]
    %v5981 = vld [vmem:[#allocation8 + $0x64] sm:$0xf]
    %v5982 = vld [vmem:[#allocation8 + $0x68] sm:$0xf]
    %v5983 = vld [vmem:[#allocation8 + $0x6c] sm:$0xf]
    %v5984 = vld [vmem:[#allocation8 + $0x70] sm:$0xf]
    %v5985 = vld [vmem:[#allocation8 + $0x74] sm:$0xf]
    %v5986 = vld [vmem:[#allocation8 + $0x78] sm:$0xf]
    %v5987 = vld [vmem:[#allocation8 + $0x7c] sm:$0xf]
    %v5996 = vrot.slane %v4930, 4
    %v5997 = vrot.slane %v4932, 4
    %v5998 = vsel %vm1037, %v5996, %v5997
    %v5999 = vrot.slane %v4931, 4
    %v6000 = vrot.slane %v4933, 4
    %v6001 = vsel %vm1037, %v5999, %v6000
    %v6002 = vrot.slane %v4934, 4
    %v6003 = vsel %vm1037, %v5997, %v6002
    %v6004 = vrot.slane %v4935, 4
    %v6005 = vsel %vm1037, %v6000, %v6004
    %v6006 = vrot.slane %v4936, 4
    %v6007 = vsel %vm1037, %v6002, %v6006
    %v6008 = vrot.slane %v4937, 4
    %v6009 = vsel %vm1037, %v6004, %v6008
    %v6050 = vunpack.c.l.b16 %v5956
    %v6051 = vunpack.c.l.b16 %v5957
    %v6052 = vunpack.c.l.b16 %v5958
    %v6053 = vunpack.c.l.b16 %v5959
    %v6054 = vunpack.c.l.b16 %v5960
    %v6055 = vunpack.c.l.b16 %v5961
    %v6056 = vunpack.c.l.b16 %v5962
    %v6057 = vunpack.c.l.b16 %v5963
    %v6058 = vunpack.c.l.b16 %v5964
    %v6059 = vunpack.c.l.b16 %v5965
    %v6060 = vunpack.c.l.b16 %v5966
    %v6061 = vunpack.c.l.b16 %v5967
    %v6062 = vunpack.c.l.b16 %v5968
    %v6063 = vunpack.c.l.b16 %v5969
    %v6064 = vunpack.c.l.b16 %v5970
    %v6065 = vunpack.c.l.b16 %v5971
    %v6066 = vunpack.c.l.b16 %v5972
    %v6067 = vunpack.c.l.b16 %v5973
    %v6068 = vunpack.c.l.b16 %v5974
    %v6069 = vunpack.c.l.b16 %v5975
    %v6070 = vunpack.c.l.b16 %v5976
    %v6071 = vunpack.c.l.b16 %v5977
    %v6072 = vunpack.c.l.b16 %v5978
    %v6073 = vunpack.c.l.b16 %v5979
    %v6074 = vunpack.c.l.b16 %v5980
    %v6075 = vunpack.c.l.b16 %v5981
    %v6076 = vunpack.c.l.b16 %v5982
    %v6077 = vunpack.c.l.b16 %v5983
    %v6078 = vunpack.c.l.b16 %v5984
    %v6079 = vunpack.c.l.b16 %v5985
    %v6080 = vunpack.c.l.b16 %v5986
    %v6081 = vunpack.c.l.b16 %v5987
    %v6082 = vpack.c.b16 %v6051, %v6050
    %v6083 = vpack.c.b16 %v6053, %v6052
    %v6084 = vpack.c.b16 %v6055, %v6054
    %v6085 = vpack.c.b16 %v6057, %v6056
    %v6086 = vpack.c.b16 %v6059, %v6058
    %v6087 = vpack.c.b16 %v6061, %v6060
    %v6088 = vpack.c.b16 %v6063, %v6062
    %v6089 = vpack.c.b16 %v6065, %v6064
    %v6090 = vpack.c.b16 %v6067, %v6066
    %v6091 = vpack.c.b16 %v6069, %v6068
    %v6092 = vpack.c.b16 %v6071, %v6070
    %v6093 = vpack.c.b16 %v6073, %v6072
    %v6094 = vpack.c.b16 %v6075, %v6074
    %v6095 = vpack.c.b16 %v6077, %v6076
    %v6096 = vpack.c.b16 %v6079, %v6078
    %v6097 = vpack.c.b16 %v6081, %v6080
    %6114 = vmatprep.subr.bf16.mxu0 0
    %6115 = vmatpush1.bf16.msra.mxu0 %v6082
    %6116 = vmatprep.subr.bf16.mxu0 0
    %6117 = vmatpush1.bf16.msra.mxu0 %v6083
    %6118 = vmatprep.subr.bf16.mxu0 0
    %6119 = vmatpush1.bf16.msra.mxu0 %v6084
    %6120 = vmatprep.subr.bf16.mxu0 0
    %6121 = vmatpush1.bf16.msra.mxu0 %v6085
    %6122 = vmatprep.subr.bf16.mxu0 0
    %6123 = vmatpush1.bf16.msra.mxu0 %v6086
    %6124 = vmatprep.subr.bf16.mxu0 0
    %6125 = vmatpush1.bf16.msra.mxu0 %v6087
    %6126 = vmatprep.subr.bf16.mxu0 0
    %6127 = vmatpush1.bf16.msra.mxu0 %v6088
    %6128 = vmatprep.subr.bf16.mxu0 0
    %6129 = vmatpush1.bf16.msra.mxu0 %v6089
    %6130 = vmatprep.subr.bf16.mxu0 0
    %6131 = vmatpush1.bf16.msra.mxu0 %v6090
    %6132 = vmatprep.subr.bf16.mxu0 0
    %6133 = vmatpush1.bf16.msra.mxu0 %v6091
    %6134 = vmatprep.subr.bf16.mxu0 0
    %6135 = vmatpush1.bf16.msra.mxu0 %v6092
    %6136 = vmatprep.subr.bf16.mxu0 0
    %6137 = vmatpush1.bf16.msra.mxu0 %v6093
    %6138 = vmatprep.subr.bf16.mxu0 0
    %6139 = vmatpush1.bf16.msra.mxu0 %v6094
    %6140 = vmatprep.subr.bf16.mxu0 0
    %6141 = vmatpush1.bf16.msra.mxu0 %v6095
    %6142 = vmatprep.subr.bf16.mxu0 0
    %6143 = vmatpush1.bf16.msra.mxu0 %v6096
    %6144 = vmatprep.subr.bf16.mxu0 0
    %6145 = vmatpush1.bf16.msra.mxu0 %v6097
    %6146 = vmatprep.mubr.bf16.mxu0 %v6001
    %6147 = vmatmul.mubr.bf16.gmra.mrb[0].mxu0 %v5998
    %v6148 = vpop.f32.mrb[0].mxu0
    %v6149 = vadd.f32 0.0, %v6148
    %v6150 = vpop.f32.mrb[0].mxu0
    %v6151 = vpop.f32.mrb[0].mxu0
    %v6152 = vadd.f32 0.0, %v6151
    %v6153 = vpop.f32.mrb[0].mxu0
    %6154 = vmatprep.mubr.bf16.mxu0 %v6005
    %6155 = vmatmul.mubr.bf16.gmra.mrb[0].mxu0 %v6003
    %v6156 = vpop.f32.mrb[0].mxu0
    %v6157 = vadd.f32 0.0, %v6156
    %v6158 = vpop.f32.mrb[0].mxu0
    %v6159 = vpop.f32.mrb[0].mxu0
    %v6160 = vadd.f32 0.0, %v6159
    %v6161 = vpop.f32.mrb[0].mxu0
    %6162 = vmatprep.mubr.bf16.mxu0 %v6009
    %6163 = vmatmul.mubr.bf16.gmra.mrb[0].mxu0 %v6007
    %v6164 = vpop.f32.mrb[0].mxu0
    %v6165 = vadd.f32 0.0, %v6164
    %v6166 = vpop.f32.mrb[0].mxu0
    %v6167 = vpop.f32.mrb[0].mxu0
    %v6168 = vadd.f32 0.0, %v6167
    %v6169 = vpop.f32.mrb[0].mxu0
    %6170 = vmatprep.mubr.bf16.mxu0 %v6008
    %6171 = vmatmul.mubr.bf16.gmra.mrb[0].mxu0 %v6006
    %v6172 = vpop.f32.mrb[0].mxu0
    %v6173 = vadd.f32 0.0, %v6172
    %v6174 = vpop.f32.mrb[0].mxu0
    %v6175 = vpop.f32.mrb[0].mxu0
    %v6176 = vpop.f32.mrb[0].mxu0
    %6177 = vdwg.mxu0
    %v6210 = vunpack.c.l.b16 %v5924
    %v6211 = vunpack.c.l.b16 %v5925
    %v6212 = vunpack.c.l.b16 %v5926
    %v6213 = vunpack.c.l.b16 %v5927
    %v6214 = vunpack.c.l.b16 %v5928
    %v6215 = vunpack.c.l.b16 %v5929
    %v6216 = vunpack.c.l.b16 %v5930
    %v6217 = vunpack.c.l.b16 %v5931
    %v6218 = vunpack.c.l.b16 %v5932
    %v6219 = vunpack.c.l.b16 %v5933
    %v6220 = vunpack.c.l.b16 %v5934
    %v6221 = vunpack.c.l.b16 %v5935
    %v6222 = vunpack.c.l.b16 %v5936
    %v6223 = vunpack.c.l.b16 %v5937
    %v6224 = vunpack.c.l.b16 %v5938
    %v6225 = vunpack.c.l.b16 %v5939
    %v6226 = vunpack.c.l.b16 %v5940
    %v6227 = vunpack.c.l.b16 %v5941
    %v6228 = vunpack.c.l.b16 %v5942
    %v6229 = vunpack.c.l.b16 %v5943
    %v6230 = vunpack.c.l.b16 %v5944
    %v6231 = vunpack.c.l.b16 %v5945
    %v6232 = vunpack.c.l.b16 %v5946
    %v6233 = vunpack.c.l.b16 %v5947
    %v6234 = vunpack.c.l.b16 %v5948
    %v6235 = vunpack.c.l.b16 %v5949
    %v6236 = vunpack.c.l.b16 %v5950
    %v6237 = vunpack.c.l.b16 %v5951
    %v6238 = vunpack.c.l.b16 %v5952
    %v6239 = vunpack.c.l.b16 %v5953
    %v6240 = vunpack.c.l.b16 %v5954
    %v6241 = vunpack.c.l.b16 %v5955
    %v6242 = vpack.c.b16 %v6211, %v6210
    %v6243 = vpack.c.b16 %v6213, %v6212
    %v6244 = vpack.c.b16 %v6215, %v6214
    %v6245 = vpack.c.b16 %v6217, %v6216
    %v6246 = vpack.c.b16 %v6219, %v6218
    %v6247 = vpack.c.b16 %v6221, %v6220
    %v6248 = vpack.c.b16 %v6223, %v6222
    %v6249 = vpack.c.b16 %v6225, %v6224
    %v6250 = vpack.c.b16 %v6227, %v6226
    %v6251 = vpack.c.b16 %v6229, %v6228
    %v6252 = vpack.c.b16 %v6231, %v6230
    %v6253 = vpack.c.b16 %v6233, %v6232
    %v6254 = vpack.c.b16 %v6235, %v6234
    %v6255 = vpack.c.b16 %v6237, %v6236
    %v6256 = vpack.c.b16 %v6239, %v6238
    %v6257 = vpack.c.b16 %v6241, %v6240
    %6274 = vmatprep.subr.bf16.mxu0 0
    %6275 = vmatpush1.bf16.msra.mxu0 %v6242
    %6276 = vmatprep.subr.bf16.mxu0 0
    %6277 = vmatpush1.bf16.msra.mxu0 %v6243
    %6278 = vmatprep.subr.bf16.mxu0 0
    %6279 = vmatpush1.bf16.msra.mxu0 %v6244
    %6280 = vmatprep.subr.bf16.mxu0 0
    %6281 = vmatpush1.bf16.msra.mxu0 %v6245
    %6282 = vmatprep.subr.bf16.mxu0 0
    %6283 = vmatpush1.bf16.msra.mxu0 %v6246
    %6284 = vmatprep.subr.bf16.mxu0 0
    %6285 = vmatpush1.bf16.msra.mxu0 %v6247
    %6286 = vmatprep.subr.bf16.mxu0 0
    %6287 = vmatpush1.bf16.msra.mxu0 %v6248
    %6288 = vmatprep.subr.bf16.mxu0 0
    %6289 = vmatpush1.bf16.msra.mxu0 %v6249
    %6290 = vmatprep.subr.bf16.mxu0 0
    %6291 = vmatpush1.bf16.msra.mxu0 %v6250
    %6292 = vmatprep.subr.bf16.mxu0 0
    %6293 = vmatpush1.bf16.msra.mxu0 %v6251
    %6294 = vmatprep.subr.bf16.mxu0 0
    %6295 = vmatpush1.bf16.msra.mxu0 %v6252
    %6296 = vmatprep.subr.bf16.mxu0 0
    %6297 = vmatpush1.bf16.msra.mxu0 %v6253
    %6298 = vmatprep.subr.bf16.mxu0 0
    %6299 = vmatpush1.bf16.msra.mxu0 %v6254
    %6300 = vmatprep.subr.bf16.mxu0 0
    %6301 = vmatpush1.bf16.msra.mxu0 %v6255
    %6302 = vmatprep.subr.bf16.mxu0 0
    %6303 = vmatpush1.bf16.msra.mxu0 %v6256
    %6304 = vmatprep.subr.bf16.mxu0 0
    %6305 = vmatpush1.bf16.msra.mxu0 %v6257
    %6306 = vmatprep.mubr.bf16.mxu0 %v4939
    %6307 = vmatmul.mubr.bf16.gmra.mrb[0].mxu0 %v4938
    %v6308 = vpop.f32.mrb[0].mxu0
    %v6309 = vadd.f32 %v6149, %v6308
    %v6310 = vpop.f32.mrb[0].mxu0
    %v6311 = vpop.f32.mrb[0].mxu0
    %v6312 = vadd.f32 %v6152, %v6311
    %v6313 = vpop.f32.mrb[0].mxu0
    %6314 = vmatprep.mubr.bf16.mxu0 %v4941
    %6315 = vmatmul.mubr.bf16.gmra.mrb[0].mxu0 %v4940
    %v6316 = vpop.f32.mrb[0].mxu0
    %v6317 = vadd.f32 %v6157, %v6316
    %v6318 = vpop.f32.mrb[0].mxu0
    %v6319 = vpop.f32.mrb[0].mxu0
    %v6320 = vadd.f32 %v6160, %v6319
    %v6321 = vpop.f32.mrb[0].mxu0
    %6322 = vmatprep.mubr.bf16.mxu0 %v4943
    %6323 = vmatmul.mubr.bf16.gmra.mrb[0].mxu0 %v4942
    %v6324 = vpop.f32.mrb[0].mxu0
    %v6325 = vadd.f32 %v6165, %v6324
    %v6326 = vpop.f32.mrb[0].mxu0
    %v6327 = vpop.f32.mrb[0].mxu0
    %v6328 = vadd.f32 %v6168, %v6327
    %v6329 = vpop.f32.mrb[0].mxu0
    %6330 = vmatprep.mubr.bf16.mxu0 %v4945
    %6331 = vmatmul.mubr.bf16.gmra.mrb[0].mxu0 %v4944
    %v6332 = vpop.f32.mrb[0].mxu0
    %v6333 = vadd.f32 %v6173, %v6332
    %v6334 = vpop.f32.mrb[0].mxu0
    %v6335 = vpop.f32.mrb[0].mxu0
    %v6336 = vpop.f32.mrb[0].mxu0
    %6337 = vdwg.mxu0
    %v6338 = vadd.f32 %v6309, %v4984
    %v6339 = vadd.f32 %v6312, %v4984
    %v6340 = vadd.f32 %v6317, %v4984
    %v6341 = vadd.f32 %v6320, %v4984
    %v6342 = vadd.f32 %v6325, %v4984
    %v6343 = vadd.f32 %v6328, %v4984
    %v6344 = vadd.f32 %v6333, %v4984
    %v6345 = vmul.f32 %v6338, 0.5
    %v6346 = vmul.f32 %v6339, 0.5
    %v6347 = vmul.f32 %v6340, 0.5
    %v6348 = vmul.f32 %v6341, 0.5
    %v6349 = vmul.f32 %v6342, 0.5
    %v6350 = vmul.f32 %v6343, 0.5
    %v6351 = vmul.f32 %v6344, 0.5
    %v6352 = vtanh.pop %v6345
    %v6353 = vtanh.pop %v6346
    %v6354 = vtanh.pop %v6347
    %v6355 = vtanh.pop %v6348
    %v6356 = vtanh.pop %v6349
    %v6357 = vtanh.pop %v6350
    %v6358 = vtanh.pop %v6351
    %v6359 = vmul.f32 %v6352, 0.5
    %v6360 = vmul.f32 %v6353, 0.5
    %v6361 = vmul.f32 %v6354, 0.5
    %v6362 = vmul.f32 %v6355, 0.5
    %v6363 = vmul.f32 %v6356, 0.5
    %v6364 = vmul.f32 %v6357, 0.5
    %v6365 = vmul.f32 %v6358, 0.5
    %v6366 = vadd.f32 %v6359, 0.5
    %v6367 = vadd.f32 %v6360, 0.5
    %v6368 = vadd.f32 %v6361, 0.5
    %v6369 = vadd.f32 %v6362, 0.5
    %v6370 = vadd.f32 %v6363, 0.5
    %v6371 = vadd.f32 %v6364, 0.5
    %v6372 = vadd.f32 %v6365, 0.5
    %v6373 = vpack.c.bf16 %v6367, %v6366
    %v6374 = vpack.c.bf16 %v6369, %v6368
    %v6375 = vpack.c.bf16 %v6371, %v6370
    %v6376 = vpack.c.bf16 %v6372, %v6372
    %v6381 = vunpack.c.l.b16 %v6373
    %v6382 = vunpack.c.h.b16 %v6373
    %v6383 = vunpack.c.l.b16 %v6374
    %v6384 = vunpack.c.h.b16 %v6374
    %v6385 = vunpack.c.l.b16 %v6375
    %v6386 = vunpack.c.h.b16 %v6375
    %v6387 = vunpack.c.l.b16 %v6376
    %v6388 = vpack.c.b16 %v6381, %v6381
    %v6389 = vpack.c.b16 %v6382, %v6382
    %v6390 = vpack.c.b16 %v6383, %v6383
    %v6391 = vpack.c.b16 %v6384, %v6384
    %v6392 = vpack.c.b16 %v6385, %v6385
    %v6393 = vpack.c.b16 %v6386, %v6386
    %v6394 = vpack.c.b16 %v6387, %v6387
    %s6402 = scalar_lea.vmem %s13, 84
    %6403 = vst [vmem:[%s6402] sm:$0xf] %v6388
    %6404 = vst [vmem:[%s6402 + $0x4] sm:$0xf] %v6389
    %6405 = vst [vmem:[%s6402 + $0x8] sm:$0xf] %v6390
    %6406 = vst [vmem:[%s6402 + $0xc] sm:$0xf] %v6391
    %6407 = vst [vmem:[%s6402 + $0x10] sm:$0xf] %v6392
    %6408 = vst [vmem:[%s6402 + $0x14] sm:$0xf] %v6393
    %6409 = vst [vmem:[%s6402 + $0x18] sm:$0xf] %v6394
    // Predicated region
    $region62: #{autoencoder_forward.1} parent=1 // pred_check
      _
    $region63: #{autoencoder_forward.1} parent=1 // pred_check_branch
      %6411 = sbr.rel (0) target = $region65
    $region64: #{autoencoder_forward.1} parent=1 // pred_region
      _
    $region65: #{autoencoder_forward.1} parent=1 // pred_fallthru
      _
    // Predicated region
    $region66: #{autoencoder_forward.1} parent=1 // pred_check
      _
    $region67: #{autoencoder_forward.1} parent=1 // pred_check_branch
      %6413 = sbr.rel (0) target = $region69
    $region68: #{autoencoder_forward.1} parent=1 // pred_region
      _
    $region69: #{autoencoder_forward.1} parent=1 // pred_fallthru
      _
    %6414 = vsyncpa [#allocation7], 1
    %6415 = vsyncpa [#allocation9], 1

</llo_original>
